<compile_context>
chip_gen: v7x
topology: tpu7x:2x2x1
jax: 0.10.0
libtpu: 0.0.40
codegen_flags: <defaults>
</compile_context>

<pallas_src>
import functools
import numpy as np
import jax
import jax.numpy as jnp
from jax import lax
from jax.experimental import pallas as pl
from jax.experimental.pallas import tpu as pltpu  # noqa: F401  (kept for TPU-specific knobs)


# ------------------------- in-kernel math helpers -------------------------

def _layer_norm(x, gamma, beta, eps=1e-6):
    # x: (N, d); gamma/beta: (1, d)
    mu = jnp.mean(x, axis=-1, keepdims=True)
    xc = x - mu
    var = jnp.mean(xc * xc, axis=-1, keepdims=True)
    return xc * lax.rsqrt(var + eps) * gamma + beta


def _mha_heads(Q, K, V, Wo, bias, h, d_k):
    """Multi-head attention + output projection.

    Q/K/V: (N, h*d_k) with Q already scaled by 1/sqrt(d_k).
    Wo:    (h*d_k, d) output projection.
    bias:  (N, N) additive mask (0 inside a batch, -1e30 across batches).
    Instead of concatenating head outputs and multiplying once by Wo, each head's
    context is multiplied by its own row-block of Wo and accumulated (same math,
    no lane concatenate, no intermediate buffer).
    """
    out = None
    for i in range(h):
        lo = i * d_k
        Qh = Q[:, lo:lo + d_k]
        Kh = K[:, lo:lo + d_k]
        Vh = V[:, lo:lo + d_k]
        # scores = Qh @ Kh.T  (contract last dims -> no explicit transpose)
        s = lax.dot_general(Qh, Kh, dimension_numbers=(((1,), (1,)), ((), ())),
                            preferred_element_type=jnp.float32) + bias
        s = s - jnp.max(s, axis=-1, keepdims=True)
        p = jnp.exp(s)
        p = p * pl.reciprocal(jnp.sum(p, axis=-1, keepdims=True), approx=False)
        ctx = jnp.dot(p, Vh, preferred_element_type=jnp.float32)          # (N, d_k)
        part = jnp.dot(ctx, Wo[lo:lo + d_k, :],
                       preferred_element_type=jnp.float32)                # (N, d)
        out = part if out is None else out + part
    return out


# ------------------------------ Pallas kernel ------------------------------

def decoder_layer_kernel(xe_ref, bias_ref, wqkv1_ref, wkv2_ref, wmisc_ref,
                         wff1_ref, wff2_ref, bff1_ref, lnb_ref, o_ref, *, h, d_k):
    d = h * d_k
    x = xe_ref[0]         # (N, d) decoder input (batch folded into rows)
    enc = xe_ref[1]       # (N, d) encoder output
    bias = bias_ref[...]  # (N, N) block-diagonal batch mask
    lnb = lnb_ref[...]    # (7, d): g1,b1,g2,b2,g3,b3,b_ff2

    # --- self multi-head attention (fused QKV projection) + Add&Norm ---
    qkv = jnp.dot(x, wqkv1_ref[...], preferred_element_type=jnp.float32)   # (N, 3d)
    sa = _mha_heads(qkv[:, 0:d], qkv[:, d:2 * d], qkv[:, 2 * d:3 * d],
                    wmisc_ref[0], bias, h, d_k)
    x = _layer_norm(x + sa, lnb[0:1, :], lnb[1:2, :])

    # --- encoder-decoder multi-head attention (fused KV projection) + Add&Norm ---
    q2 = jnp.dot(x, wmisc_ref[1], preferred_element_type=jnp.float32)      # pre-scaled
    kv2 = jnp.dot(enc, wkv2_ref[...], preferred_element_type=jnp.float32)  # (N, 2d)
    ca = _mha_heads(q2, kv2[:, 0:d], kv2[:, d:2 * d],
                    wmisc_ref[2], bias, h, d_k)
    x = _layer_norm(x + ca, lnb[2:3, :], lnb[3:4, :])

    # --- position-wise feed-forward + Add&Norm ---
    hdn = jnp.maximum(
        jnp.dot(x, wff1_ref[...], preferred_element_type=jnp.float32) + bff1_ref[...],
        0.0)
    ff = jnp.dot(hdn, wff2_ref[...], preferred_element_type=jnp.float32) + lnb[6:7, :]
    x = _layer_norm(x + ff, lnb[4:5, :], lnb[5:6, :])

    o_ref[...] = x


def decoder_layer(x, enc_out, params, *, h):
    nb, nw, d = x.shape
    d_k = d // h
    N = nb * nw
    scale = 1.0 / float(np.sqrt(d_k))

    # --- wrapper-side packing (plain XLA ops, outside the kernel) ---
    xe = jnp.stack([x.reshape(N, d), enc_out.reshape(N, d)], axis=0)       # (2, N, d)

    # Block-diagonal additive bias so a single (N, N) score matmul per head never
    # mixes batches.  TODO(synk): fold user-provided attention masks in here.
    bid = jnp.arange(N, dtype=jnp.int32) // nw
    attn_bias = jnp.where(bid[:, None] == bid[None, :], 0.0, -1e30).astype(jnp.float32)

    # Fused / stacked weights (Q columns pre-scaled by 1/sqrt(d_k)).
    w_qkv1 = jnp.concatenate(
        [params["wq1"] * scale, params["wk1"], params["wv1"]], axis=1)     # (d, 3d)
    w_kv2 = jnp.concatenate([params["wk2"], params["wv2"]], axis=1)        # (d, 2d)
    w_misc = jnp.stack(
        [params["wo1"], params["wq2"] * scale, params["wo2"]], axis=0)     # (3, d, d)
    ln_b = jnp.concatenate(
        [params["g1"], params["b1"], params["g2"], params["b2"],
         params["g3"], params["b3"], params["b_ff2"]], axis=0)             # (7, d)

    kernel = functools.partial(decoder_layer_kernel, h=h, d_k=d_k)

    out = pl.pallas_call(
        kernel,
        out_shape=jax.ShapeDtypeStruct((N, d), jnp.float32),
        # No grid: the whole (tiny) layer is one invocation; all operands live
        # fully in VMEM (default whole-array blocks).
    )(xe, attn_bias, w_qkv1, w_kv2, w_misc,
      params["w_ff1"], params["w_ff2"], params["b_ff1"], ln_b)

    return out.reshape(nb, nw, d)


# --------------------------- pure-JAX reference ----------------------------

def _ref_mha(xq, xkv, wq, wk, wv, wo, h, d_k):
    nb, nwq, d = xq.shape
    nwk = xkv.shape[1]
    Q = (xq @ wq).reshape(nb, nwq, h, d_k).transpose(0, 2, 1, 3)
    K = (xkv @ wk).reshape(nb, nwk, h, d_k).transpose(0, 2, 1, 3)
    V = (xkv @ wv).reshape(nb, nwk, h, d_k).transpose(0, 2, 1, 3)
    scores = jnp.einsum("bhqd,bhkd->bhqk", Q, K) / np.sqrt(d_k)
    p = jax.nn.softmax(scores, axis=-1)
    out = jnp.einsum("bhqk,bhkd->bhqd", p, V).transpose(0, 2, 1, 3).reshape(nb, nwq, d)
    return out @ wo


def _ref_ln(x, g, b, eps=1e-6):
    mu = jnp.mean(x, axis=-1, keepdims=True)
    var = jnp.mean((x - mu) ** 2, axis=-1, keepdims=True)
    return (x - mu) / jnp.sqrt(var + eps) * g + b


def ref_decoder_layer(x, enc, p, *, h):
    d = x.shape[-1]
    d_k = d // h
    x = _ref_ln(x + _ref_mha(x, x, p["wq1"], p["wk1"], p["wv1"], p["wo1"], h, d_k),
                p["g1"], p["b1"])
    x = _ref_ln(x + _ref_mha(x, enc, p["wq2"], p["wk2"], p["wv2"], p["wo2"], h, d_k),
                p["g2"], p["b2"])
    ff = jnp.maximum(x @ p["w_ff1"] + p["b_ff1"], 0.0) @ p["w_ff2"] + p["b_ff2"]
    x = _ref_ln(x + ff, p["g3"], p["b3"])
    return x


# ---------------------------------- main -----------------------------------

if __name__ == "__main__":
    nb, nw, d_model, h, d_ff = 2, 8, 32, 4, 64

    key = jax.random.PRNGKey(0)
    keys = jax.random.split(key, 20)
    ki = iter(keys)

    def rnd(shape, scale=0.1):
        return (scale * jax.random.normal(next(ki), shape)).astype(jnp.float32)

    params = {
        # self-attention projections (stored [in, out])
        "wq1": rnd((d_model, d_model)), "wk1": rnd((d_model, d_model)),
        "wv1": rnd((d_model, d_model)), "wo1": rnd((d_model, d_model)),
        # encoder-decoder attention projections
        "wq2": rnd((d_model, d_model)), "wk2": rnd((d_model, d_model)),
        "wv2": rnd((d_model, d_model)), "wo2": rnd((d_model, d_model)),
        # position-wise FFN
        "w_ff1": rnd((d_model, d_ff)), "b_ff1": rnd((1, d_ff)),
        "w_ff2": rnd((d_ff, d_model)), "b_ff2": rnd((1, d_model)),
        # layer norms (gamma near 1, beta near 0 — deterministic)
        "g1": 1.0 + rnd((1, d_model)), "b1": rnd((1, d_model)),
        "g2": 1.0 + rnd((1, d_model)), "b2": rnd((1, d_model)),
        "g3": 1.0 + rnd((1, d_model)), "b3": rnd((1, d_model)),
    }

    x = jax.random.normal(next(ki), (nb, nw, d_model), dtype=jnp.float32)
    enc_out = jax.random.normal(next(ki), (nb, nw, d_model), dtype=jnp.float32)

    out = decoder_layer(x, enc_out, params, h=h)
    out = jax.block_until_ready(out)

    ref = jax.block_until_ready(ref_decoder_layer(x, enc_out, params, h=h))
    assert out.shape == (nb, nw, d_model)
    np.testing.assert_allclose(np.asarray(out), np.asarray(ref), rtol=1e-4, atol=1e-4)

    print("KERNEL_OK")
</pallas_src>

<mosaic_0001>
module attributes {stable_mosaic.version = 11 : i64} {
  func.func @decoder_layer_kernel(%arg0: memref<2x16x32xf32, #tpu.memory_space<vmem>>, %arg1: memref<16x16xf32, #tpu.memory_space<vmem>>, %arg2: memref<32x96xf32, #tpu.memory_space<vmem>>, %arg3: memref<32x64xf32, #tpu.memory_space<vmem>>, %arg4: memref<3x32x32xf32, #tpu.memory_space<vmem>>, %arg5: memref<32x64xf32, #tpu.memory_space<vmem>>, %arg6: memref<64x32xf32, #tpu.memory_space<vmem>>, %arg7: memref<1x64xf32, #tpu.memory_space<vmem>>, %arg8: memref<7x32xf32, #tpu.memory_space<vmem>>, %arg9: memref<16x32xf32, #tpu.memory_space<vmem>>) attributes {dimension_semantics = [], scalar_prefetch = 0 : i64, scratch_operands = 0 : i64, tpu.core_type = #tpu.core_type<tc>} {
    %c0 = arith.constant 0 : index
    %c0_0 = arith.constant 0 : index
    %c0_1 = arith.constant 0 : index
    %0 = vector.load %arg0[%c0, %c0_0, %c0_1] : memref<2x16x32xf32, #tpu.memory_space<vmem>>, vector<1x16x32xf32>
    %1 = vector.shape_cast %0 : vector<1x16x32xf32> to vector<16x32xf32>
    %c1 = arith.constant 1 : index
    %c0_2 = arith.constant 0 : index
    %c0_3 = arith.constant 0 : index
    %2 = vector.load %arg0[%c1, %c0_2, %c0_3] : memref<2x16x32xf32, #tpu.memory_space<vmem>>, vector<1x16x32xf32>
    %3 = vector.shape_cast %2 : vector<1x16x32xf32> to vector<16x32xf32>
    %c0_4 = arith.constant 0 : index
    %c0_5 = arith.constant 0 : index
    %4 = vector.load %arg1[%c0_4, %c0_5] : memref<16x16xf32, #tpu.memory_space<vmem>>, vector<16x16xf32>
    %c0_6 = arith.constant 0 : index
    %c0_7 = arith.constant 0 : index
    %5 = vector.load %arg8[%c0_6, %c0_7] : memref<7x32xf32, #tpu.memory_space<vmem>>, vector<7x32xf32>
    %c0_8 = arith.constant 0 : index
    %c0_9 = arith.constant 0 : index
    %6 = vector.load %arg2[%c0_8, %c0_9] : memref<32x96xf32, #tpu.memory_space<vmem>>, vector<32x96xf32>
    %cst = arith.constant dense<0.000000e+00> : vector<16x96xf32>
    %7 = tpu.matmul %1, %6, %cst {dimension_numbers = #tpu.dot_dimension_numbers<[1], [0], [0], [1], [0, 0, 1, 1], [], []>} : vector<16x32xf32>, vector<32x96xf32>, vector<16x96xf32> -> vector<16x96xf32>
    %8 = vector.extract_strided_slice %7 {offsets = [0, 0], sizes = [16, 32], strides = [1, 1]} : vector<16x96xf32> to vector<16x32xf32>
    %9 = vector.extract_strided_slice %7 {offsets = [0, 32], sizes = [16, 32], strides = [1, 1]} : vector<16x96xf32> to vector<16x32xf32>
    %10 = vector.extract_strided_slice %7 {offsets = [0, 64], sizes = [16, 32], strides = [1, 1]} : vector<16x96xf32> to vector<16x32xf32>
    %c0_10 = arith.constant 0 : index
    %c0_11 = arith.constant 0 : index
    %c0_12 = arith.constant 0 : index
    %11 = vector.load %arg4[%c0_10, %c0_11, %c0_12] : memref<3x32x32xf32, #tpu.memory_space<vmem>>, vector<1x32x32xf32>
    %12 = vector.shape_cast %11 : vector<1x32x32xf32> to vector<32x32xf32>
    %13 = vector.extract_strided_slice %8 {offsets = [0, 0], sizes = [16, 8], strides = [1, 1]} : vector<16x32xf32> to vector<16x8xf32>
    %14 = vector.extract_strided_slice %9 {offsets = [0, 0], sizes = [16, 8], strides = [1, 1]} : vector<16x32xf32> to vector<16x8xf32>
    %15 = vector.extract_strided_slice %10 {offsets = [0, 0], sizes = [16, 8], strides = [1, 1]} : vector<16x32xf32> to vector<16x8xf32>
    %cst_13 = arith.constant dense<0.000000e+00> : vector<16x16xf32>
    %16 = tpu.matmul %13, %14, %cst_13 {dimension_numbers = #tpu.dot_dimension_numbers<[1], [1], [0], [0], [0, 0, 1, 0], [], []>} : vector<16x8xf32>, vector<16x8xf32>, vector<16x16xf32> -> vector<16x16xf32>
    %17 = arith.addf %16, %4 : vector<16x16xf32>
    %cst_14 = arith.constant dense<0xFF800000> : vector<16xf32>
    %18 = vector.multi_reduction <maximumf>, %17, %cst_14 [1] : vector<16x16xf32> to vector<16xf32>
    %19 = vector.shape_cast %18 : vector<16xf32> to vector<16x1xf32>
    %20 = vector.broadcast %19 : vector<16x1xf32> to vector<16x16xf32>
    %21 = arith.subf %17, %20 : vector<16x16xf32>
    %22 = math.exp %21 : vector<16x16xf32>
    %cst_15 = arith.constant dense<0.000000e+00> : vector<16xf32>
    %23 = vector.multi_reduction <add>, %22, %cst_15 [1] : vector<16x16xf32> to vector<16xf32>
    %24 = vector.shape_cast %23 : vector<16xf32> to vector<16x1xf32>
    %25 = tpu.reciprocal %24 : vector<16x1xf32> -> vector<16x1xf32>
    %26 = vector.broadcast %25 : vector<16x1xf32> to vector<16x16xf32>
    %27 = arith.mulf %22, %26 : vector<16x16xf32>
    %cst_16 = arith.constant dense<0.000000e+00> : vector<16x8xf32>
    %28 = tpu.matmul %27, %15, %cst_16 {dimension_numbers = #tpu.dot_dimension_numbers<[1], [0], [0], [1], [0, 0, 1, 1], [], []>} : vector<16x16xf32>, vector<16x8xf32>, vector<16x8xf32> -> vector<16x8xf32>
    %29 = vector.extract_strided_slice %12 {offsets = [0, 0], sizes = [8, 32], strides = [1, 1]} : vector<32x32xf32> to vector<8x32xf32>
    %cst_17 = arith.constant dense<0.000000e+00> : vector<16x32xf32>
    %30 = tpu.matmul %28, %29, %cst_17 {dimension_numbers = #tpu.dot_dimension_numbers<[1], [0], [0], [1], [0, 0, 1, 1], [], []>} : vector<16x8xf32>, vector<8x32xf32>, vector<16x32xf32> -> vector<16x32xf32>
    %31 = vector.extract_strided_slice %8 {offsets = [0, 8], sizes = [16, 8], strides = [1, 1]} : vector<16x32xf32> to vector<16x8xf32>
    %32 = vector.extract_strided_slice %9 {offsets = [0, 8], sizes = [16, 8], strides = [1, 1]} : vector<16x32xf32> to vector<16x8xf32>
    %33 = vector.extract_strided_slice %10 {offsets = [0, 8], sizes = [16, 8], strides = [1, 1]} : vector<16x32xf32> to vector<16x8xf32>
    %cst_18 = arith.constant dense<0.000000e+00> : vector<16x16xf32>
    %34 = tpu.matmul %31, %32, %cst_18 {dimension_numbers = #tpu.dot_dimension_numbers<[1], [1], [0], [0], [0, 0, 1, 0], [], []>} : vector<16x8xf32>, vector<16x8xf32>, vector<16x16xf32> -> vector<16x16xf32>
    %35 = arith.addf %34, %4 : vector<16x16xf32>
    %cst_19 = arith.constant dense<0xFF800000> : vector<16xf32>
    %36 = vector.multi_reduction <maximumf>, %35, %cst_19 [1] : vector<16x16xf32> to vector<16xf32>
    %37 = vector.shape_cast %36 : vector<16xf32> to vector<16x1xf32>
    %38 = vector.broadcast %37 : vector<16x1xf32> to vector<16x16xf32>
    %39 = arith.subf %35, %38 : vector<16x16xf32>
    %40 = math.exp %39 : vector<16x16xf32>
    %cst_20 = arith.constant dense<0.000000e+00> : vector<16xf32>
    %41 = vector.multi_reduction <add>, %40, %cst_20 [1] : vector<16x16xf32> to vector<16xf32>
    %42 = vector.shape_cast %41 : vector<16xf32> to vector<16x1xf32>
    %43 = tpu.reciprocal %42 : vector<16x1xf32> -> vector<16x1xf32>
    %44 = vector.broadcast %43 : vector<16x1xf32> to vector<16x16xf32>
    %45 = arith.mulf %40, %44 : vector<16x16xf32>
    %cst_21 = arith.constant dense<0.000000e+00> : vector<16x8xf32>
    %46 = tpu.matmul %45, %33, %cst_21 {dimension_numbers = #tpu.dot_dimension_numbers<[1], [0], [0], [1], [0, 0, 1, 1], [], []>} : vector<16x16xf32>, vector<16x8xf32>, vector<16x8xf32> -> vector<16x8xf32>
    %47 = vector.extract_strided_slice %12 {offsets = [8, 0], sizes = [8, 32], strides = [1, 1]} : vector<32x32xf32> to vector<8x32xf32>
    %cst_22 = arith.constant dense<0.000000e+00> : vector<16x32xf32>
    %48 = tpu.matmul %46, %47, %cst_22 {dimension_numbers = #tpu.dot_dimension_numbers<[1], [0], [0], [1], [0, 0, 1, 1], [], []>} : vector<16x8xf32>, vector<8x32xf32>, vector<16x32xf32> -> vector<16x32xf32>
    %49 = arith.addf %30, %48 : vector<16x32xf32>
    %50 = vector.extract_strided_slice %8 {offsets = [0, 16], sizes = [16, 8], strides = [1, 1]} : vector<16x32xf32> to vector<16x8xf32>
    %51 = vector.extract_strided_slice %9 {offsets = [0, 16], sizes = [16, 8], strides = [1, 1]} : vector<16x32xf32> to vector<16x8xf32>
    %52 = vector.extract_strided_slice %10 {offsets = [0, 16], sizes = [16, 8], strides = [1, 1]} : vector<16x32xf32> to vector<16x8xf32>
    %cst_23 = arith.constant dense<0.000000e+00> : vector<16x16xf32>
    %53 = tpu.matmul %50, %51, %cst_23 {dimension_numbers = #tpu.dot_dimension_numbers<[1], [1], [0], [0], [0, 0, 1, 0], [], []>} : vector<16x8xf32>, vector<16x8xf32>, vector<16x16xf32> -> vector<16x16xf32>
    %54 = arith.addf %53, %4 : vector<16x16xf32>
    %cst_24 = arith.constant dense<0xFF800000> : vector<16xf32>
    %55 = vector.multi_reduction <maximumf>, %54, %cst_24 [1] : vector<16x16xf32> to vector<16xf32>
    %56 = vector.shape_cast %55 : vector<16xf32> to vector<16x1xf32>
    %57 = vector.broadcast %56 : vector<16x1xf32> to vector<16x16xf32>
    %58 = arith.subf %54, %57 : vector<16x16xf32>
    %59 = math.exp %58 : vector<16x16xf32>
    %cst_25 = arith.constant dense<0.000000e+00> : vector<16xf32>
    %60 = vector.multi_reduction <add>, %59, %cst_25 [1] : vector<16x16xf32> to vector<16xf32>
    %61 = vector.shape_cast %60 : vector<16xf32> to vector<16x1xf32>
    %62 = tpu.reciprocal %61 : vector<16x1xf32> -> vector<16x1xf32>
    %63 = vector.broadcast %62 : vector<16x1xf32> to vector<16x16xf32>
    %64 = arith.mulf %59, %63 : vector<16x16xf32>
    %cst_26 = arith.constant dense<0.000000e+00> : vector<16x8xf32>
    %65 = tpu.matmul %64, %52, %cst_26 {dimension_numbers = #tpu.dot_dimension_numbers<[1], [0], [0], [1], [0, 0, 1, 1], [], []>} : vector<16x16xf32>, vector<16x8xf32>, vector<16x8xf32> -> vector<16x8xf32>
    %66 = vector.extract_strided_slice %12 {offsets = [16, 0], sizes = [8, 32], strides = [1, 1]} : vector<32x32xf32> to vector<8x32xf32>
    %cst_27 = arith.constant dense<0.000000e+00> : vector<16x32xf32>
    %67 = tpu.matmul %65, %66, %cst_27 {dimension_numbers = #tpu.dot_dimension_numbers<[1], [0], [0], [1], [0, 0, 1, 1], [], []>} : vector<16x8xf32>, vector<8x32xf32>, vector<16x32xf32> -> vector<16x32xf32>
    %68 = arith.addf %49, %67 : vector<16x32xf32>
    %69 = vector.extract_strided_slice %8 {offsets = [0, 24], sizes = [16, 8], strides = [1, 1]} : vector<16x32xf32> to vector<16x8xf32>
    %70 = vector.extract_strided_slice %9 {offsets = [0, 24], sizes = [16, 8], strides = [1, 1]} : vector<16x32xf32> to vector<16x8xf32>
    %71 = vector.extract_strided_slice %10 {offsets = [0, 24], sizes = [16, 8], strides = [1, 1]} : vector<16x32xf32> to vector<16x8xf32>
    %cst_28 = arith.constant dense<0.000000e+00> : vector<16x16xf32>
    %72 = tpu.matmul %69, %70, %cst_28 {dimension_numbers = #tpu.dot_dimension_numbers<[1], [1], [0], [0], [0, 0, 1, 0], [], []>} : vector<16x8xf32>, vector<16x8xf32>, vector<16x16xf32> -> vector<16x16xf32>
    %73 = arith.addf %72, %4 : vector<16x16xf32>
    %cst_29 = arith.constant dense<0xFF800000> : vector<16xf32>
    %74 = vector.multi_reduction <maximumf>, %73, %cst_29 [1] : vector<16x16xf32> to vector<16xf32>
    %75 = vector.shape_cast %74 : vector<16xf32> to vector<16x1xf32>
    %76 = vector.broadcast %75 : vector<16x1xf32> to vector<16x16xf32>
    %77 = arith.subf %73, %76 : vector<16x16xf32>
    %78 = math.exp %77 : vector<16x16xf32>
    %cst_30 = arith.constant dense<0.000000e+00> : vector<16xf32>
    %79 = vector.multi_reduction <add>, %78, %cst_30 [1] : vector<16x16xf32> to vector<16xf32>
    %80 = vector.shape_cast %79 : vector<16xf32> to vector<16x1xf32>
    %81 = tpu.reciprocal %80 : vector<16x1xf32> -> vector<16x1xf32>
    %82 = vector.broadcast %81 : vector<16x1xf32> to vector<16x16xf32>
    %83 = arith.mulf %78, %82 : vector<16x16xf32>
    %cst_31 = arith.constant dense<0.000000e+00> : vector<16x8xf32>
    %84 = tpu.matmul %83, %71, %cst_31 {dimension_numbers = #tpu.dot_dimension_numbers<[1], [0], [0], [1], [0, 0, 1, 1], [], []>} : vector<16x16xf32>, vector<16x8xf32>, vector<16x8xf32> -> vector<16x8xf32>
    %85 = vector.extract_strided_slice %12 {offsets = [24, 0], sizes = [8, 32], strides = [1, 1]} : vector<32x32xf32> to vector<8x32xf32>
    %cst_32 = arith.constant dense<0.000000e+00> : vector<16x32xf32>
    %86 = tpu.matmul %84, %85, %cst_32 {dimension_numbers = #tpu.dot_dimension_numbers<[1], [0], [0], [1], [0, 0, 1, 1], [], []>} : vector<16x8xf32>, vector<8x32xf32>, vector<16x32xf32> -> vector<16x32xf32>
    %87 = arith.addf %68, %86 : vector<16x32xf32>
    %88 = arith.addf %1, %87 : vector<16x32xf32>
    %89 = vector.extract_strided_slice %5 {offsets = [0, 0], sizes = [1, 32], strides = [1, 1]} : vector<7x32xf32> to vector<1x32xf32>
    %90 = vector.extract_strided_slice %5 {offsets = [1, 0], sizes = [1, 32], strides = [1, 1]} : vector<7x32xf32> to vector<1x32xf32>
    %cst_33 = arith.constant dense<0.000000e+00> : vector<16xf32>
    %91 = vector.multi_reduction <add>, %88, %cst_33 [1] : vector<16x32xf32> to vector<16xf32>
    %92 = vector.shape_cast %91 : vector<16xf32> to vector<16x1xf32>
    %cst_34 = arith.constant 3.200000e+01 : f32
    %93 = vector.broadcast %cst_34 : f32 to vector<16x1xf32>
    %94 = arith.divf %92, %93 : vector<16x1xf32>
    %95 = vector.broadcast %94 : vector<16x1xf32> to vector<16x32xf32>
    %96 = arith.subf %88, %95 : vector<16x32xf32>
    %97 = arith.mulf %96, %96 : vector<16x32xf32>
    %cst_35 = arith.constant dense<0.000000e+00> : vector<16xf32>
    %98 = vector.multi_reduction <add>, %97, %cst_35 [1] : vector<16x32xf32> to vector<16xf32>
    %99 = vector.shape_cast %98 : vector<16xf32> to vector<16x1xf32>
    %cst_36 = arith.constant 3.200000e+01 : f32
    %100 = vector.broadcast %cst_36 : f32 to vector<16x1xf32>
    %101 = arith.divf %99, %100 : vector<16x1xf32>
    %cst_37 = arith.constant 9.99999997E-7 : f32
    %102 = vector.broadcast %cst_37 : f32 to vector<16x1xf32>
    %103 = arith.addf %101, %102 : vector<16x1xf32>
    %104 = math.rsqrt %103 : vector<16x1xf32>
    %105 = vector.broadcast %104 : vector<16x1xf32> to vector<16x32xf32>
    %106 = arith.mulf %96, %105 : vector<16x32xf32>
    %107 = vector.broadcast %89 : vector<1x32xf32> to vector<16x32xf32>
    %108 = arith.mulf %106, %107 : vector<16x32xf32>
    %109 = vector.broadcast %90 : vector<1x32xf32> to vector<16x32xf32>
    %110 = arith.addf %108, %109 : vector<16x32xf32>
    %c1_38 = arith.constant 1 : index
    %c0_39 = arith.constant 0 : index
    %c0_40 = arith.constant 0 : index
    %111 = vector.load %arg4[%c1_38, %c0_39, %c0_40] : memref<3x32x32xf32, #tpu.memory_space<vmem>>, vector<1x32x32xf32>
    %112 = vector.shape_cast %111 : vector<1x32x32xf32> to vector<32x32xf32>
    %cst_41 = arith.constant dense<0.000000e+00> : vector<16x32xf32>
    %113 = tpu.matmul %110, %112, %cst_41 {dimension_numbers = #tpu.dot_dimension_numbers<[1], [0], [0], [1], [0, 0, 1, 1], [], []>} : vector<16x32xf32>, vector<32x32xf32>, vector<16x32xf32> -> vector<16x32xf32>
    %c0_42 = arith.constant 0 : index
    %c0_43 = arith.constant 0 : index
    %114 = vector.load %arg3[%c0_42, %c0_43] : memref<32x64xf32, #tpu.memory_space<vmem>>, vector<32x64xf32>
    %cst_44 = arith.constant dense<0.000000e+00> : vector<16x64xf32>
    %115 = tpu.matmul %3, %114, %cst_44 {dimension_numbers = #tpu.dot_dimension_numbers<[1], [0], [0], [1], [0, 0, 1, 1], [], []>} : vector<16x32xf32>, vector<32x64xf32>, vector<16x64xf32> -> vector<16x64xf32>
    %116 = vector.extract_strided_slice %115 {offsets = [0, 0], sizes = [16, 32], strides = [1, 1]} : vector<16x64xf32> to vector<16x32xf32>
    %117 = vector.extract_strided_slice %115 {offsets = [0, 32], sizes = [16, 32], strides = [1, 1]} : vector<16x64xf32> to vector<16x32xf32>
    %c2 = arith.constant 2 : index
    %c0_45 = arith.constant 0 : index
    %c0_46 = arith.constant 0 : index
    %118 = vector.load %arg4[%c2, %c0_45, %c0_46] : memref<3x32x32xf32, #tpu.memory_space<vmem>>, vector<1x32x32xf32>
    %119 = vector.shape_cast %118 : vector<1x32x32xf32> to vector<32x32xf32>
    %120 = vector.extract_strided_slice %113 {offsets = [0, 0], sizes = [16, 8], strides = [1, 1]} : vector<16x32xf32> to vector<16x8xf32>
    %121 = vector.extract_strided_slice %116 {offsets = [0, 0], sizes = [16, 8], strides = [1, 1]} : vector<16x32xf32> to vector<16x8xf32>
    %122 = vector.extract_strided_slice %117 {offsets = [0, 0], sizes = [16, 8], strides = [1, 1]} : vector<16x32xf32> to vector<16x8xf32>
    %cst_47 = arith.constant dense<0.000000e+00> : vector<16x16xf32>
    %123 = tpu.matmul %120, %121, %cst_47 {dimension_numbers = #tpu.dot_dimension_numbers<[1], [1], [0], [0], [0, 0, 1, 0], [], []>} : vector<16x8xf32>, vector<16x8xf32>, vector<16x16xf32> -> vector<16x16xf32>
    %124 = arith.addf %123, %4 : vector<16x16xf32>
    %cst_48 = arith.constant dense<0xFF800000> : vector<16xf32>
    %125 = vector.multi_reduction <maximumf>, %124, %cst_48 [1] : vector<16x16xf32> to vector<16xf32>
    %126 = vector.shape_cast %125 : vector<16xf32> to vector<16x1xf32>
    %127 = vector.broadcast %126 : vector<16x1xf32> to vector<16x16xf32>
    %128 = arith.subf %124, %127 : vector<16x16xf32>
    %129 = math.exp %128 : vector<16x16xf32>
    %cst_49 = arith.constant dense<0.000000e+00> : vector<16xf32>
    %130 = vector.multi_reduction <add>, %129, %cst_49 [1] : vector<16x16xf32> to vector<16xf32>
    %131 = vector.shape_cast %130 : vector<16xf32> to vector<16x1xf32>
    %132 = tpu.reciprocal %131 : vector<16x1xf32> -> vector<16x1xf32>
    %133 = vector.broadcast %132 : vector<16x1xf32> to vector<16x16xf32>
    %134 = arith.mulf %129, %133 : vector<16x16xf32>
    %cst_50 = arith.constant dense<0.000000e+00> : vector<16x8xf32>
    %135 = tpu.matmul %134, %122, %cst_50 {dimension_numbers = #tpu.dot_dimension_numbers<[1], [0], [0], [1], [0, 0, 1, 1], [], []>} : vector<16x16xf32>, vector<16x8xf32>, vector<16x8xf32> -> vector<16x8xf32>
    %136 = vector.extract_strided_slice %119 {offsets = [0, 0], sizes = [8, 32], strides = [1, 1]} : vector<32x32xf32> to vector<8x32xf32>
    %cst_51 = arith.constant dense<0.000000e+00> : vector<16x32xf32>
    %137 = tpu.matmul %135, %136, %cst_51 {dimension_numbers = #tpu.dot_dimension_numbers<[1], [0], [0], [1], [0, 0, 1, 1], [], []>} : vector<16x8xf32>, vector<8x32xf32>, vector<16x32xf32> -> vector<16x32xf32>
    %138 = vector.extract_strided_slice %113 {offsets = [0, 8], sizes = [16, 8], strides = [1, 1]} : vector<16x32xf32> to vector<16x8xf32>
    %139 = vector.extract_strided_slice %116 {offsets = [0, 8], sizes = [16, 8], strides = [1, 1]} : vector<16x32xf32> to vector<16x8xf32>
    %140 = vector.extract_strided_slice %117 {offsets = [0, 8], sizes = [16, 8], strides = [1, 1]} : vector<16x32xf32> to vector<16x8xf32>
    %cst_52 = arith.constant dense<0.000000e+00> : vector<16x16xf32>
    %141 = tpu.matmul %138, %139, %cst_52 {dimension_numbers = #tpu.dot_dimension_numbers<[1], [1], [0], [0], [0, 0, 1, 0], [], []>} : vector<16x8xf32>, vector<16x8xf32>, vector<16x16xf32> -> vector<16x16xf32>
    %142 = arith.addf %141, %4 : vector<16x16xf32>
    %cst_53 = arith.constant dense<0xFF800000> : vector<16xf32>
    %143 = vector.multi_reduction <maximumf>, %142, %cst_53 [1] : vector<16x16xf32> to vector<16xf32>
    %144 = vector.shape_cast %143 : vector<16xf32> to vector<16x1xf32>
    %145 = vector.broadcast %144 : vector<16x1xf32> to vector<16x16xf32>
    %146 = arith.subf %142, %145 : vector<16x16xf32>
    %147 = math.exp %146 : vector<16x16xf32>
    %cst_54 = arith.constant dense<0.000000e+00> : vector<16xf32>
    %148 = vector.multi_reduction <add>, %147, %cst_54 [1] : vector<16x16xf32> to vector<16xf32>
    %149 = vector.shape_cast %148 : vector<16xf32> to vector<16x1xf32>
    %150 = tpu.reciprocal %149 : vector<16x1xf32> -> vector<16x1xf32>
    %151 = vector.broadcast %150 : vector<16x1xf32> to vector<16x16xf32>
    %152 = arith.mulf %147, %151 : vector<16x16xf32>
    %cst_55 = arith.constant dense<0.000000e+00> : vector<16x8xf32>
    %153 = tpu.matmul %152, %140, %cst_55 {dimension_numbers = #tpu.dot_dimension_numbers<[1], [0], [0], [1], [0, 0, 1, 1], [], []>} : vector<16x16xf32>, vector<16x8xf32>, vector<16x8xf32> -> vector<16x8xf32>
    %154 = vector.extract_strided_slice %119 {offsets = [8, 0], sizes = [8, 32], strides = [1, 1]} : vector<32x32xf32> to vector<8x32xf32>
    %cst_56 = arith.constant dense<0.000000e+00> : vector<16x32xf32>
    %155 = tpu.matmul %153, %154, %cst_56 {dimension_numbers = #tpu.dot_dimension_numbers<[1], [0], [0], [1], [0, 0, 1, 1], [], []>} : vector<16x8xf32>, vector<8x32xf32>, vector<16x32xf32> -> vector<16x32xf32>
    %156 = arith.addf %137, %155 : vector<16x32xf32>
    %157 = vector.extract_strided_slice %113 {offsets = [0, 16], sizes = [16, 8], strides = [1, 1]} : vector<16x32xf32> to vector<16x8xf32>
    %158 = vector.extract_strided_slice %116 {offsets = [0, 16], sizes = [16, 8], strides = [1, 1]} : vector<16x32xf32> to vector<16x8xf32>
    %159 = vector.extract_strided_slice %117 {offsets = [0, 16], sizes = [16, 8], strides = [1, 1]} : vector<16x32xf32> to vector<16x8xf32>
    %cst_57 = arith.constant dense<0.000000e+00> : vector<16x16xf32>
    %160 = tpu.matmul %157, %158, %cst_57 {dimension_numbers = #tpu.dot_dimension_numbers<[1], [1], [0], [0], [0, 0, 1, 0], [], []>} : vector<16x8xf32>, vector<16x8xf32>, vector<16x16xf32> -> vector<16x16xf32>
    %161 = arith.addf %160, %4 : vector<16x16xf32>
    %cst_58 = arith.constant dense<0xFF800000> : vector<16xf32>
    %162 = vector.multi_reduction <maximumf>, %161, %cst_58 [1] : vector<16x16xf32> to vector<16xf32>
    %163 = vector.shape_cast %162 : vector<16xf32> to vector<16x1xf32>
    %164 = vector.broadcast %163 : vector<16x1xf32> to vector<16x16xf32>
    %165 = arith.subf %161, %164 : vector<16x16xf32>
    %166 = math.exp %165 : vector<16x16xf32>
    %cst_59 = arith.constant dense<0.000000e+00> : vector<16xf32>
    %167 = vector.multi_reduction <add>, %166, %cst_59 [1] : vector<16x16xf32> to vector<16xf32>
    %168 = vector.shape_cast %167 : vector<16xf32> to vector<16x1xf32>
    %169 = tpu.reciprocal %168 : vector<16x1xf32> -> vector<16x1xf32>
    %170 = vector.broadcast %169 : vector<16x1xf32> to vector<16x16xf32>
    %171 = arith.mulf %166, %170 : vector<16x16xf32>
    %cst_60 = arith.constant dense<0.000000e+00> : vector<16x8xf32>
    %172 = tpu.matmul %171, %159, %cst_60 {dimension_numbers = #tpu.dot_dimension_numbers<[1], [0], [0], [1], [0, 0, 1, 1], [], []>} : vector<16x16xf32>, vector<16x8xf32>, vector<16x8xf32> -> vector<16x8xf32>
    %173 = vector.extract_strided_slice %119 {offsets = [16, 0], sizes = [8, 32], strides = [1, 1]} : vector<32x32xf32> to vector<8x32xf32>
    %cst_61 = arith.constant dense<0.000000e+00> : vector<16x32xf32>
    %174 = tpu.matmul %172, %173, %cst_61 {dimension_numbers = #tpu.dot_dimension_numbers<[1], [0], [0], [1], [0, 0, 1, 1], [], []>} : vector<16x8xf32>, vector<8x32xf32>, vector<16x32xf32> -> vector<16x32xf32>
    %175 = arith.addf %156, %174 : vector<16x32xf32>
    %176 = vector.extract_strided_slice %113 {offsets = [0, 24], sizes = [16, 8], strides = [1, 1]} : vector<16x32xf32> to vector<16x8xf32>
    %177 = vector.extract_strided_slice %116 {offsets = [0, 24], sizes = [16, 8], strides = [1, 1]} : vector<16x32xf32> to vector<16x8xf32>
    %178 = vector.extract_strided_slice %117 {offsets = [0, 24], sizes = [16, 8], strides = [1, 1]} : vector<16x32xf32> to vector<16x8xf32>
    %cst_62 = arith.constant dense<0.000000e+00> : vector<16x16xf32>
    %179 = tpu.matmul %176, %177, %cst_62 {dimension_numbers = #tpu.dot_dimension_numbers<[1], [1], [0], [0], [0, 0, 1, 0], [], []>} : vector<16x8xf32>, vector<16x8xf32>, vector<16x16xf32> -> vector<16x16xf32>
    %180 = arith.addf %179, %4 : vector<16x16xf32>
    %cst_63 = arith.constant dense<0xFF800000> : vector<16xf32>
    %181 = vector.multi_reduction <maximumf>, %180, %cst_63 [1] : vector<16x16xf32> to vector<16xf32>
    %182 = vector.shape_cast %181 : vector<16xf32> to vector<16x1xf32>
    %183 = vector.broadcast %182 : vector<16x1xf32> to vector<16x16xf32>
    %184 = arith.subf %180, %183 : vector<16x16xf32>
    %185 = math.exp %184 : vector<16x16xf32>
    %cst_64 = arith.constant dense<0.000000e+00> : vector<16xf32>
    %186 = vector.multi_reduction <add>, %185, %cst_64 [1] : vector<16x16xf32> to vector<16xf32>
    %187 = vector.shape_cast %186 : vector<16xf32> to vector<16x1xf32>
    %188 = tpu.reciprocal %187 : vector<16x1xf32> -> vector<16x1xf32>
    %189 = vector.broadcast %188 : vector<16x1xf32> to vector<16x16xf32>
    %190 = arith.mulf %185, %189 : vector<16x16xf32>
    %cst_65 = arith.constant dense<0.000000e+00> : vector<16x8xf32>
    %191 = tpu.matmul %190, %178, %cst_65 {dimension_numbers = #tpu.dot_dimension_numbers<[1], [0], [0], [1], [0, 0, 1, 1], [], []>} : vector<16x16xf32>, vector<16x8xf32>, vector<16x8xf32> -> vector<16x8xf32>
    %192 = vector.extract_strided_slice %119 {offsets = [24, 0], sizes = [8, 32], strides = [1, 1]} : vector<32x32xf32> to vector<8x32xf32>
    %cst_66 = arith.constant dense<0.000000e+00> : vector<16x32xf32>
    %193 = tpu.matmul %191, %192, %cst_66 {dimension_numbers = #tpu.dot_dimension_numbers<[1], [0], [0], [1], [0, 0, 1, 1], [], []>} : vector<16x8xf32>, vector<8x32xf32>, vector<16x32xf32> -> vector<16x32xf32>
    %194 = arith.addf %175, %193 : vector<16x32xf32>
    %195 = arith.addf %110, %194 : vector<16x32xf32>
    %196 = vector.extract_strided_slice %5 {offsets = [2, 0], sizes = [1, 32], strides = [1, 1]} : vector<7x32xf32> to vector<1x32xf32>
    %197 = vector.extract_strided_slice %5 {offsets = [3, 0], sizes = [1, 32], strides = [1, 1]} : vector<7x32xf32> to vector<1x32xf32>
    %cst_67 = arith.constant dense<0.000000e+00> : vector<16xf32>
    %198 = vector.multi_reduction <add>, %195, %cst_67 [1] : vector<16x32xf32> to vector<16xf32>
    %199 = vector.shape_cast %198 : vector<16xf32> to vector<16x1xf32>
    %cst_68 = arith.constant 3.200000e+01 : f32
    %200 = vector.broadcast %cst_68 : f32 to vector<16x1xf32>
    %201 = arith.divf %199, %200 : vector<16x1xf32>
    %202 = vector.broadcast %201 : vector<16x1xf32> to vector<16x32xf32>
    %203 = arith.subf %195, %202 : vector<16x32xf32>
    %204 = arith.mulf %203, %203 : vector<16x32xf32>
    %cst_69 = arith.constant dense<0.000000e+00> : vector<16xf32>
    %205 = vector.multi_reduction <add>, %204, %cst_69 [1] : vector<16x32xf32> to vector<16xf32>
    %206 = vector.shape_cast %205 : vector<16xf32> to vector<16x1xf32>
    %cst_70 = arith.constant 3.200000e+01 : f32
    %207 = vector.broadcast %cst_70 : f32 to vector<16x1xf32>
    %208 = arith.divf %206, %207 : vector<16x1xf32>
    %cst_71 = arith.constant 9.99999997E-7 : f32
    %209 = vector.broadcast %cst_71 : f32 to vector<16x1xf32>
    %210 = arith.addf %208, %209 : vector<16x1xf32>
    %211 = math.rsqrt %210 : vector<16x1xf32>
    %212 = vector.broadcast %211 : vector<16x1xf32> to vector<16x32xf32>
    %213 = arith.mulf %203, %212 : vector<16x32xf32>
    %214 = vector.broadcast %196 : vector<1x32xf32> to vector<16x32xf32>
    %215 = arith.mulf %213, %214 : vector<16x32xf32>
    %216 = vector.broadcast %197 : vector<1x32xf32> to vector<16x32xf32>
    %217 = arith.addf %215, %216 : vector<16x32xf32>
    %c0_72 = arith.constant 0 : index
    %c0_73 = arith.constant 0 : index
    %218 = vector.load %arg5[%c0_72, %c0_73] : memref<32x64xf32, #tpu.memory_space<vmem>>, vector<32x64xf32>
    %cst_74 = arith.constant dense<0.000000e+00> : vector<16x64xf32>
    %219 = tpu.matmul %217, %218, %cst_74 {dimension_numbers = #tpu.dot_dimension_numbers<[1], [0], [0], [1], [0, 0, 1, 1], [], []>} : vector<16x32xf32>, vector<32x64xf32>, vector<16x64xf32> -> vector<16x64xf32>
    %c0_75 = arith.constant 0 : index
    %c0_76 = arith.constant 0 : index
    %220 = vector.load %arg7[%c0_75, %c0_76] : memref<1x64xf32, #tpu.memory_space<vmem>>, vector<1x64xf32>
    %221 = vector.broadcast %220 : vector<1x64xf32> to vector<16x64xf32>
    %222 = arith.addf %219, %221 : vector<16x64xf32>
    %cst_77 = arith.constant 0.000000e+00 : f32
    %223 = vector.broadcast %cst_77 : f32 to vector<16x64xf32>
    %224 = arith.maximumf %222, %223 : vector<16x64xf32>
    %c0_78 = arith.constant 0 : index
    %c0_79 = arith.constant 0 : index
    %225 = vector.load %arg6[%c0_78, %c0_79] : memref<64x32xf32, #tpu.memory_space<vmem>>, vector<64x32xf32>
    %cst_80 = arith.constant dense<0.000000e+00> : vector<16x32xf32>
    %226 = tpu.matmul %224, %225, %cst_80 {dimension_numbers = #tpu.dot_dimension_numbers<[1], [0], [0], [1], [0, 0, 1, 1], [], []>} : vector<16x64xf32>, vector<64x32xf32>, vector<16x32xf32> -> vector<16x32xf32>
    %227 = vector.extract_strided_slice %5 {offsets = [6, 0], sizes = [1, 32], strides = [1, 1]} : vector<7x32xf32> to vector<1x32xf32>
    %228 = vector.broadcast %227 : vector<1x32xf32> to vector<16x32xf32>
    %229 = arith.addf %226, %228 : vector<16x32xf32>
    %230 = arith.addf %217, %229 : vector<16x32xf32>
    %231 = vector.extract_strided_slice %5 {offsets = [4, 0], sizes = [1, 32], strides = [1, 1]} : vector<7x32xf32> to vector<1x32xf32>
    %232 = vector.extract_strided_slice %5 {offsets = [5, 0], sizes = [1, 32], strides = [1, 1]} : vector<7x32xf32> to vector<1x32xf32>
    %cst_81 = arith.constant dense<0.000000e+00> : vector<16xf32>
    %233 = vector.multi_reduction <add>, %230, %cst_81 [1] : vector<16x32xf32> to vector<16xf32>
    %234 = vector.shape_cast %233 : vector<16xf32> to vector<16x1xf32>
    %cst_82 = arith.constant 3.200000e+01 : f32
    %235 = vector.broadcast %cst_82 : f32 to vector<16x1xf32>
    %236 = arith.divf %234, %235 : vector<16x1xf32>
    %237 = vector.broadcast %236 : vector<16x1xf32> to vector<16x32xf32>
    %238 = arith.subf %230, %237 : vector<16x32xf32>
    %239 = arith.mulf %238, %238 : vector<16x32xf32>
    %cst_83 = arith.constant dense<0.000000e+00> : vector<16xf32>
    %240 = vector.multi_reduction <add>, %239, %cst_83 [1] : vector<16x32xf32> to vector<16xf32>
    %241 = vector.shape_cast %240 : vector<16xf32> to vector<16x1xf32>
    %cst_84 = arith.constant 3.200000e+01 : f32
    %242 = vector.broadcast %cst_84 : f32 to vector<16x1xf32>
    %243 = arith.divf %241, %242 : vector<16x1xf32>
    %cst_85 = arith.constant 9.99999997E-7 : f32
    %244 = vector.broadcast %cst_85 : f32 to vector<16x1xf32>
    %245 = arith.addf %243, %244 : vector<16x1xf32>
    %246 = math.rsqrt %245 : vector<16x1xf32>
    %247 = vector.broadcast %246 : vector<16x1xf32> to vector<16x32xf32>
    %248 = arith.mulf %238, %247 : vector<16x32xf32>
    %249 = vector.broadcast %231 : vector<1x32xf32> to vector<16x32xf32>
    %250 = arith.mulf %248, %249 : vector<16x32xf32>
    %251 = vector.broadcast %232 : vector<1x32xf32> to vector<16x32xf32>
    %252 = arith.addf %250, %251 : vector<16x32xf32>
    %c0_86 = arith.constant 0 : index
    %c0_87 = arith.constant 0 : index
    %253 = vector.load %arg9[%c0_86, %c0_87] : memref<16x32xf32, #tpu.memory_space<vmem>>, vector<16x32xf32>
    tpu.vector_store %arg9[%c0_86, %c0_87], %252 {strides = array<i32>} : memref<16x32xf32, #tpu.memory_space<vmem>>, vector<16x32xf32>,
    return
  }
}

</mosaic_0001>

<llo_original>
// kernel: tpu_custom_call.1
$region0: #{tpu_custom_call.1}
  #allocation0 [shape = 'u32[]', space=smem, size = 0x4, offset = 0x4, fixed_abs, tag = 'smem constant byte address 0x4 - core index']
  #allocation1 [shape = 'u32[144,128]{1,0:T(1,128)}', space=vmem, size = 0x12000, scoped, tag = 'internal scratch']
  %s0 = inlined_call_operand.hbm [shape: f32[2,16,32], index: 0, kind: input, shape index: {}]
  %s1 = inlined_call_operand.hbm [shape: f32[16,16], index: 1, kind: input, shape index: {}]
  %s2 = inlined_call_operand.hbm [shape: f32[32,96], index: 2, kind: input, shape index: {}]
  %s3 = inlined_call_operand.hbm [shape: f32[32,64], index: 3, kind: input, shape index: {}]
  %s4 = inlined_call_operand.vmem [shape: f32[3,32,32], index: 4, kind: input, shape index: {}]
  %s5 = inlined_call_operand.hbm [shape: f32[32,64], index: 5, kind: input, shape index: {}]
  %s6 = inlined_call_operand.vmem [shape: f32[64,32], index: 6, kind: input, shape index: {}]
  %s7 = inlined_call_operand.vmem [shape: f32[1,64], index: 7, kind: input, shape index: {}]
  %s8 = inlined_call_operand.vmem [shape: f32[7,32], index: 8, kind: input, shape index: {}]
  %s9 = inlined_call_operand.hbm [shape: f32[16,32], index: 9, kind: output, shape index: {}]
  %s10 = sld [smem:[#allocation0]]
  $region66: #{tpu_custom_call.1} parent=0
    _
  %s12 = ssub.s32 1, %s10
  %s13 = scalar_select 0, %s12, %s10
  $region1: #{tpu_custom_call.1} parent=0
    #allocation2 [shape = 'u8[16384]{0}', space=vmem, size = 0x4000, scoped, tag = 'input window, operand 0, single buffered']
    #allocation3 [shape = 's32[1]{0}', space=sflag, size = 0x4, scoped, tag = 'scoped memory for tpu_custom_call.1']
    #allocation4 [shape = 's32[1]{0}', space=sflag, size = 0x4, scoped, tag = 'scoped memory for tpu_custom_call.1']
    #allocation5 [shape = 'u8[8192]{0}', space=vmem, size = 0x2000, scoped, tag = 'input window, operand 1, single buffered']
    #allocation6 [shape = 's32[1]{0}', space=sflag, size = 0x4, scoped, tag = 'scoped memory for tpu_custom_call.1']
    #allocation7 [shape = 'u8[16384]{0}', space=vmem, size = 0x4000, scoped, tag = 'input window, operand 2, single buffered']
    #allocation8 [shape = 'u8[16384]{0}', space=vmem, size = 0x4000, scoped, tag = 'input window, operand 3, single buffered']
    #allocation9 [shape = 's32[1]{0}', space=sflag, size = 0x4, scoped, tag = 'scoped memory for tpu_custom_call.1']
    #allocation10 [shape = 'u8[16384]{0}', space=vmem, size = 0x4000, scoped, tag = 'input window, operand 5, single buffered']
    #allocation11 [shape = 'u8[8192]{0}', space=vmem, size = 0x2000, scoped, tag = 'output window, operand 0, single buffered']
    %14 = vsyncpa [#allocation3], 0
    %15 = vsyncpa [#allocation6], 0
    %16 = vsyncpa [#allocation9], 0
    %17 = vsyncpa [#allocation4], 0
    // Predicated region
    $region2: #{tpu_custom_call.1} parent=1 // pred_check
      _
    $region3: #{tpu_custom_call.1} parent=1 // pred_check_branch
      %19 = sbr.rel (0) target = $region5
    $region4: #{tpu_custom_call.1} parent=1 // pred_region
      %s21 = ssub.s32 512, 512
      %22 = vsyncadd [#allocation3], %s21
      %s23 = sshll.u32 [#allocation2], 4
      %s24 = int_to_ptr.vmem [resolvable:$true] %s23
      %29 = dma.hbm_to_vmem [thread:$0]  %s0, 512, %s24, [#allocation3], 128, 128, 8
    $region5: #{tpu_custom_call.1} parent=1 // pred_fallthru
      _
    // Predicated region
    $region6: #{tpu_custom_call.1} parent=1 // pred_check
      _
    $region7: #{tpu_custom_call.1} parent=1 // pred_check_branch
      %31 = sbr.rel (0) target = $region9
    $region8: #{tpu_custom_call.1} parent=1 // pred_region
      %s33 = ssub.s32 256, 256
      %34 = vsyncadd [#allocation6], %s33
      %s35 = sshll.u32 [#allocation5], 4
      %s36 = int_to_ptr.vmem [resolvable:$true] %s35
      %41 = dma.hbm_to_vmem [thread:$0]  %s1, 256, %s36, [#allocation6], 128, 128, 8
    $region9: #{tpu_custom_call.1} parent=1 // pred_fallthru
      _
    // Predicated region
    $region10: #{tpu_custom_call.1} parent=1 // pred_check
      _
    $region11: #{tpu_custom_call.1} parent=1 // pred_check_branch
      %43 = sbr.rel (0) target = $region13
    $region12: #{tpu_custom_call.1} parent=1 // pred_region
      %s45 = ssub.s32 512, 512
      %46 = vsyncadd [#allocation6], %s45
      %s47 = sshll.u32 [#allocation7], 4
      %s48 = int_to_ptr.vmem [resolvable:$true] %s47
      %53 = dma.hbm_to_vmem [thread:$0]  %s2, 512, %s48, [#allocation6], 128, 128, 8
    $region13: #{tpu_custom_call.1} parent=1 // pred_fallthru
      _
    // Predicated region
    $region14: #{tpu_custom_call.1} parent=1 // pred_check
      _
    $region15: #{tpu_custom_call.1} parent=1 // pred_check_branch
      %55 = sbr.rel (0) target = $region17
    $region16: #{tpu_custom_call.1} parent=1 // pred_region
      %s57 = ssub.s32 512, 512
      %58 = vsyncadd [#allocation9], %s57
      %s59 = sshll.u32 [#allocation8], 4
      %s60 = int_to_ptr.vmem [resolvable:$true] %s59
      %65 = dma.hbm_to_vmem [thread:$0]  %s3, 512, %s60, [#allocation9], 128, 128, 8
    $region17: #{tpu_custom_call.1} parent=1 // pred_fallthru
      _
    // Predicated region
    $region18: #{tpu_custom_call.1} parent=1 // pred_check
      _
    $region19: #{tpu_custom_call.1} parent=1 // pred_check_branch
      %67 = sbr.rel (0) target = $region21
    $region20: #{tpu_custom_call.1} parent=1 // pred_region
      _
    $region21: #{tpu_custom_call.1} parent=1 // pred_fallthru
      _
    // Predicated region
    $region22: #{tpu_custom_call.1} parent=1 // pred_check
      _
    $region23: #{tpu_custom_call.1} parent=1 // pred_check_branch
      %69 = sbr.rel (0) target = $region25
    $region24: #{tpu_custom_call.1} parent=1 // pred_region
      %s71 = ssub.s32 512, 512
      %72 = vsyncadd [#allocation9], %s71
      %s73 = sshll.u32 [#allocation10], 4
      %s74 = int_to_ptr.vmem [resolvable:$true] %s73
      %79 = dma.hbm_to_vmem [thread:$0]  %s5, 512, %s74, [#allocation9], 128, 128, 8
    $region25: #{tpu_custom_call.1} parent=1 // pred_fallthru
      _
    // Predicated region
    $region26: #{tpu_custom_call.1} parent=1 // pred_check
      _
    $region27: #{tpu_custom_call.1} parent=1 // pred_check_branch
      %81 = sbr.rel (0) target = $region29
    $region28: #{tpu_custom_call.1} parent=1 // pred_region
      _
    $region29: #{tpu_custom_call.1} parent=1 // pred_fallthru
      _
    // Predicated region
    $region30: #{tpu_custom_call.1} parent=1 // pred_check
      _
    $region31: #{tpu_custom_call.1} parent=1 // pred_check_branch
      %83 = sbr.rel (0) target = $region33
    $region32: #{tpu_custom_call.1} parent=1 // pred_region
      _
    $region33: #{tpu_custom_call.1} parent=1 // pred_fallthru
      _
    // Predicated region
    $region34: #{tpu_custom_call.1} parent=1 // pred_check
      _
    $region35: #{tpu_custom_call.1} parent=1 // pred_check_branch
      %85 = sbr.rel (0) target = $region37
    $region36: #{tpu_custom_call.1} parent=1 // pred_region
      _
    $region37: #{tpu_custom_call.1} parent=1 // pred_fallthru
      _
    // Predicated region
    $region38: #{tpu_custom_call.1} parent=1 // pred_check
      _
    $region39: #{tpu_custom_call.1} parent=1 // pred_check_branch
      %87 = sbr.rel (0) target = $region41
    $region40: #{tpu_custom_call.1} parent=1 // pred_region
      %88 = dma.done [#allocation3], 512
    $region41: #{tpu_custom_call.1} parent=1 // pred_fallthru
      _
    // Predicated region
    $region42: #{tpu_custom_call.1} parent=1 // pred_check
      _
    $region43: #{tpu_custom_call.1} parent=1 // pred_check_branch
      %90 = sbr.rel (0) target = $region45
    $region44: #{tpu_custom_call.1} parent=1 // pred_region
      %91 = dma.done [#allocation6], 256
    $region45: #{tpu_custom_call.1} parent=1 // pred_fallthru
      _
    // Predicated region
    $region46: #{tpu_custom_call.1} parent=1 // pred_check
      _
    $region47: #{tpu_custom_call.1} parent=1 // pred_check_branch
      %93 = sbr.rel (0) target = $region49
    $region48: #{tpu_custom_call.1} parent=1 // pred_region
      %94 = dma.done [#allocation6], 512
    $region49: #{tpu_custom_call.1} parent=1 // pred_fallthru
      _
    // Predicated region
    $region50: #{tpu_custom_call.1} parent=1 // pred_check
      _
    $region51: #{tpu_custom_call.1} parent=1 // pred_check_branch
      %96 = sbr.rel (0) target = $region53
    $region52: #{tpu_custom_call.1} parent=1 // pred_region
      %97 = dma.done [#allocation9], 512
    $region53: #{tpu_custom_call.1} parent=1 // pred_fallthru
      _
    // Predicated region
    $region54: #{tpu_custom_call.1} parent=1 // pred_check
      _
    $region55: #{tpu_custom_call.1} parent=1 // pred_check_branch
      %99 = sbr.rel (0) target = $region57
    $region56: #{tpu_custom_call.1} parent=1 // pred_region
      %100 = dma.done [#allocation9], 512
    $region57: #{tpu_custom_call.1} parent=1 // pred_fallthru
      _
    %v101 = vld [vmem:[#allocation2] sm:$0xff]
    %v102 = vld [vmem:[#allocation2 + $0x8] sm:$0xff]
    %s103 = scalar_lea.vmem [#allocation2], 16
    %v104 = vld [vmem:[%s103] sm:$0xff]
    %v105 = vld [vmem:[%s103 + $0x8] sm:$0xff]
    %v106 = vld [vmem:[#allocation5] sm:$0xff]
    %v107 = vld [vmem:[#allocation5 + $0x8] sm:$0xff]
    %v108 = vld [vmem:[%s8] sm:$0x7f]
    %v109 = vld [vmem:[#allocation7] sm:$0xff]
    %v110 = vld [vmem:[#allocation7 + $0x8] sm:$0xff]
    %v111 = vld [vmem:[#allocation7 + $0x10] sm:$0xff]
    %v112 = vld [vmem:[#allocation7 + $0x18] sm:$0xff]
    %vm113 = vcmask 261120
    %v115 = vsel %vm113, %v101, 0
    %v118 = vsel %vm113, %v102, 0
    %120 = vmatprep.subr.mxu0 0.0
    %121 = vmatpush1.msra.mxu0 %v109
    %122 = vmatprep.subr.mxu0 0.0
    %123 = vmatpush1.msra.mxu0 %v110
    %124 = vmatprep.subr.mxu0 0.0
    %125 = vmatpush1.msra.mxu0 %v111
    %126 = vmatprep.subr.mxu0 0.0
    %127 = vmatpush1.msra.mxu0 %v112
    %128 = vmatprep.subr.mxu0 0.0
    %129 = vmatpush1.msra.mxu0 0.0
    %130 = vmatprep.subr.mxu0 0.0
    %131 = vmatpush1.msra.mxu0 0.0
    %132 = vmatprep.subr.mxu0 0.0
    %133 = vmatpush1.msra.mxu0 0.0
    %134 = vmatprep.subr.mxu0 0.0
    %135 = vmatpush1.msra.mxu0 0.0
    %136 = vmatprep.subr.mxu0 0.0
    %137 = vmatpush1.msra.mxu0 0.0
    %138 = vmatprep.subr.mxu0 0.0
    %139 = vmatpush1.msra.mxu0 0.0
    %140 = vmatprep.subr.mxu0 0.0
    %141 = vmatpush1.msra.mxu0 0.0
    %142 = vmatprep.subr.mxu0 0.0
    %143 = vmatpush1.msra.mxu0 0.0
    %144 = vmatprep.subr.mxu0 0.0
    %145 = vmatpush1.msra.mxu0 0.0
    %146 = vmatprep.subr.mxu0 0.0
    %147 = vmatpush1.msra.mxu0 0.0
    %148 = vmatprep.subr.mxu0 0.0
    %149 = vmatpush1.msra.mxu0 0.0
    %150 = vmatprep.subr.mxu0 0.0
    %151 = vmatpush1.msra.mxu0 0.0
    %152 = vmatprep.subr.mxu0 0.0
    %153 = vmatpush1.msra.mxu0 0.0
    %154 = vmatprep.subr.mxu0 0.0
    %155 = vmatpush1.msra.mxu0 0.0
    %156 = vmatprep.subr.mxu0 0.0
    %157 = vmatpush1.msra.mxu0 0.0
    %158 = vmatprep.subr.mxu0 0.0
    %159 = vmatpush1.msra.mxu0 0.0
    %160 = vmatprep.subr.mxu0 0.0
    %161 = vmatpush1.msra.mxu0 0.0
    %162 = vmatprep.subr.mxu0 0.0
    %163 = vmatpush1.msra.mxu0 0.0
    %164 = vmatprep.subr.mxu0 0.0
    %165 = vmatpush1.msra.mxu0 0.0
    %166 = vmatprep.subr.mxu0 0.0
    %167 = vmatpush1.msra.mxu0 0.0
    %168 = vmatprep.subr.mxu0 0.0
    %169 = vmatpush1.msra.mxu0 0.0
    %170 = vmatprep.subr.mxu0 0.0
    %171 = vmatpush1.msra.mxu0 0.0
    %172 = vmatprep.subr.mxu0 0.0
    %173 = vmatpush1.msra.mxu0 0.0
    %174 = vmatprep.subr.mxu0 0.0
    %175 = vmatpush1.msra.mxu0 0.0
    %176 = vmatprep.subr.mxu0 0.0
    %177 = vmatpush1.msra.mxu0 0.0
    %178 = vmatprep.subr.mxu0 0.0
    %179 = vmatpush1.msra.mxu0 0.0
    %180 = vmatprep.subr.mxu0 0.0
    %181 = vmatpush1.msra.mxu0 0.0
    %182 = vmatprep.subr.mxu0 0.0
    %183 = vmatpush1.msra.mxu0 0.0
    %184 = vmatprep.mubr.f32.mxu0 0.0
    %185 = vmatmul.mubr.f32.gmra.mrb[0].mxu0 %v115
    %v186 = vpop.f32.mrb[0].mxu0
    %v187 = vadd.f32 0.0, %v186
    %v188 = vpop.f32.mrb[0].mxu0
    %189 = vmatprep.mubr.f32.mxu0 0.0
    %190 = vmatmul.mubr.f32.gmra.mrb[0].mxu0 %v118
    %v191 = vpop.f32.mrb[0].mxu0
    %v192 = vadd.f32 0.0, %v191
    %v193 = vpop.f32.mrb[0].mxu0
    %194 = vdwg.mxu0
    %v195 = vld [vmem:[%s4] sm:$0xff]
    %v196 = vld [vmem:[%s4 + $0x8] sm:$0xff]
    %v197 = vld [vmem:[%s4 + $0x10] sm:$0xff]
    %v198 = vld [vmem:[%s4 + $0x18] sm:$0xff]
    %201 = vrot.lane.b32.xlu0 %v187, 96
    %v202 = vpop.permute.xlu0 %201
    %203 = vrot.lane.b32.xlu0 %v192, 96
    %v204 = vpop.permute.xlu0 %203
    %vm205 = vcmask 64512
    %v206 = vsel %vm205, %v187, 0
    %v208 = vsel %vm205, %v192, 0
    %v210 = vsel %vm205, %v202, 0
    %v212 = vsel %vm205, %v204, 0
    %214 = vmatprep.subr.mxu0 0.0
    %215 = vmatpush1.xpose.msra.mxu0 %v210
    %216 = vmatprep.subr.mxu0 0.0
    %217 = vmatpush1.xpose.msra.mxu0 %v212
    %218 = vmatprep.subr.mxu0 0.0
    %219 = vmatpush1.xpose.msra.mxu0 0.0
    %220 = vmatprep.subr.mxu0 0.0
    %221 = vmatpush1.xpose.msra.mxu0 0.0
    %222 = vmatprep.subr.mxu0 0.0
    %223 = vmatpush1.xpose.msra.mxu0 0.0
    %224 = vmatprep.subr.mxu0 0.0
    %225 = vmatpush1.xpose.msra.mxu0 0.0
    %226 = vmatprep.subr.mxu0 0.0
    %227 = vmatpush1.xpose.msra.mxu0 0.0
    %228 = vmatprep.subr.mxu0 0.0
    %229 = vmatpush1.xpose.msra.mxu0 0.0
    %230 = vmatprep.subr.mxu0 0.0
    %231 = vmatpush1.xpose.msra.mxu0 0.0
    %232 = vmatprep.subr.mxu0 0.0
    %233 = vmatpush1.xpose.msra.mxu0 0.0
    %234 = vmatprep.subr.mxu0 0.0
    %235 = vmatpush1.xpose.msra.mxu0 0.0
    %236 = vmatprep.subr.mxu0 0.0
    %237 = vmatpush1.xpose.msra.mxu0 0.0
    %238 = vmatprep.subr.mxu0 0.0
    %239 = vmatpush1.xpose.msra.mxu0 0.0
    %240 = vmatprep.subr.mxu0 0.0
    %241 = vmatpush1.xpose.msra.mxu0 0.0
    %242 = vmatprep.subr.mxu0 0.0
    %243 = vmatpush1.xpose.msra.mxu0 0.0
    %244 = vmatprep.subr.mxu0 0.0
    %245 = vmatpush1.xpose.msra.mxu0 0.0
    %246 = vmatprep.subr.mxu0 0.0
    %247 = vmatpush1.xpose.msra.mxu0 0.0
    %248 = vmatprep.subr.mxu0 0.0
    %249 = vmatpush1.xpose.msra.mxu0 0.0
    %250 = vmatprep.subr.mxu0 0.0
    %251 = vmatpush1.xpose.msra.mxu0 0.0
    %252 = vmatprep.subr.mxu0 0.0
    %253 = vmatpush1.xpose.msra.mxu0 0.0
    %254 = vmatprep.subr.mxu0 0.0
    %255 = vmatpush1.xpose.msra.mxu0 0.0
    %256 = vmatprep.subr.mxu0 0.0
    %257 = vmatpush1.xpose.msra.mxu0 0.0
    %258 = vmatprep.subr.mxu0 0.0
    %259 = vmatpush1.xpose.msra.mxu0 0.0
    %260 = vmatprep.subr.mxu0 0.0
    %261 = vmatpush1.xpose.msra.mxu0 0.0
    %262 = vmatprep.subr.mxu0 0.0
    %263 = vmatpush1.xpose.msra.mxu0 0.0
    %264 = vmatprep.subr.mxu0 0.0
    %265 = vmatpush1.xpose.msra.mxu0 0.0
    %266 = vmatprep.subr.mxu0 0.0
    %267 = vmatpush1.xpose.msra.mxu0 0.0
    %268 = vmatprep.subr.mxu0 0.0
    %269 = vmatpush1.xpose.msra.mxu0 0.0
    %270 = vmatprep.subr.mxu0 0.0
    %271 = vmatpush1.xpose.msra.mxu0 0.0
    %272 = vmatprep.subr.mxu0 0.0
    %273 = vmatpush1.xpose.msra.mxu0 0.0
    %274 = vmatprep.subr.mxu0 0.0
    %275 = vmatpush1.xpose.msra.mxu0 0.0
    %276 = vmatprep.subr.mxu0 0.0
    %277 = vmatpush1.xpose.msra.mxu0 0.0
    %278 = vmatprep.mubr.f32.mxu0 0.0
    %279 = vmatmul.mubr.f32.gmra.mrb[0].mxu0 %v206
    %v280 = vpop.f32.mrb[0].mxu0
    %v281 = vadd.f32 %v106, %v280
    %v282 = vpop.f32.mrb[0].mxu0
    %283 = vmatprep.mubr.f32.mxu0 0.0
    %284 = vmatmul.mubr.f32.gmra.mrb[0].mxu0 %v208
    %v285 = vpop.f32.mrb[0].mxu0
    %v286 = vadd.f32 %v107, %v285
    %v287 = vpop.f32.mrb[0].mxu0
    %288 = vdwg.mxu0
    %vm289 = vcmask 130048
    %v290 = vsel %vm289, %v281, -inf
    %291 = vmax.xlane.f32.xlu0 %v290
    %v292 = vpop.xlane.xlu0 %291
    %v293 = vsel %vm289, %v286, -inf
    %294 = vmax.xlane.f32.xlu0 %v293
    %v295 = vpop.xlane.xlu0 %294
    %v296 = vsub.f32 %v281, %v292
    %v297 = vsub.f32 %v286, %v295
    %v298 = vmul.f32 %v296, 1.442695
    %v299 = vpow.pop %v298
    %v300 = vmul.f32 %v297, 1.442695
    %v301 = vpow.pop %v300
    %v302 = vsel %vm289, %v299, 0.0
    %303 = vadd.xlane.f32.xlu0 %v302
    %v304 = vpop.xlane.xlu0 %303
    %v305 = vsel %vm289, %v301, 0.0
    %306 = vadd.xlane.f32.xlu0 %v305
    %v307 = vpop.xlane.xlu0 %306
    %v308 = vrcp.pop %v304
    %v309 = vrcp.pop %v307
    %v310 = vmul.f32 %v299, %v308
    %v311 = vmul.f32 %v301, %v309
    %312 = vrot.lane.b32.xlu0 %v187, 64
    %v313 = vpop.permute.xlu0 %312
    %314 = vrot.lane.b32.xlu0 %v192, 64
    %v315 = vpop.permute.xlu0 %314
    %v319 = vsel %vm289, %v310, 0
    %v322 = vsel %vm289, %v311, 0
    %324 = vmatprep.subr.mxu0 0.0
    %325 = vmatpush1.msra.mxu0 %v313
    %326 = vmatprep.subr.mxu0 0.0
    %327 = vmatpush1.msra.mxu0 %v315
    %328 = vmatprep.subr.mxu0 0.0
    %329 = vmatpush1.msra.mxu0 0.0
    %330 = vmatprep.subr.mxu0 0.0
    %331 = vmatpush1.msra.mxu0 0.0
    %332 = vmatprep.subr.mxu0 0.0
    %333 = vmatpush1.msra.mxu0 0.0
    %334 = vmatprep.subr.mxu0 0.0
    %335 = vmatpush1.msra.mxu0 0.0
    %336 = vmatprep.subr.mxu0 0.0
    %337 = vmatpush1.msra.mxu0 0.0
    %338 = vmatprep.subr.mxu0 0.0
    %339 = vmatpush1.msra.mxu0 0.0
    %340 = vmatprep.subr.mxu0 0.0
    %341 = vmatpush1.msra.mxu0 0.0
    %342 = vmatprep.subr.mxu0 0.0
    %343 = vmatpush1.msra.mxu0 0.0
    %344 = vmatprep.subr.mxu0 0.0
    %345 = vmatpush1.msra.mxu0 0.0
    %346 = vmatprep.subr.mxu0 0.0
    %347 = vmatpush1.msra.mxu0 0.0
    %348 = vmatprep.subr.mxu0 0.0
    %349 = vmatpush1.msra.mxu0 0.0
    %350 = vmatprep.subr.mxu0 0.0
    %351 = vmatpush1.msra.mxu0 0.0
    %352 = vmatprep.subr.mxu0 0.0
    %353 = vmatpush1.msra.mxu0 0.0
    %354 = vmatprep.subr.mxu0 0.0
    %355 = vmatpush1.msra.mxu0 0.0
    %356 = vmatprep.subr.mxu0 0.0
    %357 = vmatpush1.msra.mxu0 0.0
    %358 = vmatprep.subr.mxu0 0.0
    %359 = vmatpush1.msra.mxu0 0.0
    %360 = vmatprep.subr.mxu0 0.0
    %361 = vmatpush1.msra.mxu0 0.0
    %362 = vmatprep.subr.mxu0 0.0
    %363 = vmatpush1.msra.mxu0 0.0
    %364 = vmatprep.subr.mxu0 0.0
    %365 = vmatpush1.msra.mxu0 0.0
    %366 = vmatprep.subr.mxu0 0.0
    %367 = vmatpush1.msra.mxu0 0.0
    %368 = vmatprep.subr.mxu0 0.0
    %369 = vmatpush1.msra.mxu0 0.0
    %370 = vmatprep.subr.mxu0 0.0
    %371 = vmatpush1.msra.mxu0 0.0
    %372 = vmatprep.subr.mxu0 0.0
    %373 = vmatpush1.msra.mxu0 0.0
    %374 = vmatprep.subr.mxu0 0.0
    %375 = vmatpush1.msra.mxu0 0.0
    %376 = vmatprep.subr.mxu0 0.0
    %377 = vmatpush1.msra.mxu0 0.0
    %378 = vmatprep.subr.mxu0 0.0
    %379 = vmatpush1.msra.mxu0 0.0
    %380 = vmatprep.subr.mxu0 0.0
    %381 = vmatpush1.msra.mxu0 0.0
    %382 = vmatprep.subr.mxu0 0.0
    %383 = vmatpush1.msra.mxu0 0.0
    %384 = vmatprep.subr.mxu0 0.0
    %385 = vmatpush1.msra.mxu0 0.0
    %386 = vmatprep.subr.mxu0 0.0
    %387 = vmatpush1.msra.mxu0 0.0
    %388 = vmatprep.mubr.f32.mxu0 0.0
    %389 = vmatmul.mubr.f32.gmra.mrb[0].mxu0 %v319
    %v390 = vpop.f32.mrb[0].mxu0
    %v391 = vadd.f32 0.0, %v390
    %v392 = vpop.f32.mrb[0].mxu0
    %393 = vmatprep.mubr.f32.mxu0 0.0
    %394 = vmatmul.mubr.f32.gmra.mrb[0].mxu0 %v322
    %v395 = vpop.f32.mrb[0].mxu0
    %v396 = vadd.f32 0.0, %v395
    %v397 = vpop.f32.mrb[0].mxu0
    %398 = vdwg.mxu0
    %399 = vrot.lane.b32.xlu0 %v187, 120
    %v400 = vpop.permute.xlu0 %399
    %401 = vrot.lane.b32.xlu0 %v192, 120
    %v402 = vpop.permute.xlu0 %401
    %403 = vrot.lane.b32.xlu0 %v187, 88
    %v404 = vpop.permute.xlu0 %403
    %405 = vrot.lane.b32.xlu0 %v192, 88
    %v406 = vpop.permute.xlu0 %405
    %v407 = vsel %vm205, %v400, 0
    %v409 = vsel %vm205, %v402, 0
    %v411 = vsel %vm205, %v404, 0
    %v413 = vsel %vm205, %v406, 0
    %415 = vmatprep.subr.mxu0 0.0
    %416 = vmatpush1.xpose.msra.mxu0 %v411
    %417 = vmatprep.subr.mxu0 0.0
    %418 = vmatpush1.xpose.msra.mxu0 %v413
    %419 = vmatprep.subr.mxu0 0.0
    %420 = vmatpush1.xpose.msra.mxu0 0.0
    %421 = vmatprep.subr.mxu0 0.0
    %422 = vmatpush1.xpose.msra.mxu0 0.0
    %423 = vmatprep.subr.mxu0 0.0
    %424 = vmatpush1.xpose.msra.mxu0 0.0
    %425 = vmatprep.subr.mxu0 0.0
    %426 = vmatpush1.xpose.msra.mxu0 0.0
    %427 = vmatprep.subr.mxu0 0.0
    %428 = vmatpush1.xpose.msra.mxu0 0.0
    %429 = vmatprep.subr.mxu0 0.0
    %430 = vmatpush1.xpose.msra.mxu0 0.0
    %431 = vmatprep.subr.mxu0 0.0
    %432 = vmatpush1.xpose.msra.mxu0 0.0
    %433 = vmatprep.subr.mxu0 0.0
    %434 = vmatpush1.xpose.msra.mxu0 0.0
    %435 = vmatprep.subr.mxu0 0.0
    %436 = vmatpush1.xpose.msra.mxu0 0.0
    %437 = vmatprep.subr.mxu0 0.0
    %438 = vmatpush1.xpose.msra.mxu0 0.0
    %439 = vmatprep.subr.mxu0 0.0
    %440 = vmatpush1.xpose.msra.mxu0 0.0
    %441 = vmatprep.subr.mxu0 0.0
    %442 = vmatpush1.xpose.msra.mxu0 0.0
    %443 = vmatprep.subr.mxu0 0.0
    %444 = vmatpush1.xpose.msra.mxu0 0.0
    %445 = vmatprep.subr.mxu0 0.0
    %446 = vmatpush1.xpose.msra.mxu0 0.0
    %447 = vmatprep.subr.mxu0 0.0
    %448 = vmatpush1.xpose.msra.mxu0 0.0
    %449 = vmatprep.subr.mxu0 0.0
    %450 = vmatpush1.xpose.msra.mxu0 0.0
    %451 = vmatprep.subr.mxu0 0.0
    %452 = vmatpush1.xpose.msra.mxu0 0.0
    %453 = vmatprep.subr.mxu0 0.0
    %454 = vmatpush1.xpose.msra.mxu0 0.0
    %455 = vmatprep.subr.mxu0 0.0
    %456 = vmatpush1.xpose.msra.mxu0 0.0
    %457 = vmatprep.subr.mxu0 0.0
    %458 = vmatpush1.xpose.msra.mxu0 0.0
    %459 = vmatprep.subr.mxu0 0.0
    %460 = vmatpush1.xpose.msra.mxu0 0.0
    %461 = vmatprep.subr.mxu0 0.0
    %462 = vmatpush1.xpose.msra.mxu0 0.0
    %463 = vmatprep.subr.mxu0 0.0
    %464 = vmatpush1.xpose.msra.mxu0 0.0
    %465 = vmatprep.subr.mxu0 0.0
    %466 = vmatpush1.xpose.msra.mxu0 0.0
    %467 = vmatprep.subr.mxu0 0.0
    %468 = vmatpush1.xpose.msra.mxu0 0.0
    %469 = vmatprep.subr.mxu0 0.0
    %470 = vmatpush1.xpose.msra.mxu0 0.0
    %471 = vmatprep.subr.mxu0 0.0
    %472 = vmatpush1.xpose.msra.mxu0 0.0
    %473 = vmatprep.subr.mxu0 0.0
    %474 = vmatpush1.xpose.msra.mxu0 0.0
    %475 = vmatprep.subr.mxu0 0.0
    %476 = vmatpush1.xpose.msra.mxu0 0.0
    %477 = vmatprep.subr.mxu0 0.0
    %478 = vmatpush1.xpose.msra.mxu0 0.0
    %479 = vmatprep.mubr.f32.mxu0 0.0
    %480 = vmatmul.mubr.f32.gmra.mrb[0].mxu0 %v407
    %v481 = vpop.f32.mrb[0].mxu0
    %v482 = vadd.f32 %v106, %v481
    %v483 = vpop.f32.mrb[0].mxu0
    %484 = vmatprep.mubr.f32.mxu0 0.0
    %485 = vmatmul.mubr.f32.gmra.mrb[0].mxu0 %v409
    %v486 = vpop.f32.mrb[0].mxu0
    %v487 = vadd.f32 %v107, %v486
    %v488 = vpop.f32.mrb[0].mxu0
    %489 = vdwg.mxu0
    %v490 = vsel %vm289, %v482, -inf
    %491 = vmax.xlane.f32.xlu0 %v490
    %v492 = vpop.xlane.xlu0 %491
    %v493 = vsel %vm289, %v487, -inf
    %494 = vmax.xlane.f32.xlu0 %v493
    %v495 = vpop.xlane.xlu0 %494
    %v496 = vsub.f32 %v482, %v492
    %v497 = vsub.f32 %v487, %v495
    %v498 = vmul.f32 %v496, 1.442695
    %v499 = vpow.pop %v498
    %v500 = vmul.f32 %v497, 1.442695
    %v501 = vpow.pop %v500
    %v502 = vsel %vm289, %v499, 0.0
    %503 = vadd.xlane.f32.xlu0 %v502
    %v504 = vpop.xlane.xlu0 %503
    %v505 = vsel %vm289, %v501, 0.0
    %506 = vadd.xlane.f32.xlu0 %v505
    %v507 = vpop.xlane.xlu0 %506
    %v508 = vrcp.pop %v504
    %v509 = vrcp.pop %v507
    %v510 = vmul.f32 %v499, %v508
    %v511 = vmul.f32 %v501, %v509
    %512 = vrot.lane.b32.xlu0 %v187, 56
    %v513 = vpop.permute.xlu0 %512
    %514 = vrot.lane.b32.xlu0 %v192, 56
    %v515 = vpop.permute.xlu0 %514
    %v519 = vsel %vm289, %v510, 0
    %v522 = vsel %vm289, %v511, 0
    %524 = vmatprep.subr.mxu0 0.0
    %525 = vmatpush1.msra.mxu0 %v513
    %526 = vmatprep.subr.mxu0 0.0
    %527 = vmatpush1.msra.mxu0 %v515
    %528 = vmatprep.subr.mxu0 0.0
    %529 = vmatpush1.msra.mxu0 0.0
    %530 = vmatprep.subr.mxu0 0.0
    %531 = vmatpush1.msra.mxu0 0.0
    %532 = vmatprep.subr.mxu0 0.0
    %533 = vmatpush1.msra.mxu0 0.0
    %534 = vmatprep.subr.mxu0 0.0
    %535 = vmatpush1.msra.mxu0 0.0
    %536 = vmatprep.subr.mxu0 0.0
    %537 = vmatpush1.msra.mxu0 0.0
    %538 = vmatprep.subr.mxu0 0.0
    %539 = vmatpush1.msra.mxu0 0.0
    %540 = vmatprep.subr.mxu0 0.0
    %541 = vmatpush1.msra.mxu0 0.0
    %542 = vmatprep.subr.mxu0 0.0
    %543 = vmatpush1.msra.mxu0 0.0
    %544 = vmatprep.subr.mxu0 0.0
    %545 = vmatpush1.msra.mxu0 0.0
    %546 = vmatprep.subr.mxu0 0.0
    %547 = vmatpush1.msra.mxu0 0.0
    %548 = vmatprep.subr.mxu0 0.0
    %549 = vmatpush1.msra.mxu0 0.0
    %550 = vmatprep.subr.mxu0 0.0
    %551 = vmatpush1.msra.mxu0 0.0
    %552 = vmatprep.subr.mxu0 0.0
    %553 = vmatpush1.msra.mxu0 0.0
    %554 = vmatprep.subr.mxu0 0.0
    %555 = vmatpush1.msra.mxu0 0.0
    %556 = vmatprep.subr.mxu0 0.0
    %557 = vmatpush1.msra.mxu0 0.0
    %558 = vmatprep.subr.mxu0 0.0
    %559 = vmatpush1.msra.mxu0 0.0
    %560 = vmatprep.subr.mxu0 0.0
    %561 = vmatpush1.msra.mxu0 0.0
    %562 = vmatprep.subr.mxu0 0.0
    %563 = vmatpush1.msra.mxu0 0.0
    %564 = vmatprep.subr.mxu0 0.0
    %565 = vmatpush1.msra.mxu0 0.0
    %566 = vmatprep.subr.mxu0 0.0
    %567 = vmatpush1.msra.mxu0 0.0
    %568 = vmatprep.subr.mxu0 0.0
    %569 = vmatpush1.msra.mxu0 0.0
    %570 = vmatprep.subr.mxu0 0.0
    %571 = vmatpush1.msra.mxu0 0.0
    %572 = vmatprep.subr.mxu0 0.0
    %573 = vmatpush1.msra.mxu0 0.0
    %574 = vmatprep.subr.mxu0 0.0
    %575 = vmatpush1.msra.mxu0 0.0
    %576 = vmatprep.subr.mxu0 0.0
    %577 = vmatpush1.msra.mxu0 0.0
    %578 = vmatprep.subr.mxu0 0.0
    %579 = vmatpush1.msra.mxu0 0.0
    %580 = vmatprep.subr.mxu0 0.0
    %581 = vmatpush1.msra.mxu0 0.0
    %582 = vmatprep.subr.mxu0 0.0
    %583 = vmatpush1.msra.mxu0 0.0
    %584 = vmatprep.subr.mxu0 0.0
    %585 = vmatpush1.msra.mxu0 0.0
    %586 = vmatprep.subr.mxu0 0.0
    %587 = vmatpush1.msra.mxu0 0.0
    %588 = vmatprep.mubr.f32.mxu0 0.0
    %589 = vmatmul.mubr.f32.gmra.mrb[0].mxu0 %v519
    %v590 = vpop.f32.mrb[0].mxu0
    %v591 = vadd.f32 0.0, %v590
    %v592 = vpop.f32.mrb[0].mxu0
    %593 = vmatprep.mubr.f32.mxu0 0.0
    %594 = vmatmul.mubr.f32.gmra.mrb[0].mxu0 %v522
    %v595 = vpop.f32.mrb[0].mxu0
    %v596 = vadd.f32 0.0, %v595
    %v597 = vpop.f32.mrb[0].mxu0
    %598 = vdwg.mxu0
    %v600 = vsel %vm205, %v591, 0
    %v603 = vsel %vm205, %v596, 0
    %605 = vmatprep.subr.mxu0 0.0
    %606 = vmatpush1.msra.mxu0 %v196
    %607 = vmatprep.subr.mxu0 0.0
    %608 = vmatpush1.msra.mxu0 0.0
    %609 = vmatprep.subr.mxu0 0.0
    %610 = vmatpush1.msra.mxu0 0.0
    %611 = vmatprep.subr.mxu0 0.0
    %612 = vmatpush1.msra.mxu0 0.0
    %613 = vmatprep.subr.mxu0 0.0
    %614 = vmatpush1.msra.mxu0 0.0
    %615 = vmatprep.subr.mxu0 0.0
    %616 = vmatpush1.msra.mxu0 0.0
    %617 = vmatprep.subr.mxu0 0.0
    %618 = vmatpush1.msra.mxu0 0.0
    %619 = vmatprep.subr.mxu0 0.0
    %620 = vmatpush1.msra.mxu0 0.0
    %621 = vmatprep.subr.mxu0 0.0
    %622 = vmatpush1.msra.mxu0 0.0
    %623 = vmatprep.subr.mxu0 0.0
    %624 = vmatpush1.msra.mxu0 0.0
    %625 = vmatprep.subr.mxu0 0.0
    %626 = vmatpush1.msra.mxu0 0.0
    %627 = vmatprep.subr.mxu0 0.0
    %628 = vmatpush1.msra.mxu0 0.0
    %629 = vmatprep.subr.mxu0 0.0
    %630 = vmatpush1.msra.mxu0 0.0
    %631 = vmatprep.subr.mxu0 0.0
    %632 = vmatpush1.msra.mxu0 0.0
    %633 = vmatprep.subr.mxu0 0.0
    %634 = vmatpush1.msra.mxu0 0.0
    %635 = vmatprep.subr.mxu0 0.0
    %636 = vmatpush1.msra.mxu0 0.0
    %637 = vmatprep.subr.mxu0 0.0
    %638 = vmatpush1.msra.mxu0 0.0
    %639 = vmatprep.subr.mxu0 0.0
    %640 = vmatpush1.msra.mxu0 0.0
    %641 = vmatprep.subr.mxu0 0.0
    %642 = vmatpush1.msra.mxu0 0.0
    %643 = vmatprep.subr.mxu0 0.0
    %644 = vmatpush1.msra.mxu0 0.0
    %645 = vmatprep.subr.mxu0 0.0
    %646 = vmatpush1.msra.mxu0 0.0
    %647 = vmatprep.subr.mxu0 0.0
    %648 = vmatpush1.msra.mxu0 0.0
    %649 = vmatprep.subr.mxu0 0.0
    %650 = vmatpush1.msra.mxu0 0.0
    %651 = vmatprep.subr.mxu0 0.0
    %652 = vmatpush1.msra.mxu0 0.0
    %653 = vmatprep.subr.mxu0 0.0
    %654 = vmatpush1.msra.mxu0 0.0
    %655 = vmatprep.subr.mxu0 0.0
    %656 = vmatpush1.msra.mxu0 0.0
    %657 = vmatprep.subr.mxu0 0.0
    %658 = vmatpush1.msra.mxu0 0.0
    %659 = vmatprep.subr.mxu0 0.0
    %660 = vmatpush1.msra.mxu0 0.0
    %661 = vmatprep.subr.mxu0 0.0
    %662 = vmatpush1.msra.mxu0 0.0
    %663 = vmatprep.subr.mxu0 0.0
    %664 = vmatpush1.msra.mxu0 0.0
    %665 = vmatprep.subr.mxu0 0.0
    %666 = vmatpush1.msra.mxu0 0.0
    %667 = vmatprep.subr.mxu0 0.0
    %668 = vmatpush1.msra.mxu0 0.0
    %669 = vmatprep.mubr.f32.mxu0 0.0
    %670 = vmatmul.mubr.f32.gmra.mrb[0].mxu0 %v600
    %v671 = vpop.f32.mrb[0].mxu0
    %v672 = vadd.f32 0.0, %v671
    %v673 = vpop.f32.mrb[0].mxu0
    %674 = vmatprep.mubr.f32.mxu0 0.0
    %675 = vmatmul.mubr.f32.gmra.mrb[0].mxu0 %v603
    %v676 = vpop.f32.mrb[0].mxu0
    %v677 = vadd.f32 0.0, %v676
    %v678 = vpop.f32.mrb[0].mxu0
    %679 = vdwg.mxu0
    %v681 = vsel %vm205, %v391, 0
    %v684 = vsel %vm205, %v396, 0
    %686 = vmatprep.subr.mxu0 0.0
    %687 = vmatpush1.msra.mxu0 %v195
    %688 = vmatprep.subr.mxu0 0.0
    %689 = vmatpush1.msra.mxu0 0.0
    %690 = vmatprep.subr.mxu0 0.0
    %691 = vmatpush1.msra.mxu0 0.0
    %692 = vmatprep.subr.mxu0 0.0
    %693 = vmatpush1.msra.mxu0 0.0
    %694 = vmatprep.subr.mxu0 0.0
    %695 = vmatpush1.msra.mxu0 0.0
    %696 = vmatprep.subr.mxu0 0.0
    %697 = vmatpush1.msra.mxu0 0.0
    %698 = vmatprep.subr.mxu0 0.0
    %699 = vmatpush1.msra.mxu0 0.0
    %700 = vmatprep.subr.mxu0 0.0
    %701 = vmatpush1.msra.mxu0 0.0
    %702 = vmatprep.subr.mxu0 0.0
    %703 = vmatpush1.msra.mxu0 0.0
    %704 = vmatprep.subr.mxu0 0.0
    %705 = vmatpush1.msra.mxu0 0.0
    %706 = vmatprep.subr.mxu0 0.0
    %707 = vmatpush1.msra.mxu0 0.0
    %708 = vmatprep.subr.mxu0 0.0
    %709 = vmatpush1.msra.mxu0 0.0
    %710 = vmatprep.subr.mxu0 0.0
    %711 = vmatpush1.msra.mxu0 0.0
    %712 = vmatprep.subr.mxu0 0.0
    %713 = vmatpush1.msra.mxu0 0.0
    %714 = vmatprep.subr.mxu0 0.0
    %715 = vmatpush1.msra.mxu0 0.0
    %716 = vmatprep.subr.mxu0 0.0
    %717 = vmatpush1.msra.mxu0 0.0
    %718 = vmatprep.subr.mxu0 0.0
    %719 = vmatpush1.msra.mxu0 0.0
    %720 = vmatprep.subr.mxu0 0.0
    %721 = vmatpush1.msra.mxu0 0.0
    %722 = vmatprep.subr.mxu0 0.0
    %723 = vmatpush1.msra.mxu0 0.0
    %724 = vmatprep.subr.mxu0 0.0
    %725 = vmatpush1.msra.mxu0 0.0
    %726 = vmatprep.subr.mxu0 0.0
    %727 = vmatpush1.msra.mxu0 0.0
    %728 = vmatprep.subr.mxu0 0.0
    %729 = vmatpush1.msra.mxu0 0.0
    %730 = vmatprep.subr.mxu0 0.0
    %731 = vmatpush1.msra.mxu0 0.0
    %732 = vmatprep.subr.mxu0 0.0
    %733 = vmatpush1.msra.mxu0 0.0
    %734 = vmatprep.subr.mxu0 0.0
    %735 = vmatpush1.msra.mxu0 0.0
    %736 = vmatprep.subr.mxu0 0.0
    %737 = vmatpush1.msra.mxu0 0.0
    %738 = vmatprep.subr.mxu0 0.0
    %739 = vmatpush1.msra.mxu0 0.0
    %740 = vmatprep.subr.mxu0 0.0
    %741 = vmatpush1.msra.mxu0 0.0
    %742 = vmatprep.subr.mxu0 0.0
    %743 = vmatpush1.msra.mxu0 0.0
    %744 = vmatprep.subr.mxu0 0.0
    %745 = vmatpush1.msra.mxu0 0.0
    %746 = vmatprep.subr.mxu0 0.0
    %747 = vmatpush1.msra.mxu0 0.0
    %748 = vmatprep.subr.mxu0 0.0
    %749 = vmatpush1.msra.mxu0 0.0
    %750 = vmatprep.mubr.f32.mxu0 0.0
    %751 = vmatmul.mubr.f32.gmra.mrb[0].mxu0 %v681
    %v752 = vpop.f32.mrb[0].mxu0
    %v753 = vadd.f32 %v672, %v752
    %v754 = vpop.f32.mrb[0].mxu0
    %755 = vmatprep.mubr.f32.mxu0 0.0
    %756 = vmatmul.mubr.f32.gmra.mrb[0].mxu0 %v684
    %v757 = vpop.f32.mrb[0].mxu0
    %v758 = vadd.f32 %v677, %v757
    %v759 = vpop.f32.mrb[0].mxu0
    %760 = vdwg.mxu0
    %761 = vrot.lane.b32.xlu0 %v187, 112
    %v762 = vpop.permute.xlu0 %761
    %763 = vrot.lane.b32.xlu0 %v192, 112
    %v764 = vpop.permute.xlu0 %763
    %765 = vrot.lane.b32.xlu0 %v187, 80
    %v766 = vpop.permute.xlu0 %765
    %767 = vrot.lane.b32.xlu0 %v192, 80
    %v768 = vpop.permute.xlu0 %767
    %v769 = vsel %vm205, %v762, 0
    %v771 = vsel %vm205, %v764, 0
    %v773 = vsel %vm205, %v766, 0
    %v775 = vsel %vm205, %v768, 0
    %777 = vmatprep.subr.mxu0 0.0
    %778 = vmatpush1.xpose.msra.mxu0 %v773
    %779 = vmatprep.subr.mxu0 0.0
    %780 = vmatpush1.xpose.msra.mxu0 %v775
    %781 = vmatprep.subr.mxu0 0.0
    %782 = vmatpush1.xpose.msra.mxu0 0.0
    %783 = vmatprep.subr.mxu0 0.0
    %784 = vmatpush1.xpose.msra.mxu0 0.0
    %785 = vmatprep.subr.mxu0 0.0
    %786 = vmatpush1.xpose.msra.mxu0 0.0
    %787 = vmatprep.subr.mxu0 0.0
    %788 = vmatpush1.xpose.msra.mxu0 0.0
    %789 = vmatprep.subr.mxu0 0.0
    %790 = vmatpush1.xpose.msra.mxu0 0.0
    %791 = vmatprep.subr.mxu0 0.0
    %792 = vmatpush1.xpose.msra.mxu0 0.0
    %793 = vmatprep.subr.mxu0 0.0
    %794 = vmatpush1.xpose.msra.mxu0 0.0
    %795 = vmatprep.subr.mxu0 0.0
    %796 = vmatpush1.xpose.msra.mxu0 0.0
    %797 = vmatprep.subr.mxu0 0.0
    %798 = vmatpush1.xpose.msra.mxu0 0.0
    %799 = vmatprep.subr.mxu0 0.0
    %800 = vmatpush1.xpose.msra.mxu0 0.0
    %801 = vmatprep.subr.mxu0 0.0
    %802 = vmatpush1.xpose.msra.mxu0 0.0
    %803 = vmatprep.subr.mxu0 0.0
    %804 = vmatpush1.xpose.msra.mxu0 0.0
    %805 = vmatprep.subr.mxu0 0.0
    %806 = vmatpush1.xpose.msra.mxu0 0.0
    %807 = vmatprep.subr.mxu0 0.0
    %808 = vmatpush1.xpose.msra.mxu0 0.0
    %809 = vmatprep.subr.mxu0 0.0
    %810 = vmatpush1.xpose.msra.mxu0 0.0
    %811 = vmatprep.subr.mxu0 0.0
    %812 = vmatpush1.xpose.msra.mxu0 0.0
    %813 = vmatprep.subr.mxu0 0.0
    %814 = vmatpush1.xpose.msra.mxu0 0.0
    %815 = vmatprep.subr.mxu0 0.0
    %816 = vmatpush1.xpose.msra.mxu0 0.0
    %817 = vmatprep.subr.mxu0 0.0
    %818 = vmatpush1.xpose.msra.mxu0 0.0
    %819 = vmatprep.subr.mxu0 0.0
    %820 = vmatpush1.xpose.msra.mxu0 0.0
    %821 = vmatprep.subr.mxu0 0.0
    %822 = vmatpush1.xpose.msra.mxu0 0.0
    %823 = vmatprep.subr.mxu0 0.0
    %824 = vmatpush1.xpose.msra.mxu0 0.0
    %825 = vmatprep.subr.mxu0 0.0
    %826 = vmatpush1.xpose.msra.mxu0 0.0
    %827 = vmatprep.subr.mxu0 0.0
    %828 = vmatpush1.xpose.msra.mxu0 0.0
    %829 = vmatprep.subr.mxu0 0.0
    %830 = vmatpush1.xpose.msra.mxu0 0.0
    %831 = vmatprep.subr.mxu0 0.0
    %832 = vmatpush1.xpose.msra.mxu0 0.0
    %833 = vmatprep.subr.mxu0 0.0
    %834 = vmatpush1.xpose.msra.mxu0 0.0
    %835 = vmatprep.subr.mxu0 0.0
    %836 = vmatpush1.xpose.msra.mxu0 0.0
    %837 = vmatprep.subr.mxu0 0.0
    %838 = vmatpush1.xpose.msra.mxu0 0.0
    %839 = vmatprep.subr.mxu0 0.0
    %840 = vmatpush1.xpose.msra.mxu0 0.0
    %841 = vmatprep.mubr.f32.mxu0 0.0
    %842 = vmatmul.mubr.f32.gmra.mrb[0].mxu0 %v769
    %v843 = vpop.f32.mrb[0].mxu0
    %v844 = vadd.f32 %v106, %v843
    %v845 = vpop.f32.mrb[0].mxu0
    %846 = vmatprep.mubr.f32.mxu0 0.0
    %847 = vmatmul.mubr.f32.gmra.mrb[0].mxu0 %v771
    %v848 = vpop.f32.mrb[0].mxu0
    %v849 = vadd.f32 %v107, %v848
    %v850 = vpop.f32.mrb[0].mxu0
    %851 = vdwg.mxu0
    %v852 = vsel %vm289, %v844, -inf
    %853 = vmax.xlane.f32.xlu0 %v852
    %v854 = vpop.xlane.xlu0 %853
    %v855 = vsel %vm289, %v849, -inf
    %856 = vmax.xlane.f32.xlu0 %v855
    %v857 = vpop.xlane.xlu0 %856
    %v858 = vsub.f32 %v844, %v854
    %v859 = vsub.f32 %v849, %v857
    %v860 = vmul.f32 %v858, 1.442695
    %v861 = vpow.pop %v860
    %v862 = vmul.f32 %v859, 1.442695
    %v863 = vpow.pop %v862
    %v864 = vsel %vm289, %v861, 0.0
    %865 = vadd.xlane.f32.xlu0 %v864
    %v866 = vpop.xlane.xlu0 %865
    %v867 = vsel %vm289, %v863, 0.0
    %868 = vadd.xlane.f32.xlu0 %v867
    %v869 = vpop.xlane.xlu0 %868
    %v870 = vrcp.pop %v866
    %v871 = vrcp.pop %v869
    %v872 = vmul.f32 %v861, %v870
    %v873 = vmul.f32 %v863, %v871
    %874 = vrot.lane.b32.xlu0 %v187, 48
    %v875 = vpop.permute.xlu0 %874
    %876 = vrot.lane.b32.xlu0 %v192, 48
    %v877 = vpop.permute.xlu0 %876
    %v881 = vsel %vm289, %v872, 0
    %v884 = vsel %vm289, %v873, 0
    %886 = vmatprep.subr.mxu0 0.0
    %887 = vmatpush1.msra.mxu0 %v875
    %888 = vmatprep.subr.mxu0 0.0
    %889 = vmatpush1.msra.mxu0 %v877
    %890 = vmatprep.subr.mxu0 0.0
    %891 = vmatpush1.msra.mxu0 0.0
    %892 = vmatprep.subr.mxu0 0.0
    %893 = vmatpush1.msra.mxu0 0.0
    %894 = vmatprep.subr.mxu0 0.0
    %895 = vmatpush1.msra.mxu0 0.0
    %896 = vmatprep.subr.mxu0 0.0
    %897 = vmatpush1.msra.mxu0 0.0
    %898 = vmatprep.subr.mxu0 0.0
    %899 = vmatpush1.msra.mxu0 0.0
    %900 = vmatprep.subr.mxu0 0.0
    %901 = vmatpush1.msra.mxu0 0.0
    %902 = vmatprep.subr.mxu0 0.0
    %903 = vmatpush1.msra.mxu0 0.0
    %904 = vmatprep.subr.mxu0 0.0
    %905 = vmatpush1.msra.mxu0 0.0
    %906 = vmatprep.subr.mxu0 0.0
    %907 = vmatpush1.msra.mxu0 0.0
    %908 = vmatprep.subr.mxu0 0.0
    %909 = vmatpush1.msra.mxu0 0.0
    %910 = vmatprep.subr.mxu0 0.0
    %911 = vmatpush1.msra.mxu0 0.0
    %912 = vmatprep.subr.mxu0 0.0
    %913 = vmatpush1.msra.mxu0 0.0
    %914 = vmatprep.subr.mxu0 0.0
    %915 = vmatpush1.msra.mxu0 0.0
    %916 = vmatprep.subr.mxu0 0.0
    %917 = vmatpush1.msra.mxu0 0.0
    %918 = vmatprep.subr.mxu0 0.0
    %919 = vmatpush1.msra.mxu0 0.0
    %920 = vmatprep.subr.mxu0 0.0
    %921 = vmatpush1.msra.mxu0 0.0
    %922 = vmatprep.subr.mxu0 0.0
    %923 = vmatpush1.msra.mxu0 0.0
    %924 = vmatprep.subr.mxu0 0.0
    %925 = vmatpush1.msra.mxu0 0.0
    %926 = vmatprep.subr.mxu0 0.0
    %927 = vmatpush1.msra.mxu0 0.0
    %928 = vmatprep.subr.mxu0 0.0
    %929 = vmatpush1.msra.mxu0 0.0
    %930 = vmatprep.subr.mxu0 0.0
    %931 = vmatpush1.msra.mxu0 0.0
    %932 = vmatprep.subr.mxu0 0.0
    %933 = vmatpush1.msra.mxu0 0.0
    %934 = vmatprep.subr.mxu0 0.0
    %935 = vmatpush1.msra.mxu0 0.0
    %936 = vmatprep.subr.mxu0 0.0
    %937 = vmatpush1.msra.mxu0 0.0
    %938 = vmatprep.subr.mxu0 0.0
    %939 = vmatpush1.msra.mxu0 0.0
    %940 = vmatprep.subr.mxu0 0.0
    %941 = vmatpush1.msra.mxu0 0.0
    %942 = vmatprep.subr.mxu0 0.0
    %943 = vmatpush1.msra.mxu0 0.0
    %944 = vmatprep.subr.mxu0 0.0
    %945 = vmatpush1.msra.mxu0 0.0
    %946 = vmatprep.subr.mxu0 0.0
    %947 = vmatpush1.msra.mxu0 0.0
    %948 = vmatprep.subr.mxu0 0.0
    %949 = vmatpush1.msra.mxu0 0.0
    %950 = vmatprep.mubr.f32.mxu0 0.0
    %951 = vmatmul.mubr.f32.gmra.mrb[0].mxu0 %v881
    %v952 = vpop.f32.mrb[0].mxu0
    %v953 = vadd.f32 0.0, %v952
    %v954 = vpop.f32.mrb[0].mxu0
    %955 = vmatprep.mubr.f32.mxu0 0.0
    %956 = vmatmul.mubr.f32.gmra.mrb[0].mxu0 %v884
    %v957 = vpop.f32.mrb[0].mxu0
    %v958 = vadd.f32 0.0, %v957
    %v959 = vpop.f32.mrb[0].mxu0
    %960 = vdwg.mxu0
    %v962 = vsel %vm205, %v953, 0
    %v965 = vsel %vm205, %v958, 0
    %967 = vmatprep.subr.mxu0 0.0
    %968 = vmatpush1.msra.mxu0 %v197
    %969 = vmatprep.subr.mxu0 0.0
    %970 = vmatpush1.msra.mxu0 0.0
    %971 = vmatprep.subr.mxu0 0.0
    %972 = vmatpush1.msra.mxu0 0.0
    %973 = vmatprep.subr.mxu0 0.0
    %974 = vmatpush1.msra.mxu0 0.0
    %975 = vmatprep.subr.mxu0 0.0
    %976 = vmatpush1.msra.mxu0 0.0
    %977 = vmatprep.subr.mxu0 0.0
    %978 = vmatpush1.msra.mxu0 0.0
    %979 = vmatprep.subr.mxu0 0.0
    %980 = vmatpush1.msra.mxu0 0.0
    %981 = vmatprep.subr.mxu0 0.0
    %982 = vmatpush1.msra.mxu0 0.0
    %983 = vmatprep.subr.mxu0 0.0
    %984 = vmatpush1.msra.mxu0 0.0
    %985 = vmatprep.subr.mxu0 0.0
    %986 = vmatpush1.msra.mxu0 0.0
    %987 = vmatprep.subr.mxu0 0.0
    %988 = vmatpush1.msra.mxu0 0.0
    %989 = vmatprep.subr.mxu0 0.0
    %990 = vmatpush1.msra.mxu0 0.0
    %991 = vmatprep.subr.mxu0 0.0
    %992 = vmatpush1.msra.mxu0 0.0
    %993 = vmatprep.subr.mxu0 0.0
    %994 = vmatpush1.msra.mxu0 0.0
    %995 = vmatprep.subr.mxu0 0.0
    %996 = vmatpush1.msra.mxu0 0.0
    %997 = vmatprep.subr.mxu0 0.0
    %998 = vmatpush1.msra.mxu0 0.0
    %999 = vmatprep.subr.mxu0 0.0
    %1000 = vmatpush1.msra.mxu0 0.0
    %1001 = vmatprep.subr.mxu0 0.0
    %1002 = vmatpush1.msra.mxu0 0.0
    %1003 = vmatprep.subr.mxu0 0.0
    %1004 = vmatpush1.msra.mxu0 0.0
    %1005 = vmatprep.subr.mxu0 0.0
    %1006 = vmatpush1.msra.mxu0 0.0
    %1007 = vmatprep.subr.mxu0 0.0
    %1008 = vmatpush1.msra.mxu0 0.0
    %1009 = vmatprep.subr.mxu0 0.0
    %1010 = vmatpush1.msra.mxu0 0.0
    %1011 = vmatprep.subr.mxu0 0.0
    %1012 = vmatpush1.msra.mxu0 0.0
    %1013 = vmatprep.subr.mxu0 0.0
    %1014 = vmatpush1.msra.mxu0 0.0
    %1015 = vmatprep.subr.mxu0 0.0
    %1016 = vmatpush1.msra.mxu0 0.0
    %1017 = vmatprep.subr.mxu0 0.0
    %1018 = vmatpush1.msra.mxu0 0.0
    %1019 = vmatprep.subr.mxu0 0.0
    %1020 = vmatpush1.msra.mxu0 0.0
    %1021 = vmatprep.subr.mxu0 0.0
    %1022 = vmatpush1.msra.mxu0 0.0
    %1023 = vmatprep.subr.mxu0 0.0
    %1024 = vmatpush1.msra.mxu0 0.0
    %1025 = vmatprep.subr.mxu0 0.0
    %1026 = vmatpush1.msra.mxu0 0.0
    %1027 = vmatprep.subr.mxu0 0.0
    %1028 = vmatpush1.msra.mxu0 0.0
    %1029 = vmatprep.subr.mxu0 0.0
    %1030 = vmatpush1.msra.mxu0 0.0
    %1031 = vmatprep.mubr.f32.mxu0 0.0
    %1032 = vmatmul.mubr.f32.gmra.mrb[0].mxu0 %v962
    %v1033 = vpop.f32.mrb[0].mxu0
    %v1034 = vadd.f32 0.0, %v1033
    %v1035 = vpop.f32.mrb[0].mxu0
    %1036 = vmatprep.mubr.f32.mxu0 0.0
    %1037 = vmatmul.mubr.f32.gmra.mrb[0].mxu0 %v965
    %v1038 = vpop.f32.mrb[0].mxu0
    %v1039 = vadd.f32 0.0, %v1038
    %v1040 = vpop.f32.mrb[0].mxu0
    %1041 = vdwg.mxu0
    %v1042 = vadd.f32 %v753, %v1034
    %v1043 = vadd.f32 %v758, %v1039
    %1044 = vrot.lane.b32.xlu0 %v187, 104
    %v1045 = vpop.permute.xlu0 %1044
    %1046 = vrot.lane.b32.xlu0 %v192, 104
    %v1047 = vpop.permute.xlu0 %1046
    %1048 = vrot.lane.b32.xlu0 %v187, 72
    %v1049 = vpop.permute.xlu0 %1048
    %1050 = vrot.lane.b32.xlu0 %v192, 72
    %v1051 = vpop.permute.xlu0 %1050
    %v1052 = vsel %vm205, %v1045, 0
    %v1054 = vsel %vm205, %v1047, 0
    %v1056 = vsel %vm205, %v1049, 0
    %v1058 = vsel %vm205, %v1051, 0
    %1060 = vmatprep.subr.mxu0 0.0
    %1061 = vmatpush1.xpose.msra.mxu0 %v1056
    %1062 = vmatprep.subr.mxu0 0.0
    %1063 = vmatpush1.xpose.msra.mxu0 %v1058
    %1064 = vmatprep.subr.mxu0 0.0
    %1065 = vmatpush1.xpose.msra.mxu0 0.0
    %1066 = vmatprep.subr.mxu0 0.0
    %1067 = vmatpush1.xpose.msra.mxu0 0.0
    %1068 = vmatprep.subr.mxu0 0.0
    %1069 = vmatpush1.xpose.msra.mxu0 0.0
    %1070 = vmatprep.subr.mxu0 0.0
    %1071 = vmatpush1.xpose.msra.mxu0 0.0
    %1072 = vmatprep.subr.mxu0 0.0
    %1073 = vmatpush1.xpose.msra.mxu0 0.0
    %1074 = vmatprep.subr.mxu0 0.0
    %1075 = vmatpush1.xpose.msra.mxu0 0.0
    %1076 = vmatprep.subr.mxu0 0.0
    %1077 = vmatpush1.xpose.msra.mxu0 0.0
    %1078 = vmatprep.subr.mxu0 0.0
    %1079 = vmatpush1.xpose.msra.mxu0 0.0
    %1080 = vmatprep.subr.mxu0 0.0
    %1081 = vmatpush1.xpose.msra.mxu0 0.0
    %1082 = vmatprep.subr.mxu0 0.0
    %1083 = vmatpush1.xpose.msra.mxu0 0.0
    %1084 = vmatprep.subr.mxu0 0.0
    %1085 = vmatpush1.xpose.msra.mxu0 0.0
    %1086 = vmatprep.subr.mxu0 0.0
    %1087 = vmatpush1.xpose.msra.mxu0 0.0
    %1088 = vmatprep.subr.mxu0 0.0
    %1089 = vmatpush1.xpose.msra.mxu0 0.0
    %1090 = vmatprep.subr.mxu0 0.0
    %1091 = vmatpush1.xpose.msra.mxu0 0.0
    %1092 = vmatprep.subr.mxu0 0.0
    %1093 = vmatpush1.xpose.msra.mxu0 0.0
    %1094 = vmatprep.subr.mxu0 0.0
    %1095 = vmatpush1.xpose.msra.mxu0 0.0
    %1096 = vmatprep.subr.mxu0 0.0
    %1097 = vmatpush1.xpose.msra.mxu0 0.0
    %1098 = vmatprep.subr.mxu0 0.0
    %1099 = vmatpush1.xpose.msra.mxu0 0.0
    %1100 = vmatprep.subr.mxu0 0.0
    %1101 = vmatpush1.xpose.msra.mxu0 0.0
    %1102 = vmatprep.subr.mxu0 0.0
    %1103 = vmatpush1.xpose.msra.mxu0 0.0
    %1104 = vmatprep.subr.mxu0 0.0
    %1105 = vmatpush1.xpose.msra.mxu0 0.0
    %1106 = vmatprep.subr.mxu0 0.0
    %1107 = vmatpush1.xpose.msra.mxu0 0.0
    %1108 = vmatprep.subr.mxu0 0.0
    %1109 = vmatpush1.xpose.msra.mxu0 0.0
    %1110 = vmatprep.subr.mxu0 0.0
    %1111 = vmatpush1.xpose.msra.mxu0 0.0
    %1112 = vmatprep.subr.mxu0 0.0
    %1113 = vmatpush1.xpose.msra.mxu0 0.0
    %1114 = vmatprep.subr.mxu0 0.0
    %1115 = vmatpush1.xpose.msra.mxu0 0.0
    %1116 = vmatprep.subr.mxu0 0.0
    %1117 = vmatpush1.xpose.msra.mxu0 0.0
    %1118 = vmatprep.subr.mxu0 0.0
    %1119 = vmatpush1.xpose.msra.mxu0 0.0
    %1120 = vmatprep.subr.mxu0 0.0
    %1121 = vmatpush1.xpose.msra.mxu0 0.0
    %1122 = vmatprep.subr.mxu0 0.0
    %1123 = vmatpush1.xpose.msra.mxu0 0.0
    %1124 = vmatprep.mubr.f32.mxu0 0.0
    %1125 = vmatmul.mubr.f32.gmra.mrb[0].mxu0 %v1052
    %v1126 = vpop.f32.mrb[0].mxu0
    %v1127 = vadd.f32 %v106, %v1126
    %v1128 = vpop.f32.mrb[0].mxu0
    %1129 = vmatprep.mubr.f32.mxu0 0.0
    %1130 = vmatmul.mubr.f32.gmra.mrb[0].mxu0 %v1054
    %v1131 = vpop.f32.mrb[0].mxu0
    %v1132 = vadd.f32 %v107, %v1131
    %v1133 = vpop.f32.mrb[0].mxu0
    %1134 = vdwg.mxu0
    %v1135 = vsel %vm289, %v1127, -inf
    %1136 = vmax.xlane.f32.xlu0 %v1135
    %v1137 = vpop.xlane.xlu0 %1136
    %v1138 = vsel %vm289, %v1132, -inf
    %1139 = vmax.xlane.f32.xlu0 %v1138
    %v1140 = vpop.xlane.xlu0 %1139
    %v1141 = vsub.f32 %v1127, %v1137
    %v1142 = vsub.f32 %v1132, %v1140
    %v1143 = vmul.f32 %v1141, 1.442695
    %v1144 = vpow.pop %v1143
    %v1145 = vmul.f32 %v1142, 1.442695
    %v1146 = vpow.pop %v1145
    %v1147 = vsel %vm289, %v1144, 0.0
    %1148 = vadd.xlane.f32.xlu0 %v1147
    %v1149 = vpop.xlane.xlu0 %1148
    %v1150 = vsel %vm289, %v1146, 0.0
    %1151 = vadd.xlane.f32.xlu0 %v1150
    %v1152 = vpop.xlane.xlu0 %1151
    %v1153 = vrcp.pop %v1149
    %v1154 = vrcp.pop %v1152
    %v1155 = vmul.f32 %v1144, %v1153
    %v1156 = vmul.f32 %v1146, %v1154
    %1157 = vrot.lane.b32.xlu0 %v187, 40
    %v1158 = vpop.permute.xlu0 %1157
    %1159 = vrot.lane.b32.xlu0 %v192, 40
    %v1160 = vpop.permute.xlu0 %1159
    %v1164 = vsel %vm289, %v1155, 0
    %v1167 = vsel %vm289, %v1156, 0
    %1169 = vmatprep.subr.mxu0 0.0
    %1170 = vmatpush1.msra.mxu0 %v1158
    %1171 = vmatprep.subr.mxu0 0.0
    %1172 = vmatpush1.msra.mxu0 %v1160
    %1173 = vmatprep.subr.mxu0 0.0
    %1174 = vmatpush1.msra.mxu0 0.0
    %1175 = vmatprep.subr.mxu0 0.0
    %1176 = vmatpush1.msra.mxu0 0.0
    %1177 = vmatprep.subr.mxu0 0.0
    %1178 = vmatpush1.msra.mxu0 0.0
    %1179 = vmatprep.subr.mxu0 0.0
    %1180 = vmatpush1.msra.mxu0 0.0
    %1181 = vmatprep.subr.mxu0 0.0
    %1182 = vmatpush1.msra.mxu0 0.0
    %1183 = vmatprep.subr.mxu0 0.0
    %1184 = vmatpush1.msra.mxu0 0.0
    %1185 = vmatprep.subr.mxu0 0.0
    %1186 = vmatpush1.msra.mxu0 0.0
    %1187 = vmatprep.subr.mxu0 0.0
    %1188 = vmatpush1.msra.mxu0 0.0
    %1189 = vmatprep.subr.mxu0 0.0
    %1190 = vmatpush1.msra.mxu0 0.0
    %1191 = vmatprep.subr.mxu0 0.0
    %1192 = vmatpush1.msra.mxu0 0.0
    %1193 = vmatprep.subr.mxu0 0.0
    %1194 = vmatpush1.msra.mxu0 0.0
    %1195 = vmatprep.subr.mxu0 0.0
    %1196 = vmatpush1.msra.mxu0 0.0
    %1197 = vmatprep.subr.mxu0 0.0
    %1198 = vmatpush1.msra.mxu0 0.0
    %1199 = vmatprep.subr.mxu0 0.0
    %1200 = vmatpush1.msra.mxu0 0.0
    %1201 = vmatprep.subr.mxu0 0.0
    %1202 = vmatpush1.msra.mxu0 0.0
    %1203 = vmatprep.subr.mxu0 0.0
    %1204 = vmatpush1.msra.mxu0 0.0
    %1205 = vmatprep.subr.mxu0 0.0
    %1206 = vmatpush1.msra.mxu0 0.0
    %1207 = vmatprep.subr.mxu0 0.0
    %1208 = vmatpush1.msra.mxu0 0.0
    %1209 = vmatprep.subr.mxu0 0.0
    %1210 = vmatpush1.msra.mxu0 0.0
    %1211 = vmatprep.subr.mxu0 0.0
    %1212 = vmatpush1.msra.mxu0 0.0
    %1213 = vmatprep.subr.mxu0 0.0
    %1214 = vmatpush1.msra.mxu0 0.0
    %1215 = vmatprep.subr.mxu0 0.0
    %1216 = vmatpush1.msra.mxu0 0.0
    %1217 = vmatprep.subr.mxu0 0.0
    %1218 = vmatpush1.msra.mxu0 0.0
    %1219 = vmatprep.subr.mxu0 0.0
    %1220 = vmatpush1.msra.mxu0 0.0
    %1221 = vmatprep.subr.mxu0 0.0
    %1222 = vmatpush1.msra.mxu0 0.0
    %1223 = vmatprep.subr.mxu0 0.0
    %1224 = vmatpush1.msra.mxu0 0.0
    %1225 = vmatprep.subr.mxu0 0.0
    %1226 = vmatpush1.msra.mxu0 0.0
    %1227 = vmatprep.subr.mxu0 0.0
    %1228 = vmatpush1.msra.mxu0 0.0
    %1229 = vmatprep.subr.mxu0 0.0
    %1230 = vmatpush1.msra.mxu0 0.0
    %1231 = vmatprep.subr.mxu0 0.0
    %1232 = vmatpush1.msra.mxu0 0.0
    %1233 = vmatprep.mubr.f32.mxu0 0.0
    %1234 = vmatmul.mubr.f32.gmra.mrb[0].mxu0 %v1164
    %v1235 = vpop.f32.mrb[0].mxu0
    %v1236 = vadd.f32 0.0, %v1235
    %v1237 = vpop.f32.mrb[0].mxu0
    %1238 = vmatprep.mubr.f32.mxu0 0.0
    %1239 = vmatmul.mubr.f32.gmra.mrb[0].mxu0 %v1167
    %v1240 = vpop.f32.mrb[0].mxu0
    %v1241 = vadd.f32 0.0, %v1240
    %v1242 = vpop.f32.mrb[0].mxu0
    %1243 = vdwg.mxu0
    %v1245 = vsel %vm205, %v1236, 0
    %v1248 = vsel %vm205, %v1241, 0
    %1250 = vmatprep.subr.mxu0 0.0
    %1251 = vmatpush1.msra.mxu0 %v198
    %1252 = vmatprep.subr.mxu0 0.0
    %1253 = vmatpush1.msra.mxu0 0.0
    %1254 = vmatprep.subr.mxu0 0.0
    %1255 = vmatpush1.msra.mxu0 0.0
    %1256 = vmatprep.subr.mxu0 0.0
    %1257 = vmatpush1.msra.mxu0 0.0
    %1258 = vmatprep.subr.mxu0 0.0
    %1259 = vmatpush1.msra.mxu0 0.0
    %1260 = vmatprep.subr.mxu0 0.0
    %1261 = vmatpush1.msra.mxu0 0.0
    %1262 = vmatprep.subr.mxu0 0.0
    %1263 = vmatpush1.msra.mxu0 0.0
    %1264 = vmatprep.subr.mxu0 0.0
    %1265 = vmatpush1.msra.mxu0 0.0
    %1266 = vmatprep.subr.mxu0 0.0
    %1267 = vmatpush1.msra.mxu0 0.0
    %1268 = vmatprep.subr.mxu0 0.0
    %1269 = vmatpush1.msra.mxu0 0.0
    %1270 = vmatprep.subr.mxu0 0.0
    %1271 = vmatpush1.msra.mxu0 0.0
    %1272 = vmatprep.subr.mxu0 0.0
    %1273 = vmatpush1.msra.mxu0 0.0
    %1274 = vmatprep.subr.mxu0 0.0
    %1275 = vmatpush1.msra.mxu0 0.0
    %1276 = vmatprep.subr.mxu0 0.0
    %1277 = vmatpush1.msra.mxu0 0.0
    %1278 = vmatprep.subr.mxu0 0.0
    %1279 = vmatpush1.msra.mxu0 0.0
    %1280 = vmatprep.subr.mxu0 0.0
    %1281 = vmatpush1.msra.mxu0 0.0
    %1282 = vmatprep.subr.mxu0 0.0
    %1283 = vmatpush1.msra.mxu0 0.0
    %1284 = vmatprep.subr.mxu0 0.0
    %1285 = vmatpush1.msra.mxu0 0.0
    %1286 = vmatprep.subr.mxu0 0.0
    %1287 = vmatpush1.msra.mxu0 0.0
    %1288 = vmatprep.subr.mxu0 0.0
    %1289 = vmatpush1.msra.mxu0 0.0
    %1290 = vmatprep.subr.mxu0 0.0
    %1291 = vmatpush1.msra.mxu0 0.0
    %1292 = vmatprep.subr.mxu0 0.0
    %1293 = vmatpush1.msra.mxu0 0.0
    %1294 = vmatprep.subr.mxu0 0.0
    %1295 = vmatpush1.msra.mxu0 0.0
    %1296 = vmatprep.subr.mxu0 0.0
    %1297 = vmatpush1.msra.mxu0 0.0
    %1298 = vmatprep.subr.mxu0 0.0
    %1299 = vmatpush1.msra.mxu0 0.0
    %1300 = vmatprep.subr.mxu0 0.0
    %1301 = vmatpush1.msra.mxu0 0.0
    %1302 = vmatprep.subr.mxu0 0.0
    %1303 = vmatpush1.msra.mxu0 0.0
    %1304 = vmatprep.subr.mxu0 0.0
    %1305 = vmatpush1.msra.mxu0 0.0
    %1306 = vmatprep.subr.mxu0 0.0
    %1307 = vmatpush1.msra.mxu0 0.0
    %1308 = vmatprep.subr.mxu0 0.0
    %1309 = vmatpush1.msra.mxu0 0.0
    %1310 = vmatprep.subr.mxu0 0.0
    %1311 = vmatpush1.msra.mxu0 0.0
    %1312 = vmatprep.subr.mxu0 0.0
    %1313 = vmatpush1.msra.mxu0 0.0
    %1314 = vmatprep.mubr.f32.mxu0 0.0
    %1315 = vmatmul.mubr.f32.gmra.mrb[0].mxu0 %v1245
    %v1316 = vpop.f32.mrb[0].mxu0
    %v1317 = vadd.f32 0.0, %v1316
    %v1318 = vpop.f32.mrb[0].mxu0
    %1319 = vmatprep.mubr.f32.mxu0 0.0
    %1320 = vmatmul.mubr.f32.gmra.mrb[0].mxu0 %v1248
    %v1321 = vpop.f32.mrb[0].mxu0
    %v1322 = vadd.f32 0.0, %v1321
    %v1323 = vpop.f32.mrb[0].mxu0
    %1324 = vdwg.mxu0
    %v1325 = vadd.f32 %v1042, %v1317
    %v1326 = vadd.f32 %v1043, %v1322
    %v1327 = vadd.f32 %v101, %v1325
    %v1328 = vadd.f32 %v102, %v1326
    %v1329 = vsel %vm113, %v1327, 0.0
    %1330 = vadd.xlane.f32.xlu0 %v1329
    %v1331 = vpop.xlane.xlu0 %1330
    %v1332 = vsel %vm113, %v1328, 0.0
    %1333 = vadd.xlane.f32.xlu0 %v1332
    %v1334 = vpop.xlane.xlu0 %1333
    %v1335 = vrcp.pop 32.0
    %v1336 = vmul.f32 %v1331, %v1335
    %v1337 = vmul.f32 %v1334, %v1335
    %v1338 = vsub.f32 %v1327, %v1336
    %v1339 = vsub.f32 %v1328, %v1337
    %v1340 = vmul.f32 %v1338, %v1338
    %v1341 = vmul.f32 %v1339, %v1339
    %v1342 = vsel %vm113, %v1340, 0.0
    %1343 = vadd.xlane.f32.xlu0 %v1342
    %v1344 = vpop.xlane.xlu0 %1343
    %v1345 = vsel %vm113, %v1341, 0.0
    %1346 = vadd.xlane.f32.xlu0 %v1345
    %v1347 = vpop.xlane.xlu0 %1346
    %v1348 = vmul.f32 %v1344, %v1335
    %v1349 = vmul.f32 %v1347, %v1335
    %v1350 = vadd.f32 %v1348, 1e-06
    %v1351 = vadd.f32 %v1349, 1e-06
    %v1352 = vrsqrt.pop %v1350
    %v1353 = vrsqrt.pop %v1351
    %v1354 = vmul.f32 %v1338, %v1352
    %v1355 = vmul.f32 %v1339, %v1353
    %v1356 = vlaneseq
    %v1357 = vshrl.u32 %v1356, 7
    %v1358 = vsub.s32 0, %v1357
    %v1359 = vrot.slane %v108, %v1358
    %v1360 = vmul.f32 %v1354, %v1359
    %v1361 = vmul.f32 %v1355, %v1359
    %v1362 = vlaneseq
    %v1363 = vshrl.u32 %v1362, 7
    %v1364 = vsub.s32 1, %v1363
    %v1365 = vrot.slane %v108, %v1364
    %v1366 = vadd.f32 %v1360, %v1365
    %v1367 = vadd.f32 %v1361, %v1365
    %s1368 = scalar_lea.vmem %s4, 32
    %v1369 = vld [vmem:[%s1368] sm:$0xff]
    %v1370 = vld [vmem:[%s1368 + $0x8] sm:$0xff]
    %v1371 = vld [vmem:[%s1368 + $0x10] sm:$0xff]
    %v1372 = vld [vmem:[%s1368 + $0x18] sm:$0xff]
    %v1374 = vsel %vm113, %v1366, 0
    %v1377 = vsel %vm113, %v1367, 0
    %1379 = vmatprep.subr.mxu0 0.0
    %1380 = vmatpush1.msra.mxu0 %v1369
    %1381 = vmatprep.subr.mxu0 0.0
    %1382 = vmatpush1.msra.mxu0 %v1370
    %1383 = vmatprep.subr.mxu0 0.0
    %1384 = vmatpush1.msra.mxu0 %v1371
    %1385 = vmatprep.subr.mxu0 0.0
    %1386 = vmatpush1.msra.mxu0 %v1372
    %1387 = vmatprep.subr.mxu0 0.0
    %1388 = vmatpush1.msra.mxu0 0.0
    %1389 = vmatprep.subr.mxu0 0.0
    %1390 = vmatpush1.msra.mxu0 0.0
    %1391 = vmatprep.subr.mxu0 0.0
    %1392 = vmatpush1.msra.mxu0 0.0
    %1393 = vmatprep.subr.mxu0 0.0
    %1394 = vmatpush1.msra.mxu0 0.0
    %1395 = vmatprep.subr.mxu0 0.0
    %1396 = vmatpush1.msra.mxu0 0.0
    %1397 = vmatprep.subr.mxu0 0.0
    %1398 = vmatpush1.msra.mxu0 0.0
    %1399 = vmatprep.subr.mxu0 0.0
    %1400 = vmatpush1.msra.mxu0 0.0
    %1401 = vmatprep.subr.mxu0 0.0
    %1402 = vmatpush1.msra.mxu0 0.0
    %1403 = vmatprep.subr.mxu0 0.0
    %1404 = vmatpush1.msra.mxu0 0.0
    %1405 = vmatprep.subr.mxu0 0.0
    %1406 = vmatpush1.msra.mxu0 0.0
    %1407 = vmatprep.subr.mxu0 0.0
    %1408 = vmatpush1.msra.mxu0 0.0
    %1409 = vmatprep.subr.mxu0 0.0
    %1410 = vmatpush1.msra.mxu0 0.0
    %1411 = vmatprep.subr.mxu0 0.0
    %1412 = vmatpush1.msra.mxu0 0.0
    %1413 = vmatprep.subr.mxu0 0.0
    %1414 = vmatpush1.msra.mxu0 0.0
    %1415 = vmatprep.subr.mxu0 0.0
    %1416 = vmatpush1.msra.mxu0 0.0
    %1417 = vmatprep.subr.mxu0 0.0
    %1418 = vmatpush1.msra.mxu0 0.0
    %1419 = vmatprep.subr.mxu0 0.0
    %1420 = vmatpush1.msra.mxu0 0.0
    %1421 = vmatprep.subr.mxu0 0.0
    %1422 = vmatpush1.msra.mxu0 0.0
    %1423 = vmatprep.subr.mxu0 0.0
    %1424 = vmatpush1.msra.mxu0 0.0
    %1425 = vmatprep.subr.mxu0 0.0
    %1426 = vmatpush1.msra.mxu0 0.0
    %1427 = vmatprep.subr.mxu0 0.0
    %1428 = vmatpush1.msra.mxu0 0.0
    %1429 = vmatprep.subr.mxu0 0.0
    %1430 = vmatpush1.msra.mxu0 0.0
    %1431 = vmatprep.subr.mxu0 0.0
    %1432 = vmatpush1.msra.mxu0 0.0
    %1433 = vmatprep.subr.mxu0 0.0
    %1434 = vmatpush1.msra.mxu0 0.0
    %1435 = vmatprep.subr.mxu0 0.0
    %1436 = vmatpush1.msra.mxu0 0.0
    %1437 = vmatprep.subr.mxu0 0.0
    %1438 = vmatpush1.msra.mxu0 0.0
    %1439 = vmatprep.subr.mxu0 0.0
    %1440 = vmatpush1.msra.mxu0 0.0
    %1441 = vmatprep.subr.mxu0 0.0
    %1442 = vmatpush1.msra.mxu0 0.0
    %1443 = vmatprep.mubr.f32.mxu0 0.0
    %1444 = vmatmul.mubr.f32.gmra.mrb[0].mxu0 %v1374
    %v1445 = vpop.f32.mrb[0].mxu0
    %v1446 = vadd.f32 0.0, %v1445
    %v1447 = vpop.f32.mrb[0].mxu0
    %1448 = vmatprep.mubr.f32.mxu0 0.0
    %1449 = vmatmul.mubr.f32.gmra.mrb[0].mxu0 %v1377
    %v1450 = vpop.f32.mrb[0].mxu0
    %v1451 = vadd.f32 0.0, %v1450
    %v1452 = vpop.f32.mrb[0].mxu0
    %1453 = vdwg.mxu0
    %v1454 = vld [vmem:[#allocation8] sm:$0xff]
    %v1455 = vld [vmem:[#allocation8 + $0x8] sm:$0xff]
    %v1456 = vld [vmem:[#allocation8 + $0x10] sm:$0xff]
    %v1457 = vld [vmem:[#allocation8 + $0x18] sm:$0xff]
    %v1459 = vsel %vm113, %v104, 0
    %v1462 = vsel %vm113, %v105, 0
    %1464 = vmatprep.subr.mxu0 0.0
    %1465 = vmatpush1.msra.mxu0 %v1454
    %1466 = vmatprep.subr.mxu0 0.0
    %1467 = vmatpush1.msra.mxu0 %v1455
    %1468 = vmatprep.subr.mxu0 0.0
    %1469 = vmatpush1.msra.mxu0 %v1456
    %1470 = vmatprep.subr.mxu0 0.0
    %1471 = vmatpush1.msra.mxu0 %v1457
    %1472 = vmatprep.subr.mxu0 0.0
    %1473 = vmatpush1.msra.mxu0 0.0
    %1474 = vmatprep.subr.mxu0 0.0
    %1475 = vmatpush1.msra.mxu0 0.0
    %1476 = vmatprep.subr.mxu0 0.0
    %1477 = vmatpush1.msra.mxu0 0.0
    %1478 = vmatprep.subr.mxu0 0.0
    %1479 = vmatpush1.msra.mxu0 0.0
    %1480 = vmatprep.subr.mxu0 0.0
    %1481 = vmatpush1.msra.mxu0 0.0
    %1482 = vmatprep.subr.mxu0 0.0
    %1483 = vmatpush1.msra.mxu0 0.0
    %1484 = vmatprep.subr.mxu0 0.0
    %1485 = vmatpush1.msra.mxu0 0.0
    %1486 = vmatprep.subr.mxu0 0.0
    %1487 = vmatpush1.msra.mxu0 0.0
    %1488 = vmatprep.subr.mxu0 0.0
    %1489 = vmatpush1.msra.mxu0 0.0
    %1490 = vmatprep.subr.mxu0 0.0
    %1491 = vmatpush1.msra.mxu0 0.0
    %1492 = vmatprep.subr.mxu0 0.0
    %1493 = vmatpush1.msra.mxu0 0.0
    %1494 = vmatprep.subr.mxu0 0.0
    %1495 = vmatpush1.msra.mxu0 0.0
    %1496 = vmatprep.subr.mxu0 0.0
    %1497 = vmatpush1.msra.mxu0 0.0
    %1498 = vmatprep.subr.mxu0 0.0
    %1499 = vmatpush1.msra.mxu0 0.0
    %1500 = vmatprep.subr.mxu0 0.0
    %1501 = vmatpush1.msra.mxu0 0.0
    %1502 = vmatprep.subr.mxu0 0.0
    %1503 = vmatpush1.msra.mxu0 0.0
    %1504 = vmatprep.subr.mxu0 0.0
    %1505 = vmatpush1.msra.mxu0 0.0
    %1506 = vmatprep.subr.mxu0 0.0
    %1507 = vmatpush1.msra.mxu0 0.0
    %1508 = vmatprep.subr.mxu0 0.0
    %1509 = vmatpush1.msra.mxu0 0.0
    %1510 = vmatprep.subr.mxu0 0.0
    %1511 = vmatpush1.msra.mxu0 0.0
    %1512 = vmatprep.subr.mxu0 0.0
    %1513 = vmatpush1.msra.mxu0 0.0
    %1514 = vmatprep.subr.mxu0 0.0
    %1515 = vmatpush1.msra.mxu0 0.0
    %1516 = vmatprep.subr.mxu0 0.0
    %1517 = vmatpush1.msra.mxu0 0.0
    %1518 = vmatprep.subr.mxu0 0.0
    %1519 = vmatpush1.msra.mxu0 0.0
    %1520 = vmatprep.subr.mxu0 0.0
    %1521 = vmatpush1.msra.mxu0 0.0
    %1522 = vmatprep.subr.mxu0 0.0
    %1523 = vmatpush1.msra.mxu0 0.0
    %1524 = vmatprep.subr.mxu0 0.0
    %1525 = vmatpush1.msra.mxu0 0.0
    %1526 = vmatprep.subr.mxu0 0.0
    %1527 = vmatpush1.msra.mxu0 0.0
    %1528 = vmatprep.mubr.f32.mxu0 0.0
    %1529 = vmatmul.mubr.f32.gmra.mrb[0].mxu0 %v1459
    %v1530 = vpop.f32.mrb[0].mxu0
    %v1531 = vadd.f32 0.0, %v1530
    %v1532 = vpop.f32.mrb[0].mxu0
    %1533 = vmatprep.mubr.f32.mxu0 0.0
    %1534 = vmatmul.mubr.f32.gmra.mrb[0].mxu0 %v1462
    %v1535 = vpop.f32.mrb[0].mxu0
    %v1536 = vadd.f32 0.0, %v1535
    %v1537 = vpop.f32.mrb[0].mxu0
    %1538 = vdwg.mxu0
    %s1539 = scalar_lea.vmem %s4, 64
    %v1540 = vld [vmem:[%s1539] sm:$0xff]
    %v1541 = vld [vmem:[%s1539 + $0x8] sm:$0xff]
    %v1542 = vld [vmem:[%s1539 + $0x10] sm:$0xff]
    %v1543 = vld [vmem:[%s1539 + $0x18] sm:$0xff]
    %v1545 = vsel %vm205, %v1446, 0
    %v1548 = vsel %vm205, %v1451, 0
    %v1551 = vsel %vm205, %v1531, 0
    %v1554 = vsel %vm205, %v1536, 0
    %1556 = vmatprep.subr.mxu0 0.0
    %1557 = vmatpush1.xpose.msra.mxu0 %v1551
    %1558 = vmatprep.subr.mxu0 0.0
    %1559 = vmatpush1.xpose.msra.mxu0 %v1554
    %1560 = vmatprep.subr.mxu0 0.0
    %1561 = vmatpush1.xpose.msra.mxu0 0.0
    %1562 = vmatprep.subr.mxu0 0.0
    %1563 = vmatpush1.xpose.msra.mxu0 0.0
    %1564 = vmatprep.subr.mxu0 0.0
    %1565 = vmatpush1.xpose.msra.mxu0 0.0
    %1566 = vmatprep.subr.mxu0 0.0
    %1567 = vmatpush1.xpose.msra.mxu0 0.0
    %1568 = vmatprep.subr.mxu0 0.0
    %1569 = vmatpush1.xpose.msra.mxu0 0.0
    %1570 = vmatprep.subr.mxu0 0.0
    %1571 = vmatpush1.xpose.msra.mxu0 0.0
    %1572 = vmatprep.subr.mxu0 0.0
    %1573 = vmatpush1.xpose.msra.mxu0 0.0
    %1574 = vmatprep.subr.mxu0 0.0
    %1575 = vmatpush1.xpose.msra.mxu0 0.0
    %1576 = vmatprep.subr.mxu0 0.0
    %1577 = vmatpush1.xpose.msra.mxu0 0.0
    %1578 = vmatprep.subr.mxu0 0.0
    %1579 = vmatpush1.xpose.msra.mxu0 0.0
    %1580 = vmatprep.subr.mxu0 0.0
    %1581 = vmatpush1.xpose.msra.mxu0 0.0
    %1582 = vmatprep.subr.mxu0 0.0
    %1583 = vmatpush1.xpose.msra.mxu0 0.0
    %1584 = vmatprep.subr.mxu0 0.0
    %1585 = vmatpush1.xpose.msra.mxu0 0.0
    %1586 = vmatprep.subr.mxu0 0.0
    %1587 = vmatpush1.xpose.msra.mxu0 0.0
    %1588 = vmatprep.subr.mxu0 0.0
    %1589 = vmatpush1.xpose.msra.mxu0 0.0
    %1590 = vmatprep.subr.mxu0 0.0
    %1591 = vmatpush1.xpose.msra.mxu0 0.0
    %1592 = vmatprep.subr.mxu0 0.0
    %1593 = vmatpush1.xpose.msra.mxu0 0.0
    %1594 = vmatprep.subr.mxu0 0.0
    %1595 = vmatpush1.xpose.msra.mxu0 0.0
    %1596 = vmatprep.subr.mxu0 0.0
    %1597 = vmatpush1.xpose.msra.mxu0 0.0
    %1598 = vmatprep.subr.mxu0 0.0
    %1599 = vmatpush1.xpose.msra.mxu0 0.0
    %1600 = vmatprep.subr.mxu0 0.0
    %1601 = vmatpush1.xpose.msra.mxu0 0.0
    %1602 = vmatprep.subr.mxu0 0.0
    %1603 = vmatpush1.xpose.msra.mxu0 0.0
    %1604 = vmatprep.subr.mxu0 0.0
    %1605 = vmatpush1.xpose.msra.mxu0 0.0
    %1606 = vmatprep.subr.mxu0 0.0
    %1607 = vmatpush1.xpose.msra.mxu0 0.0
    %1608 = vmatprep.subr.mxu0 0.0
    %1609 = vmatpush1.xpose.msra.mxu0 0.0
    %1610 = vmatprep.subr.mxu0 0.0
    %1611 = vmatpush1.xpose.msra.mxu0 0.0
    %1612 = vmatprep.subr.mxu0 0.0
    %1613 = vmatpush1.xpose.msra.mxu0 0.0
    %1614 = vmatprep.subr.mxu0 0.0
    %1615 = vmatpush1.xpose.msra.mxu0 0.0
    %1616 = vmatprep.subr.mxu0 0.0
    %1617 = vmatpush1.xpose.msra.mxu0 0.0
    %1618 = vmatprep.subr.mxu0 0.0
    %1619 = vmatpush1.xpose.msra.mxu0 0.0
    %1620 = vmatprep.mubr.f32.mxu0 0.0
    %1621 = vmatmul.mubr.f32.gmra.mrb[0].mxu0 %v1545
    %v1622 = vpop.f32.mrb[0].mxu0
    %v1623 = vadd.f32 %v106, %v1622
    %v1624 = vpop.f32.mrb[0].mxu0
    %1625 = vmatprep.mubr.f32.mxu0 0.0
    %1626 = vmatmul.mubr.f32.gmra.mrb[0].mxu0 %v1548
    %v1627 = vpop.f32.mrb[0].mxu0
    %v1628 = vadd.f32 %v107, %v1627
    %v1629 = vpop.f32.mrb[0].mxu0
    %1630 = vdwg.mxu0
    %v1631 = vsel %vm289, %v1623, -inf
    %1632 = vmax.xlane.f32.xlu0 %v1631
    %v1633 = vpop.xlane.xlu0 %1632
    %v1634 = vsel %vm289, %v1628, -inf
    %1635 = vmax.xlane.f32.xlu0 %v1634
    %v1636 = vpop.xlane.xlu0 %1635
    %v1637 = vsub.f32 %v1623, %v1633
    %v1638 = vsub.f32 %v1628, %v1636
    %v1639 = vmul.f32 %v1637, 1.442695
    %v1640 = vpow.pop %v1639
    %v1641 = vmul.f32 %v1638, 1.442695
    %v1642 = vpow.pop %v1641
    %v1643 = vsel %vm289, %v1640, 0.0
    %1644 = vadd.xlane.f32.xlu0 %v1643
    %v1645 = vpop.xlane.xlu0 %1644
    %v1646 = vsel %vm289, %v1642, 0.0
    %1647 = vadd.xlane.f32.xlu0 %v1646
    %v1648 = vpop.xlane.xlu0 %1647
    %v1649 = vrcp.pop %v1645
    %v1650 = vrcp.pop %v1648
    %v1651 = vmul.f32 %v1640, %v1649
    %v1652 = vmul.f32 %v1642, %v1650
    %1653 = vrot.lane.b32.xlu0 %v1531, 96
    %v1654 = vpop.permute.xlu0 %1653
    %1655 = vrot.lane.b32.xlu0 %v1536, 96
    %v1656 = vpop.permute.xlu0 %1655
    %v1660 = vsel %vm289, %v1651, 0
    %v1663 = vsel %vm289, %v1652, 0
    %1665 = vmatprep.subr.mxu0 0.0
    %1666 = vmatpush1.msra.mxu0 %v1654
    %1667 = vmatprep.subr.mxu0 0.0
    %1668 = vmatpush1.msra.mxu0 %v1656
    %1669 = vmatprep.subr.mxu0 0.0
    %1670 = vmatpush1.msra.mxu0 0.0
    %1671 = vmatprep.subr.mxu0 0.0
    %1672 = vmatpush1.msra.mxu0 0.0
    %1673 = vmatprep.subr.mxu0 0.0
    %1674 = vmatpush1.msra.mxu0 0.0
    %1675 = vmatprep.subr.mxu0 0.0
    %1676 = vmatpush1.msra.mxu0 0.0
    %1677 = vmatprep.subr.mxu0 0.0
    %1678 = vmatpush1.msra.mxu0 0.0
    %1679 = vmatprep.subr.mxu0 0.0
    %1680 = vmatpush1.msra.mxu0 0.0
    %1681 = vmatprep.subr.mxu0 0.0
    %1682 = vmatpush1.msra.mxu0 0.0
    %1683 = vmatprep.subr.mxu0 0.0
    %1684 = vmatpush1.msra.mxu0 0.0
    %1685 = vmatprep.subr.mxu0 0.0
    %1686 = vmatpush1.msra.mxu0 0.0
    %1687 = vmatprep.subr.mxu0 0.0
    %1688 = vmatpush1.msra.mxu0 0.0
    %1689 = vmatprep.subr.mxu0 0.0
    %1690 = vmatpush1.msra.mxu0 0.0
    %1691 = vmatprep.subr.mxu0 0.0
    %1692 = vmatpush1.msra.mxu0 0.0
    %1693 = vmatprep.subr.mxu0 0.0
    %1694 = vmatpush1.msra.mxu0 0.0
    %1695 = vmatprep.subr.mxu0 0.0
    %1696 = vmatpush1.msra.mxu0 0.0
    %1697 = vmatprep.subr.mxu0 0.0
    %1698 = vmatpush1.msra.mxu0 0.0
    %1699 = vmatprep.subr.mxu0 0.0
    %1700 = vmatpush1.msra.mxu0 0.0
    %1701 = vmatprep.subr.mxu0 0.0
    %1702 = vmatpush1.msra.mxu0 0.0
    %1703 = vmatprep.subr.mxu0 0.0
    %1704 = vmatpush1.msra.mxu0 0.0
    %1705 = vmatprep.subr.mxu0 0.0
    %1706 = vmatpush1.msra.mxu0 0.0
    %1707 = vmatprep.subr.mxu0 0.0
    %1708 = vmatpush1.msra.mxu0 0.0
    %1709 = vmatprep.subr.mxu0 0.0
    %1710 = vmatpush1.msra.mxu0 0.0
    %1711 = vmatprep.subr.mxu0 0.0
    %1712 = vmatpush1.msra.mxu0 0.0
    %1713 = vmatprep.subr.mxu0 0.0
    %1714 = vmatpush1.msra.mxu0 0.0
    %1715 = vmatprep.subr.mxu0 0.0
    %1716 = vmatpush1.msra.mxu0 0.0
    %1717 = vmatprep.subr.mxu0 0.0
    %1718 = vmatpush1.msra.mxu0 0.0
    %1719 = vmatprep.subr.mxu0 0.0
    %1720 = vmatpush1.msra.mxu0 0.0
    %1721 = vmatprep.subr.mxu0 0.0
    %1722 = vmatpush1.msra.mxu0 0.0
    %1723 = vmatprep.subr.mxu0 0.0
    %1724 = vmatpush1.msra.mxu0 0.0
    %1725 = vmatprep.subr.mxu0 0.0
    %1726 = vmatpush1.msra.mxu0 0.0
    %1727 = vmatprep.subr.mxu0 0.0
    %1728 = vmatpush1.msra.mxu0 0.0
    %1729 = vmatprep.mubr.f32.mxu0 0.0
    %1730 = vmatmul.mubr.f32.gmra.mrb[0].mxu0 %v1660
    %v1731 = vpop.f32.mrb[0].mxu0
    %v1732 = vadd.f32 0.0, %v1731
    %v1733 = vpop.f32.mrb[0].mxu0
    %1734 = vmatprep.mubr.f32.mxu0 0.0
    %1735 = vmatmul.mubr.f32.gmra.mrb[0].mxu0 %v1663
    %v1736 = vpop.f32.mrb[0].mxu0
    %v1737 = vadd.f32 0.0, %v1736
    %v1738 = vpop.f32.mrb[0].mxu0
    %1739 = vdwg.mxu0
    %1740 = vrot.lane.b32.xlu0 %v1446, 120
    %v1741 = vpop.permute.xlu0 %1740
    %1742 = vrot.lane.b32.xlu0 %v1451, 120
    %v1743 = vpop.permute.xlu0 %1742
    %1744 = vrot.lane.b32.xlu0 %v1531, 120
    %v1745 = vpop.permute.xlu0 %1744
    %1746 = vrot.lane.b32.xlu0 %v1536, 120
    %v1747 = vpop.permute.xlu0 %1746
    %v1748 = vsel %vm205, %v1741, 0
    %v1750 = vsel %vm205, %v1743, 0
    %v1752 = vsel %vm205, %v1745, 0
    %v1754 = vsel %vm205, %v1747, 0
    %1756 = vmatprep.subr.mxu0 0.0
    %1757 = vmatpush1.xpose.msra.mxu0 %v1752
    %1758 = vmatprep.subr.mxu0 0.0
    %1759 = vmatpush1.xpose.msra.mxu0 %v1754
    %1760 = vmatprep.subr.mxu0 0.0
    %1761 = vmatpush1.xpose.msra.mxu0 0.0
    %1762 = vmatprep.subr.mxu0 0.0
    %1763 = vmatpush1.xpose.msra.mxu0 0.0
    %1764 = vmatprep.subr.mxu0 0.0
    %1765 = vmatpush1.xpose.msra.mxu0 0.0
    %1766 = vmatprep.subr.mxu0 0.0
    %1767 = vmatpush1.xpose.msra.mxu0 0.0
    %1768 = vmatprep.subr.mxu0 0.0
    %1769 = vmatpush1.xpose.msra.mxu0 0.0
    %1770 = vmatprep.subr.mxu0 0.0
    %1771 = vmatpush1.xpose.msra.mxu0 0.0
    %1772 = vmatprep.subr.mxu0 0.0
    %1773 = vmatpush1.xpose.msra.mxu0 0.0
    %1774 = vmatprep.subr.mxu0 0.0
    %1775 = vmatpush1.xpose.msra.mxu0 0.0
    %1776 = vmatprep.subr.mxu0 0.0
    %1777 = vmatpush1.xpose.msra.mxu0 0.0
    %1778 = vmatprep.subr.mxu0 0.0
    %1779 = vmatpush1.xpose.msra.mxu0 0.0
    %1780 = vmatprep.subr.mxu0 0.0
    %1781 = vmatpush1.xpose.msra.mxu0 0.0
    %1782 = vmatprep.subr.mxu0 0.0
    %1783 = vmatpush1.xpose.msra.mxu0 0.0
    %1784 = vmatprep.subr.mxu0 0.0
    %1785 = vmatpush1.xpose.msra.mxu0 0.0
    %1786 = vmatprep.subr.mxu0 0.0
    %1787 = vmatpush1.xpose.msra.mxu0 0.0
    %1788 = vmatprep.subr.mxu0 0.0
    %1789 = vmatpush1.xpose.msra.mxu0 0.0
    %1790 = vmatprep.subr.mxu0 0.0
    %1791 = vmatpush1.xpose.msra.mxu0 0.0
    %1792 = vmatprep.subr.mxu0 0.0
    %1793 = vmatpush1.xpose.msra.mxu0 0.0
    %1794 = vmatprep.subr.mxu0 0.0
    %1795 = vmatpush1.xpose.msra.mxu0 0.0
    %1796 = vmatprep.subr.mxu0 0.0
    %1797 = vmatpush1.xpose.msra.mxu0 0.0
    %1798 = vmatprep.subr.mxu0 0.0
    %1799 = vmatpush1.xpose.msra.mxu0 0.0
    %1800 = vmatprep.subr.mxu0 0.0
    %1801 = vmatpush1.xpose.msra.mxu0 0.0
    %1802 = vmatprep.subr.mxu0 0.0
    %1803 = vmatpush1.xpose.msra.mxu0 0.0
    %1804 = vmatprep.subr.mxu0 0.0
    %1805 = vmatpush1.xpose.msra.mxu0 0.0
    %1806 = vmatprep.subr.mxu0 0.0
    %1807 = vmatpush1.xpose.msra.mxu0 0.0
    %1808 = vmatprep.subr.mxu0 0.0
    %1809 = vmatpush1.xpose.msra.mxu0 0.0
    %1810 = vmatprep.subr.mxu0 0.0
    %1811 = vmatpush1.xpose.msra.mxu0 0.0
    %1812 = vmatprep.subr.mxu0 0.0
    %1813 = vmatpush1.xpose.msra.mxu0 0.0
    %1814 = vmatprep.subr.mxu0 0.0
    %1815 = vmatpush1.xpose.msra.mxu0 0.0
    %1816 = vmatprep.subr.mxu0 0.0
    %1817 = vmatpush1.xpose.msra.mxu0 0.0
    %1818 = vmatprep.subr.mxu0 0.0
    %1819 = vmatpush1.xpose.msra.mxu0 0.0
    %1820 = vmatprep.mubr.f32.mxu0 0.0
    %1821 = vmatmul.mubr.f32.gmra.mrb[0].mxu0 %v1748
    %v1822 = vpop.f32.mrb[0].mxu0
    %v1823 = vadd.f32 %v106, %v1822
    %v1824 = vpop.f32.mrb[0].mxu0
    %1825 = vmatprep.mubr.f32.mxu0 0.0
    %1826 = vmatmul.mubr.f32.gmra.mrb[0].mxu0 %v1750
    %v1827 = vpop.f32.mrb[0].mxu0
    %v1828 = vadd.f32 %v107, %v1827
    %v1829 = vpop.f32.mrb[0].mxu0
    %1830 = vdwg.mxu0
    %v1831 = vsel %vm289, %v1823, -inf
    %1832 = vmax.xlane.f32.xlu0 %v1831
    %v1833 = vpop.xlane.xlu0 %1832
    %v1834 = vsel %vm289, %v1828, -inf
    %1835 = vmax.xlane.f32.xlu0 %v1834
    %v1836 = vpop.xlane.xlu0 %1835
    %v1837 = vsub.f32 %v1823, %v1833
    %v1838 = vsub.f32 %v1828, %v1836
    %v1839 = vmul.f32 %v1837, 1.442695
    %v1840 = vpow.pop %v1839
    %v1841 = vmul.f32 %v1838, 1.442695
    %v1842 = vpow.pop %v1841
    %v1843 = vsel %vm289, %v1840, 0.0
    %1844 = vadd.xlane.f32.xlu0 %v1843
    %v1845 = vpop.xlane.xlu0 %1844
    %v1846 = vsel %vm289, %v1842, 0.0
    %1847 = vadd.xlane.f32.xlu0 %v1846
    %v1848 = vpop.xlane.xlu0 %1847
    %v1849 = vrcp.pop %v1845
    %v1850 = vrcp.pop %v1848
    %v1851 = vmul.f32 %v1840, %v1849
    %v1852 = vmul.f32 %v1842, %v1850
    %1853 = vrot.lane.b32.xlu0 %v1531, 88
    %v1854 = vpop.permute.xlu0 %1853
    %1855 = vrot.lane.b32.xlu0 %v1536, 88
    %v1856 = vpop.permute.xlu0 %1855
    %v1860 = vsel %vm289, %v1851, 0
    %v1863 = vsel %vm289, %v1852, 0
    %1865 = vmatprep.subr.mxu0 0.0
    %1866 = vmatpush1.msra.mxu0 %v1854
    %1867 = vmatprep.subr.mxu0 0.0
    %1868 = vmatpush1.msra.mxu0 %v1856
    %1869 = vmatprep.subr.mxu0 0.0
    %1870 = vmatpush1.msra.mxu0 0.0
    %1871 = vmatprep.subr.mxu0 0.0
    %1872 = vmatpush1.msra.mxu0 0.0
    %1873 = vmatprep.subr.mxu0 0.0
    %1874 = vmatpush1.msra.mxu0 0.0
    %1875 = vmatprep.subr.mxu0 0.0
    %1876 = vmatpush1.msra.mxu0 0.0
    %1877 = vmatprep.subr.mxu0 0.0
    %1878 = vmatpush1.msra.mxu0 0.0
    %1879 = vmatprep.subr.mxu0 0.0
    %1880 = vmatpush1.msra.mxu0 0.0
    %1881 = vmatprep.subr.mxu0 0.0
    %1882 = vmatpush1.msra.mxu0 0.0
    %1883 = vmatprep.subr.mxu0 0.0
    %1884 = vmatpush1.msra.mxu0 0.0
    %1885 = vmatprep.subr.mxu0 0.0
    %1886 = vmatpush1.msra.mxu0 0.0
    %1887 = vmatprep.subr.mxu0 0.0
    %1888 = vmatpush1.msra.mxu0 0.0
    %1889 = vmatprep.subr.mxu0 0.0
    %1890 = vmatpush1.msra.mxu0 0.0
    %1891 = vmatprep.subr.mxu0 0.0
    %1892 = vmatpush1.msra.mxu0 0.0
    %1893 = vmatprep.subr.mxu0 0.0
    %1894 = vmatpush1.msra.mxu0 0.0
    %1895 = vmatprep.subr.mxu0 0.0
    %1896 = vmatpush1.msra.mxu0 0.0
    %1897 = vmatprep.subr.mxu0 0.0
    %1898 = vmatpush1.msra.mxu0 0.0
    %1899 = vmatprep.subr.mxu0 0.0
    %1900 = vmatpush1.msra.mxu0 0.0
    %1901 = vmatprep.subr.mxu0 0.0
    %1902 = vmatpush1.msra.mxu0 0.0
    %1903 = vmatprep.subr.mxu0 0.0
    %1904 = vmatpush1.msra.mxu0 0.0
    %1905 = vmatprep.subr.mxu0 0.0
    %1906 = vmatpush1.msra.mxu0 0.0
    %1907 = vmatprep.subr.mxu0 0.0
    %1908 = vmatpush1.msra.mxu0 0.0
    %1909 = vmatprep.subr.mxu0 0.0
    %1910 = vmatpush1.msra.mxu0 0.0
    %1911 = vmatprep.subr.mxu0 0.0
    %1912 = vmatpush1.msra.mxu0 0.0
    %1913 = vmatprep.subr.mxu0 0.0
    %1914 = vmatpush1.msra.mxu0 0.0
    %1915 = vmatprep.subr.mxu0 0.0
    %1916 = vmatpush1.msra.mxu0 0.0
    %1917 = vmatprep.subr.mxu0 0.0
    %1918 = vmatpush1.msra.mxu0 0.0
    %1919 = vmatprep.subr.mxu0 0.0
    %1920 = vmatpush1.msra.mxu0 0.0
    %1921 = vmatprep.subr.mxu0 0.0
    %1922 = vmatpush1.msra.mxu0 0.0
    %1923 = vmatprep.subr.mxu0 0.0
    %1924 = vmatpush1.msra.mxu0 0.0
    %1925 = vmatprep.subr.mxu0 0.0
    %1926 = vmatpush1.msra.mxu0 0.0
    %1927 = vmatprep.subr.mxu0 0.0
    %1928 = vmatpush1.msra.mxu0 0.0
    %1929 = vmatprep.mubr.f32.mxu0 0.0
    %1930 = vmatmul.mubr.f32.gmra.mrb[0].mxu0 %v1860
    %v1931 = vpop.f32.mrb[0].mxu0
    %v1932 = vadd.f32 0.0, %v1931
    %v1933 = vpop.f32.mrb[0].mxu0
    %1934 = vmatprep.mubr.f32.mxu0 0.0
    %1935 = vmatmul.mubr.f32.gmra.mrb[0].mxu0 %v1863
    %v1936 = vpop.f32.mrb[0].mxu0
    %v1937 = vadd.f32 0.0, %v1936
    %v1938 = vpop.f32.mrb[0].mxu0
    %1939 = vdwg.mxu0
    %v1941 = vsel %vm205, %v1932, 0
    %v1944 = vsel %vm205, %v1937, 0
    %1946 = vmatprep.subr.mxu0 0.0
    %1947 = vmatpush1.msra.mxu0 %v1541
    %1948 = vmatprep.subr.mxu0 0.0
    %1949 = vmatpush1.msra.mxu0 0.0
    %1950 = vmatprep.subr.mxu0 0.0
    %1951 = vmatpush1.msra.mxu0 0.0
    %1952 = vmatprep.subr.mxu0 0.0
    %1953 = vmatpush1.msra.mxu0 0.0
    %1954 = vmatprep.subr.mxu0 0.0
    %1955 = vmatpush1.msra.mxu0 0.0
    %1956 = vmatprep.subr.mxu0 0.0
    %1957 = vmatpush1.msra.mxu0 0.0
    %1958 = vmatprep.subr.mxu0 0.0
    %1959 = vmatpush1.msra.mxu0 0.0
    %1960 = vmatprep.subr.mxu0 0.0
    %1961 = vmatpush1.msra.mxu0 0.0
    %1962 = vmatprep.subr.mxu0 0.0
    %1963 = vmatpush1.msra.mxu0 0.0
    %1964 = vmatprep.subr.mxu0 0.0
    %1965 = vmatpush1.msra.mxu0 0.0
    %1966 = vmatprep.subr.mxu0 0.0
    %1967 = vmatpush1.msra.mxu0 0.0
    %1968 = vmatprep.subr.mxu0 0.0
    %1969 = vmatpush1.msra.mxu0 0.0
    %1970 = vmatprep.subr.mxu0 0.0
    %1971 = vmatpush1.msra.mxu0 0.0
    %1972 = vmatprep.subr.mxu0 0.0
    %1973 = vmatpush1.msra.mxu0 0.0
    %1974 = vmatprep.subr.mxu0 0.0
    %1975 = vmatpush1.msra.mxu0 0.0
    %1976 = vmatprep.subr.mxu0 0.0
    %1977 = vmatpush1.msra.mxu0 0.0
    %1978 = vmatprep.subr.mxu0 0.0
    %1979 = vmatpush1.msra.mxu0 0.0
    %1980 = vmatprep.subr.mxu0 0.0
    %1981 = vmatpush1.msra.mxu0 0.0
    %1982 = vmatprep.subr.mxu0 0.0
    %1983 = vmatpush1.msra.mxu0 0.0
    %1984 = vmatprep.subr.mxu0 0.0
    %1985 = vmatpush1.msra.mxu0 0.0
    %1986 = vmatprep.subr.mxu0 0.0
    %1987 = vmatpush1.msra.mxu0 0.0
    %1988 = vmatprep.subr.mxu0 0.0
    %1989 = vmatpush1.msra.mxu0 0.0
    %1990 = vmatprep.subr.mxu0 0.0
    %1991 = vmatpush1.msra.mxu0 0.0
    %1992 = vmatprep.subr.mxu0 0.0
    %1993 = vmatpush1.msra.mxu0 0.0
    %1994 = vmatprep.subr.mxu0 0.0
    %1995 = vmatpush1.msra.mxu0 0.0
    %1996 = vmatprep.subr.mxu0 0.0
    %1997 = vmatpush1.msra.mxu0 0.0
    %1998 = vmatprep.subr.mxu0 0.0
    %1999 = vmatpush1.msra.mxu0 0.0
    %2000 = vmatprep.subr.mxu0 0.0
    %2001 = vmatpush1.msra.mxu0 0.0
    %2002 = vmatprep.subr.mxu0 0.0
    %2003 = vmatpush1.msra.mxu0 0.0
    %2004 = vmatprep.subr.mxu0 0.0
    %2005 = vmatpush1.msra.mxu0 0.0
    %2006 = vmatprep.subr.mxu0 0.0
    %2007 = vmatpush1.msra.mxu0 0.0
    %2008 = vmatprep.subr.mxu0 0.0
    %2009 = vmatpush1.msra.mxu0 0.0
    %2010 = vmatprep.mubr.f32.mxu0 0.0
    %2011 = vmatmul.mubr.f32.gmra.mrb[0].mxu0 %v1941
    %v2012 = vpop.f32.mrb[0].mxu0
    %v2013 = vadd.f32 0.0, %v2012
    %v2014 = vpop.f32.mrb[0].mxu0
    %2015 = vmatprep.mubr.f32.mxu0 0.0
    %2016 = vmatmul.mubr.f32.gmra.mrb[0].mxu0 %v1944
    %v2017 = vpop.f32.mrb[0].mxu0
    %v2018 = vadd.f32 0.0, %v2017
    %v2019 = vpop.f32.mrb[0].mxu0
    %2020 = vdwg.mxu0
    %v2022 = vsel %vm205, %v1732, 0
    %v2025 = vsel %vm205, %v1737, 0
    %2027 = vmatprep.subr.mxu0 0.0
    %2028 = vmatpush1.msra.mxu0 %v1540
    %2029 = vmatprep.subr.mxu0 0.0
    %2030 = vmatpush1.msra.mxu0 0.0
    %2031 = vmatprep.subr.mxu0 0.0
    %2032 = vmatpush1.msra.mxu0 0.0
    %2033 = vmatprep.subr.mxu0 0.0
    %2034 = vmatpush1.msra.mxu0 0.0
    %2035 = vmatprep.subr.mxu0 0.0
    %2036 = vmatpush1.msra.mxu0 0.0
    %2037 = vmatprep.subr.mxu0 0.0
    %2038 = vmatpush1.msra.mxu0 0.0
    %2039 = vmatprep.subr.mxu0 0.0
    %2040 = vmatpush1.msra.mxu0 0.0
    %2041 = vmatprep.subr.mxu0 0.0
    %2042 = vmatpush1.msra.mxu0 0.0
    %2043 = vmatprep.subr.mxu0 0.0
    %2044 = vmatpush1.msra.mxu0 0.0
    %2045 = vmatprep.subr.mxu0 0.0
    %2046 = vmatpush1.msra.mxu0 0.0
    %2047 = vmatprep.subr.mxu0 0.0
    %2048 = vmatpush1.msra.mxu0 0.0
    %2049 = vmatprep.subr.mxu0 0.0
    %2050 = vmatpush1.msra.mxu0 0.0
    %2051 = vmatprep.subr.mxu0 0.0
    %2052 = vmatpush1.msra.mxu0 0.0
    %2053 = vmatprep.subr.mxu0 0.0
    %2054 = vmatpush1.msra.mxu0 0.0
    %2055 = vmatprep.subr.mxu0 0.0
    %2056 = vmatpush1.msra.mxu0 0.0
    %2057 = vmatprep.subr.mxu0 0.0
    %2058 = vmatpush1.msra.mxu0 0.0
    %2059 = vmatprep.subr.mxu0 0.0
    %2060 = vmatpush1.msra.mxu0 0.0
    %2061 = vmatprep.subr.mxu0 0.0
    %2062 = vmatpush1.msra.mxu0 0.0
    %2063 = vmatprep.subr.mxu0 0.0
    %2064 = vmatpush1.msra.mxu0 0.0
    %2065 = vmatprep.subr.mxu0 0.0
    %2066 = vmatpush1.msra.mxu0 0.0
    %2067 = vmatprep.subr.mxu0 0.0
    %2068 = vmatpush1.msra.mxu0 0.0
    %2069 = vmatprep.subr.mxu0 0.0
    %2070 = vmatpush1.msra.mxu0 0.0
    %2071 = vmatprep.subr.mxu0 0.0
    %2072 = vmatpush1.msra.mxu0 0.0
    %2073 = vmatprep.subr.mxu0 0.0
    %2074 = vmatpush1.msra.mxu0 0.0
    %2075 = vmatprep.subr.mxu0 0.0
    %2076 = vmatpush1.msra.mxu0 0.0
    %2077 = vmatprep.subr.mxu0 0.0
    %2078 = vmatpush1.msra.mxu0 0.0
    %2079 = vmatprep.subr.mxu0 0.0
    %2080 = vmatpush1.msra.mxu0 0.0
    %2081 = vmatprep.subr.mxu0 0.0
    %2082 = vmatpush1.msra.mxu0 0.0
    %2083 = vmatprep.subr.mxu0 0.0
    %2084 = vmatpush1.msra.mxu0 0.0
    %2085 = vmatprep.subr.mxu0 0.0
    %2086 = vmatpush1.msra.mxu0 0.0
    %2087 = vmatprep.subr.mxu0 0.0
    %2088 = vmatpush1.msra.mxu0 0.0
    %2089 = vmatprep.subr.mxu0 0.0
    %2090 = vmatpush1.msra.mxu0 0.0
    %2091 = vmatprep.mubr.f32.mxu0 0.0
    %2092 = vmatmul.mubr.f32.gmra.mrb[0].mxu0 %v2022
    %v2093 = vpop.f32.mrb[0].mxu0
    %v2094 = vadd.f32 %v2013, %v2093
    %v2095 = vpop.f32.mrb[0].mxu0
    %2096 = vmatprep.mubr.f32.mxu0 0.0
    %2097 = vmatmul.mubr.f32.gmra.mrb[0].mxu0 %v2025
    %v2098 = vpop.f32.mrb[0].mxu0
    %v2099 = vadd.f32 %v2018, %v2098
    %v2100 = vpop.f32.mrb[0].mxu0
    %2101 = vdwg.mxu0
    %2102 = vrot.lane.b32.xlu0 %v1446, 112
    %v2103 = vpop.permute.xlu0 %2102
    %2104 = vrot.lane.b32.xlu0 %v1451, 112
    %v2105 = vpop.permute.xlu0 %2104
    %2106 = vrot.lane.b32.xlu0 %v1531, 112
    %v2107 = vpop.permute.xlu0 %2106
    %2108 = vrot.lane.b32.xlu0 %v1536, 112
    %v2109 = vpop.permute.xlu0 %2108
    %v2110 = vsel %vm205, %v2103, 0
    %v2112 = vsel %vm205, %v2105, 0
    %v2114 = vsel %vm205, %v2107, 0
    %v2116 = vsel %vm205, %v2109, 0
    %2118 = vmatprep.subr.mxu0 0.0
    %2119 = vmatpush1.xpose.msra.mxu0 %v2114
    %2120 = vmatprep.subr.mxu0 0.0
    %2121 = vmatpush1.xpose.msra.mxu0 %v2116
    %2122 = vmatprep.subr.mxu0 0.0
    %2123 = vmatpush1.xpose.msra.mxu0 0.0
    %2124 = vmatprep.subr.mxu0 0.0
    %2125 = vmatpush1.xpose.msra.mxu0 0.0
    %2126 = vmatprep.subr.mxu0 0.0
    %2127 = vmatpush1.xpose.msra.mxu0 0.0
    %2128 = vmatprep.subr.mxu0 0.0
    %2129 = vmatpush1.xpose.msra.mxu0 0.0
    %2130 = vmatprep.subr.mxu0 0.0
    %2131 = vmatpush1.xpose.msra.mxu0 0.0
    %2132 = vmatprep.subr.mxu0 0.0
    %2133 = vmatpush1.xpose.msra.mxu0 0.0
    %2134 = vmatprep.subr.mxu0 0.0
    %2135 = vmatpush1.xpose.msra.mxu0 0.0
    %2136 = vmatprep.subr.mxu0 0.0
    %2137 = vmatpush1.xpose.msra.mxu0 0.0
    %2138 = vmatprep.subr.mxu0 0.0
    %2139 = vmatpush1.xpose.msra.mxu0 0.0
    %2140 = vmatprep.subr.mxu0 0.0
    %2141 = vmatpush1.xpose.msra.mxu0 0.0
    %2142 = vmatprep.subr.mxu0 0.0
    %2143 = vmatpush1.xpose.msra.mxu0 0.0
    %2144 = vmatprep.subr.mxu0 0.0
    %2145 = vmatpush1.xpose.msra.mxu0 0.0
    %2146 = vmatprep.subr.mxu0 0.0
    %2147 = vmatpush1.xpose.msra.mxu0 0.0
    %2148 = vmatprep.subr.mxu0 0.0
    %2149 = vmatpush1.xpose.msra.mxu0 0.0
    %2150 = vmatprep.subr.mxu0 0.0
    %2151 = vmatpush1.xpose.msra.mxu0 0.0
    %2152 = vmatprep.subr.mxu0 0.0
    %2153 = vmatpush1.xpose.msra.mxu0 0.0
    %2154 = vmatprep.subr.mxu0 0.0
    %2155 = vmatpush1.xpose.msra.mxu0 0.0
    %2156 = vmatprep.subr.mxu0 0.0
    %2157 = vmatpush1.xpose.msra.mxu0 0.0
    %2158 = vmatprep.subr.mxu0 0.0
    %2159 = vmatpush1.xpose.msra.mxu0 0.0
    %2160 = vmatprep.subr.mxu0 0.0
    %2161 = vmatpush1.xpose.msra.mxu0 0.0
    %2162 = vmatprep.subr.mxu0 0.0
    %2163 = vmatpush1.xpose.msra.mxu0 0.0
    %2164 = vmatprep.subr.mxu0 0.0
    %2165 = vmatpush1.xpose.msra.mxu0 0.0
    %2166 = vmatprep.subr.mxu0 0.0
    %2167 = vmatpush1.xpose.msra.mxu0 0.0
    %2168 = vmatprep.subr.mxu0 0.0
    %2169 = vmatpush1.xpose.msra.mxu0 0.0
    %2170 = vmatprep.subr.mxu0 0.0
    %2171 = vmatpush1.xpose.msra.mxu0 0.0
    %2172 = vmatprep.subr.mxu0 0.0
    %2173 = vmatpush1.xpose.msra.mxu0 0.0
    %2174 = vmatprep.subr.mxu0 0.0
    %2175 = vmatpush1.xpose.msra.mxu0 0.0
    %2176 = vmatprep.subr.mxu0 0.0
    %2177 = vmatpush1.xpose.msra.mxu0 0.0
    %2178 = vmatprep.subr.mxu0 0.0
    %2179 = vmatpush1.xpose.msra.mxu0 0.0
    %2180 = vmatprep.subr.mxu0 0.0
    %2181 = vmatpush1.xpose.msra.mxu0 0.0
    %2182 = vmatprep.mubr.f32.mxu0 0.0
    %2183 = vmatmul.mubr.f32.gmra.mrb[0].mxu0 %v2110
    %v2184 = vpop.f32.mrb[0].mxu0
    %v2185 = vadd.f32 %v106, %v2184
    %v2186 = vpop.f32.mrb[0].mxu0
    %2187 = vmatprep.mubr.f32.mxu0 0.0
    %2188 = vmatmul.mubr.f32.gmra.mrb[0].mxu0 %v2112
    %v2189 = vpop.f32.mrb[0].mxu0
    %v2190 = vadd.f32 %v107, %v2189
    %v2191 = vpop.f32.mrb[0].mxu0
    %2192 = vdwg.mxu0
    %v2193 = vsel %vm289, %v2185, -inf
    %2194 = vmax.xlane.f32.xlu0 %v2193
    %v2195 = vpop.xlane.xlu0 %2194
    %v2196 = vsel %vm289, %v2190, -inf
    %2197 = vmax.xlane.f32.xlu0 %v2196
    %v2198 = vpop.xlane.xlu0 %2197
    %v2199 = vsub.f32 %v2185, %v2195
    %v2200 = vsub.f32 %v2190, %v2198
    %v2201 = vmul.f32 %v2199, 1.442695
    %v2202 = vpow.pop %v2201
    %v2203 = vmul.f32 %v2200, 1.442695
    %v2204 = vpow.pop %v2203
    %v2205 = vsel %vm289, %v2202, 0.0
    %2206 = vadd.xlane.f32.xlu0 %v2205
    %v2207 = vpop.xlane.xlu0 %2206
    %v2208 = vsel %vm289, %v2204, 0.0
    %2209 = vadd.xlane.f32.xlu0 %v2208
    %v2210 = vpop.xlane.xlu0 %2209
    %v2211 = vrcp.pop %v2207
    %v2212 = vrcp.pop %v2210
    %v2213 = vmul.f32 %v2202, %v2211
    %v2214 = vmul.f32 %v2204, %v2212
    %2215 = vrot.lane.b32.xlu0 %v1531, 80
    %v2216 = vpop.permute.xlu0 %2215
    %2217 = vrot.lane.b32.xlu0 %v1536, 80
    %v2218 = vpop.permute.xlu0 %2217
    %v2222 = vsel %vm289, %v2213, 0
    %v2225 = vsel %vm289, %v2214, 0
    %2227 = vmatprep.subr.mxu0 0.0
    %2228 = vmatpush1.msra.mxu0 %v2216
    %2229 = vmatprep.subr.mxu0 0.0
    %2230 = vmatpush1.msra.mxu0 %v2218
    %2231 = vmatprep.subr.mxu0 0.0
    %2232 = vmatpush1.msra.mxu0 0.0
    %2233 = vmatprep.subr.mxu0 0.0
    %2234 = vmatpush1.msra.mxu0 0.0
    %2235 = vmatprep.subr.mxu0 0.0
    %2236 = vmatpush1.msra.mxu0 0.0
    %2237 = vmatprep.subr.mxu0 0.0
    %2238 = vmatpush1.msra.mxu0 0.0
    %2239 = vmatprep.subr.mxu0 0.0
    %2240 = vmatpush1.msra.mxu0 0.0
    %2241 = vmatprep.subr.mxu0 0.0
    %2242 = vmatpush1.msra.mxu0 0.0
    %2243 = vmatprep.subr.mxu0 0.0
    %2244 = vmatpush1.msra.mxu0 0.0
    %2245 = vmatprep.subr.mxu0 0.0
    %2246 = vmatpush1.msra.mxu0 0.0
    %2247 = vmatprep.subr.mxu0 0.0
    %2248 = vmatpush1.msra.mxu0 0.0
    %2249 = vmatprep.subr.mxu0 0.0
    %2250 = vmatpush1.msra.mxu0 0.0
    %2251 = vmatprep.subr.mxu0 0.0
    %2252 = vmatpush1.msra.mxu0 0.0
    %2253 = vmatprep.subr.mxu0 0.0
    %2254 = vmatpush1.msra.mxu0 0.0
    %2255 = vmatprep.subr.mxu0 0.0
    %2256 = vmatpush1.msra.mxu0 0.0
    %2257 = vmatprep.subr.mxu0 0.0
    %2258 = vmatpush1.msra.mxu0 0.0
    %2259 = vmatprep.subr.mxu0 0.0
    %2260 = vmatpush1.msra.mxu0 0.0
    %2261 = vmatprep.subr.mxu0 0.0
    %2262 = vmatpush1.msra.mxu0 0.0
    %2263 = vmatprep.subr.mxu0 0.0
    %2264 = vmatpush1.msra.mxu0 0.0
    %2265 = vmatprep.subr.mxu0 0.0
    %2266 = vmatpush1.msra.mxu0 0.0
    %2267 = vmatprep.subr.mxu0 0.0
    %2268 = vmatpush1.msra.mxu0 0.0
    %2269 = vmatprep.subr.mxu0 0.0
    %2270 = vmatpush1.msra.mxu0 0.0
    %2271 = vmatprep.subr.mxu0 0.0
    %2272 = vmatpush1.msra.mxu0 0.0
    %2273 = vmatprep.subr.mxu0 0.0
    %2274 = vmatpush1.msra.mxu0 0.0
    %2275 = vmatprep.subr.mxu0 0.0
    %2276 = vmatpush1.msra.mxu0 0.0
    %2277 = vmatprep.subr.mxu0 0.0
    %2278 = vmatpush1.msra.mxu0 0.0
    %2279 = vmatprep.subr.mxu0 0.0
    %2280 = vmatpush1.msra.mxu0 0.0
    %2281 = vmatprep.subr.mxu0 0.0
    %2282 = vmatpush1.msra.mxu0 0.0
    %2283 = vmatprep.subr.mxu0 0.0
    %2284 = vmatpush1.msra.mxu0 0.0
    %2285 = vmatprep.subr.mxu0 0.0
    %2286 = vmatpush1.msra.mxu0 0.0
    %2287 = vmatprep.subr.mxu0 0.0
    %2288 = vmatpush1.msra.mxu0 0.0
    %2289 = vmatprep.subr.mxu0 0.0
    %2290 = vmatpush1.msra.mxu0 0.0
    %2291 = vmatprep.mubr.f32.mxu0 0.0
    %2292 = vmatmul.mubr.f32.gmra.mrb[0].mxu0 %v2222
    %v2293 = vpop.f32.mrb[0].mxu0
    %v2294 = vadd.f32 0.0, %v2293
    %v2295 = vpop.f32.mrb[0].mxu0
    %2296 = vmatprep.mubr.f32.mxu0 0.0
    %2297 = vmatmul.mubr.f32.gmra.mrb[0].mxu0 %v2225
    %v2298 = vpop.f32.mrb[0].mxu0
    %v2299 = vadd.f32 0.0, %v2298
    %v2300 = vpop.f32.mrb[0].mxu0
    %2301 = vdwg.mxu0
    %v2303 = vsel %vm205, %v2294, 0
    %v2306 = vsel %vm205, %v2299, 0
    %2308 = vmatprep.subr.mxu0 0.0
    %2309 = vmatpush1.msra.mxu0 %v1542
    %2310 = vmatprep.subr.mxu0 0.0
    %2311 = vmatpush1.msra.mxu0 0.0
    %2312 = vmatprep.subr.mxu0 0.0
    %2313 = vmatpush1.msra.mxu0 0.0
    %2314 = vmatprep.subr.mxu0 0.0
    %2315 = vmatpush1.msra.mxu0 0.0
    %2316 = vmatprep.subr.mxu0 0.0
    %2317 = vmatpush1.msra.mxu0 0.0
    %2318 = vmatprep.subr.mxu0 0.0
    %2319 = vmatpush1.msra.mxu0 0.0
    %2320 = vmatprep.subr.mxu0 0.0
    %2321 = vmatpush1.msra.mxu0 0.0
    %2322 = vmatprep.subr.mxu0 0.0
    %2323 = vmatpush1.msra.mxu0 0.0
    %2324 = vmatprep.subr.mxu0 0.0
    %2325 = vmatpush1.msra.mxu0 0.0
    %2326 = vmatprep.subr.mxu0 0.0
    %2327 = vmatpush1.msra.mxu0 0.0
    %2328 = vmatprep.subr.mxu0 0.0
    %2329 = vmatpush1.msra.mxu0 0.0
    %2330 = vmatprep.subr.mxu0 0.0
    %2331 = vmatpush1.msra.mxu0 0.0
    %2332 = vmatprep.subr.mxu0 0.0
    %2333 = vmatpush1.msra.mxu0 0.0
    %2334 = vmatprep.subr.mxu0 0.0
    %2335 = vmatpush1.msra.mxu0 0.0
    %2336 = vmatprep.subr.mxu0 0.0
    %2337 = vmatpush1.msra.mxu0 0.0
    %2338 = vmatprep.subr.mxu0 0.0
    %2339 = vmatpush1.msra.mxu0 0.0
    %2340 = vmatprep.subr.mxu0 0.0
    %2341 = vmatpush1.msra.mxu0 0.0
    %2342 = vmatprep.subr.mxu0 0.0
    %2343 = vmatpush1.msra.mxu0 0.0
    %2344 = vmatprep.subr.mxu0 0.0
    %2345 = vmatpush1.msra.mxu0 0.0
    %2346 = vmatprep.subr.mxu0 0.0
    %2347 = vmatpush1.msra.mxu0 0.0
    %2348 = vmatprep.subr.mxu0 0.0
    %2349 = vmatpush1.msra.mxu0 0.0
    %2350 = vmatprep.subr.mxu0 0.0
    %2351 = vmatpush1.msra.mxu0 0.0
    %2352 = vmatprep.subr.mxu0 0.0
    %2353 = vmatpush1.msra.mxu0 0.0
    %2354 = vmatprep.subr.mxu0 0.0
    %2355 = vmatpush1.msra.mxu0 0.0
    %2356 = vmatprep.subr.mxu0 0.0
    %2357 = vmatpush1.msra.mxu0 0.0
    %2358 = vmatprep.subr.mxu0 0.0
    %2359 = vmatpush1.msra.mxu0 0.0
    %2360 = vmatprep.subr.mxu0 0.0
    %2361 = vmatpush1.msra.mxu0 0.0
    %2362 = vmatprep.subr.mxu0 0.0
    %2363 = vmatpush1.msra.mxu0 0.0
    %2364 = vmatprep.subr.mxu0 0.0
    %2365 = vmatpush1.msra.mxu0 0.0
    %2366 = vmatprep.subr.mxu0 0.0
    %2367 = vmatpush1.msra.mxu0 0.0
    %2368 = vmatprep.subr.mxu0 0.0
    %2369 = vmatpush1.msra.mxu0 0.0
    %2370 = vmatprep.subr.mxu0 0.0
    %2371 = vmatpush1.msra.mxu0 0.0
    %2372 = vmatprep.mubr.f32.mxu0 0.0
    %2373 = vmatmul.mubr.f32.gmra.mrb[0].mxu0 %v2303
    %v2374 = vpop.f32.mrb[0].mxu0
    %v2375 = vadd.f32 0.0, %v2374
    %v2376 = vpop.f32.mrb[0].mxu0
    %2377 = vmatprep.mubr.f32.mxu0 0.0
    %2378 = vmatmul.mubr.f32.gmra.mrb[0].mxu0 %v2306
    %v2379 = vpop.f32.mrb[0].mxu0
    %v2380 = vadd.f32 0.0, %v2379
    %v2381 = vpop.f32.mrb[0].mxu0
    %2382 = vdwg.mxu0
    %v2383 = vadd.f32 %v2094, %v2375
    %v2384 = vadd.f32 %v2099, %v2380
    %2385 = vrot.lane.b32.xlu0 %v1446, 104
    %v2386 = vpop.permute.xlu0 %2385
    %2387 = vrot.lane.b32.xlu0 %v1451, 104
    %v2388 = vpop.permute.xlu0 %2387
    %2389 = vrot.lane.b32.xlu0 %v1531, 104
    %v2390 = vpop.permute.xlu0 %2389
    %2391 = vrot.lane.b32.xlu0 %v1536, 104
    %v2392 = vpop.permute.xlu0 %2391
    %v2393 = vsel %vm205, %v2386, 0
    %v2395 = vsel %vm205, %v2388, 0
    %v2397 = vsel %vm205, %v2390, 0
    %v2399 = vsel %vm205, %v2392, 0
    %2401 = vmatprep.subr.mxu0 0.0
    %2402 = vmatpush1.xpose.msra.mxu0 %v2397
    %2403 = vmatprep.subr.mxu0 0.0
    %2404 = vmatpush1.xpose.msra.mxu0 %v2399
    %2405 = vmatprep.subr.mxu0 0.0
    %2406 = vmatpush1.xpose.msra.mxu0 0.0
    %2407 = vmatprep.subr.mxu0 0.0
    %2408 = vmatpush1.xpose.msra.mxu0 0.0
    %2409 = vmatprep.subr.mxu0 0.0
    %2410 = vmatpush1.xpose.msra.mxu0 0.0
    %2411 = vmatprep.subr.mxu0 0.0
    %2412 = vmatpush1.xpose.msra.mxu0 0.0
    %2413 = vmatprep.subr.mxu0 0.0
    %2414 = vmatpush1.xpose.msra.mxu0 0.0
    %2415 = vmatprep.subr.mxu0 0.0
    %2416 = vmatpush1.xpose.msra.mxu0 0.0
    %2417 = vmatprep.subr.mxu0 0.0
    %2418 = vmatpush1.xpose.msra.mxu0 0.0
    %2419 = vmatprep.subr.mxu0 0.0
    %2420 = vmatpush1.xpose.msra.mxu0 0.0
    %2421 = vmatprep.subr.mxu0 0.0
    %2422 = vmatpush1.xpose.msra.mxu0 0.0
    %2423 = vmatprep.subr.mxu0 0.0
    %2424 = vmatpush1.xpose.msra.mxu0 0.0
    %2425 = vmatprep.subr.mxu0 0.0
    %2426 = vmatpush1.xpose.msra.mxu0 0.0
    %2427 = vmatprep.subr.mxu0 0.0
    %2428 = vmatpush1.xpose.msra.mxu0 0.0
    %2429 = vmatprep.subr.mxu0 0.0
    %2430 = vmatpush1.xpose.msra.mxu0 0.0
    %2431 = vmatprep.subr.mxu0 0.0
    %2432 = vmatpush1.xpose.msra.mxu0 0.0
    %2433 = vmatprep.subr.mxu0 0.0
    %2434 = vmatpush1.xpose.msra.mxu0 0.0
    %2435 = vmatprep.subr.mxu0 0.0
    %2436 = vmatpush1.xpose.msra.mxu0 0.0
    %2437 = vmatprep.subr.mxu0 0.0
    %2438 = vmatpush1.xpose.msra.mxu0 0.0
    %2439 = vmatprep.subr.mxu0 0.0
    %2440 = vmatpush1.xpose.msra.mxu0 0.0
    %2441 = vmatprep.subr.mxu0 0.0
    %2442 = vmatpush1.xpose.msra.mxu0 0.0
    %2443 = vmatprep.subr.mxu0 0.0
    %2444 = vmatpush1.xpose.msra.mxu0 0.0
    %2445 = vmatprep.subr.mxu0 0.0
    %2446 = vmatpush1.xpose.msra.mxu0 0.0
    %2447 = vmatprep.subr.mxu0 0.0
    %2448 = vmatpush1.xpose.msra.mxu0 0.0
    %2449 = vmatprep.subr.mxu0 0.0
    %2450 = vmatpush1.xpose.msra.mxu0 0.0
    %2451 = vmatprep.subr.mxu0 0.0
    %2452 = vmatpush1.xpose.msra.mxu0 0.0
    %2453 = vmatprep.subr.mxu0 0.0
    %2454 = vmatpush1.xpose.msra.mxu0 0.0
    %2455 = vmatprep.subr.mxu0 0.0
    %2456 = vmatpush1.xpose.msra.mxu0 0.0
    %2457 = vmatprep.subr.mxu0 0.0
    %2458 = vmatpush1.xpose.msra.mxu0 0.0
    %2459 = vmatprep.subr.mxu0 0.0
    %2460 = vmatpush1.xpose.msra.mxu0 0.0
    %2461 = vmatprep.subr.mxu0 0.0
    %2462 = vmatpush1.xpose.msra.mxu0 0.0
    %2463 = vmatprep.subr.mxu0 0.0
    %2464 = vmatpush1.xpose.msra.mxu0 0.0
    %2465 = vmatprep.mubr.f32.mxu0 0.0
    %2466 = vmatmul.mubr.f32.gmra.mrb[0].mxu0 %v2393
    %v2467 = vpop.f32.mrb[0].mxu0
    %v2468 = vadd.f32 %v106, %v2467
    %v2469 = vpop.f32.mrb[0].mxu0
    %2470 = vmatprep.mubr.f32.mxu0 0.0
    %2471 = vmatmul.mubr.f32.gmra.mrb[0].mxu0 %v2395
    %v2472 = vpop.f32.mrb[0].mxu0
    %v2473 = vadd.f32 %v107, %v2472
    %v2474 = vpop.f32.mrb[0].mxu0
    %2475 = vdwg.mxu0
    %v2476 = vsel %vm289, %v2468, -inf
    %2477 = vmax.xlane.f32.xlu0 %v2476
    %v2478 = vpop.xlane.xlu0 %2477
    %v2479 = vsel %vm289, %v2473, -inf
    %2480 = vmax.xlane.f32.xlu0 %v2479
    %v2481 = vpop.xlane.xlu0 %2480
    %v2482 = vsub.f32 %v2468, %v2478
    %v2483 = vsub.f32 %v2473, %v2481
    %v2484 = vmul.f32 %v2482, 1.442695
    %v2485 = vpow.pop %v2484
    %v2486 = vmul.f32 %v2483, 1.442695
    %v2487 = vpow.pop %v2486
    %v2488 = vsel %vm289, %v2485, 0.0
    %2489 = vadd.xlane.f32.xlu0 %v2488
    %v2490 = vpop.xlane.xlu0 %2489
    %v2491 = vsel %vm289, %v2487, 0.0
    %2492 = vadd.xlane.f32.xlu0 %v2491
    %v2493 = vpop.xlane.xlu0 %2492
    %v2494 = vrcp.pop %v2490
    %v2495 = vrcp.pop %v2493
    %v2496 = vmul.f32 %v2485, %v2494
    %v2497 = vmul.f32 %v2487, %v2495
    %2498 = vrot.lane.b32.xlu0 %v1531, 72
    %v2499 = vpop.permute.xlu0 %2498
    %2500 = vrot.lane.b32.xlu0 %v1536, 72
    %v2501 = vpop.permute.xlu0 %2500
    %v2505 = vsel %vm289, %v2496, 0
    %v2508 = vsel %vm289, %v2497, 0
    %2510 = vmatprep.subr.mxu0 0.0
    %2511 = vmatpush1.msra.mxu0 %v2499
    %2512 = vmatprep.subr.mxu0 0.0
    %2513 = vmatpush1.msra.mxu0 %v2501
    %2514 = vmatprep.subr.mxu0 0.0
    %2515 = vmatpush1.msra.mxu0 0.0
    %2516 = vmatprep.subr.mxu0 0.0
    %2517 = vmatpush1.msra.mxu0 0.0
    %2518 = vmatprep.subr.mxu0 0.0
    %2519 = vmatpush1.msra.mxu0 0.0
    %2520 = vmatprep.subr.mxu0 0.0
    %2521 = vmatpush1.msra.mxu0 0.0
    %2522 = vmatprep.subr.mxu0 0.0
    %2523 = vmatpush1.msra.mxu0 0.0
    %2524 = vmatprep.subr.mxu0 0.0
    %2525 = vmatpush1.msra.mxu0 0.0
    %2526 = vmatprep.subr.mxu0 0.0
    %2527 = vmatpush1.msra.mxu0 0.0
    %2528 = vmatprep.subr.mxu0 0.0
    %2529 = vmatpush1.msra.mxu0 0.0
    %2530 = vmatprep.subr.mxu0 0.0
    %2531 = vmatpush1.msra.mxu0 0.0
    %2532 = vmatprep.subr.mxu0 0.0
    %2533 = vmatpush1.msra.mxu0 0.0
    %2534 = vmatprep.subr.mxu0 0.0
    %2535 = vmatpush1.msra.mxu0 0.0
    %2536 = vmatprep.subr.mxu0 0.0
    %2537 = vmatpush1.msra.mxu0 0.0
    %2538 = vmatprep.subr.mxu0 0.0
    %2539 = vmatpush1.msra.mxu0 0.0
    %2540 = vmatprep.subr.mxu0 0.0
    %2541 = vmatpush1.msra.mxu0 0.0
    %2542 = vmatprep.subr.mxu0 0.0
    %2543 = vmatpush1.msra.mxu0 0.0
    %2544 = vmatprep.subr.mxu0 0.0
    %2545 = vmatpush1.msra.mxu0 0.0
    %2546 = vmatprep.subr.mxu0 0.0
    %2547 = vmatpush1.msra.mxu0 0.0
    %2548 = vmatprep.subr.mxu0 0.0
    %2549 = vmatpush1.msra.mxu0 0.0
    %2550 = vmatprep.subr.mxu0 0.0
    %2551 = vmatpush1.msra.mxu0 0.0
    %2552 = vmatprep.subr.mxu0 0.0
    %2553 = vmatpush1.msra.mxu0 0.0
    %2554 = vmatprep.subr.mxu0 0.0
    %2555 = vmatpush1.msra.mxu0 0.0
    %2556 = vmatprep.subr.mxu0 0.0
    %2557 = vmatpush1.msra.mxu0 0.0
    %2558 = vmatprep.subr.mxu0 0.0
    %2559 = vmatpush1.msra.mxu0 0.0
    %2560 = vmatprep.subr.mxu0 0.0
    %2561 = vmatpush1.msra.mxu0 0.0
    %2562 = vmatprep.subr.mxu0 0.0
    %2563 = vmatpush1.msra.mxu0 0.0
    %2564 = vmatprep.subr.mxu0 0.0
    %2565 = vmatpush1.msra.mxu0 0.0
    %2566 = vmatprep.subr.mxu0 0.0
    %2567 = vmatpush1.msra.mxu0 0.0
    %2568 = vmatprep.subr.mxu0 0.0
    %2569 = vmatpush1.msra.mxu0 0.0
    %2570 = vmatprep.subr.mxu0 0.0
    %2571 = vmatpush1.msra.mxu0 0.0
    %2572 = vmatprep.subr.mxu0 0.0
    %2573 = vmatpush1.msra.mxu0 0.0
    %2574 = vmatprep.mubr.f32.mxu0 0.0
    %2575 = vmatmul.mubr.f32.gmra.mrb[0].mxu0 %v2505
    %v2576 = vpop.f32.mrb[0].mxu0
    %v2577 = vadd.f32 0.0, %v2576
    %v2578 = vpop.f32.mrb[0].mxu0
    %2579 = vmatprep.mubr.f32.mxu0 0.0
    %2580 = vmatmul.mubr.f32.gmra.mrb[0].mxu0 %v2508
    %v2581 = vpop.f32.mrb[0].mxu0
    %v2582 = vadd.f32 0.0, %v2581
    %v2583 = vpop.f32.mrb[0].mxu0
    %2584 = vdwg.mxu0
    %v2586 = vsel %vm205, %v2577, 0
    %v2589 = vsel %vm205, %v2582, 0
    %2591 = vmatprep.subr.mxu0 0.0
    %2592 = vmatpush1.msra.mxu0 %v1543
    %2593 = vmatprep.subr.mxu0 0.0
    %2594 = vmatpush1.msra.mxu0 0.0
    %2595 = vmatprep.subr.mxu0 0.0
    %2596 = vmatpush1.msra.mxu0 0.0
    %2597 = vmatprep.subr.mxu0 0.0
    %2598 = vmatpush1.msra.mxu0 0.0
    %2599 = vmatprep.subr.mxu0 0.0
    %2600 = vmatpush1.msra.mxu0 0.0
    %2601 = vmatprep.subr.mxu0 0.0
    %2602 = vmatpush1.msra.mxu0 0.0
    %2603 = vmatprep.subr.mxu0 0.0
    %2604 = vmatpush1.msra.mxu0 0.0
    %2605 = vmatprep.subr.mxu0 0.0
    %2606 = vmatpush1.msra.mxu0 0.0
    %2607 = vmatprep.subr.mxu0 0.0
    %2608 = vmatpush1.msra.mxu0 0.0
    %2609 = vmatprep.subr.mxu0 0.0
    %2610 = vmatpush1.msra.mxu0 0.0
    %2611 = vmatprep.subr.mxu0 0.0
    %2612 = vmatpush1.msra.mxu0 0.0
    %2613 = vmatprep.subr.mxu0 0.0
    %2614 = vmatpush1.msra.mxu0 0.0
    %2615 = vmatprep.subr.mxu0 0.0
    %2616 = vmatpush1.msra.mxu0 0.0
    %2617 = vmatprep.subr.mxu0 0.0
    %2618 = vmatpush1.msra.mxu0 0.0
    %2619 = vmatprep.subr.mxu0 0.0
    %2620 = vmatpush1.msra.mxu0 0.0
    %2621 = vmatprep.subr.mxu0 0.0
    %2622 = vmatpush1.msra.mxu0 0.0
    %2623 = vmatprep.subr.mxu0 0.0
    %2624 = vmatpush1.msra.mxu0 0.0
    %2625 = vmatprep.subr.mxu0 0.0
    %2626 = vmatpush1.msra.mxu0 0.0
    %2627 = vmatprep.subr.mxu0 0.0
    %2628 = vmatpush1.msra.mxu0 0.0
    %2629 = vmatprep.subr.mxu0 0.0
    %2630 = vmatpush1.msra.mxu0 0.0
    %2631 = vmatprep.subr.mxu0 0.0
    %2632 = vmatpush1.msra.mxu0 0.0
    %2633 = vmatprep.subr.mxu0 0.0
    %2634 = vmatpush1.msra.mxu0 0.0
    %2635 = vmatprep.subr.mxu0 0.0
    %2636 = vmatpush1.msra.mxu0 0.0
    %2637 = vmatprep.subr.mxu0 0.0
    %2638 = vmatpush1.msra.mxu0 0.0
    %2639 = vmatprep.subr.mxu0 0.0
    %2640 = vmatpush1.msra.mxu0 0.0
    %2641 = vmatprep.subr.mxu0 0.0
    %2642 = vmatpush1.msra.mxu0 0.0
    %2643 = vmatprep.subr.mxu0 0.0
    %2644 = vmatpush1.msra.mxu0 0.0
    %2645 = vmatprep.subr.mxu0 0.0
    %2646 = vmatpush1.msra.mxu0 0.0
    %2647 = vmatprep.subr.mxu0 0.0
    %2648 = vmatpush1.msra.mxu0 0.0
    %2649 = vmatprep.subr.mxu0 0.0
    %2650 = vmatpush1.msra.mxu0 0.0
    %2651 = vmatprep.subr.mxu0 0.0
    %2652 = vmatpush1.msra.mxu0 0.0
    %2653 = vmatprep.subr.mxu0 0.0
    %2654 = vmatpush1.msra.mxu0 0.0
    %2655 = vmatprep.mubr.f32.mxu0 0.0
    %2656 = vmatmul.mubr.f32.gmra.mrb[0].mxu0 %v2586
    %v2657 = vpop.f32.mrb[0].mxu0
    %v2658 = vadd.f32 0.0, %v2657
    %v2659 = vpop.f32.mrb[0].mxu0
    %2660 = vmatprep.mubr.f32.mxu0 0.0
    %2661 = vmatmul.mubr.f32.gmra.mrb[0].mxu0 %v2589
    %v2662 = vpop.f32.mrb[0].mxu0
    %v2663 = vadd.f32 0.0, %v2662
    %v2664 = vpop.f32.mrb[0].mxu0
    %2665 = vdwg.mxu0
    %v2666 = vadd.f32 %v2383, %v2658
    %v2667 = vadd.f32 %v2384, %v2663
    %v2668 = vadd.f32 %v1366, %v2666
    %v2669 = vadd.f32 %v1367, %v2667
    %v2670 = vsel %vm113, %v2668, 0.0
    %2671 = vadd.xlane.f32.xlu0 %v2670
    %v2672 = vpop.xlane.xlu0 %2671
    %v2673 = vsel %vm113, %v2669, 0.0
    %2674 = vadd.xlane.f32.xlu0 %v2673
    %v2675 = vpop.xlane.xlu0 %2674
    %v2676 = vmul.f32 %v2672, %v1335
    %v2677 = vmul.f32 %v2675, %v1335
    %v2678 = vsub.f32 %v2668, %v2676
    %v2679 = vsub.f32 %v2669, %v2677
    %v2680 = vmul.f32 %v2678, %v2678
    %v2681 = vmul.f32 %v2679, %v2679
    %v2682 = vsel %vm113, %v2680, 0.0
    %2683 = vadd.xlane.f32.xlu0 %v2682
    %v2684 = vpop.xlane.xlu0 %2683
    %v2685 = vsel %vm113, %v2681, 0.0
    %2686 = vadd.xlane.f32.xlu0 %v2685
    %v2687 = vpop.xlane.xlu0 %2686
    %v2688 = vmul.f32 %v2684, %v1335
    %v2689 = vmul.f32 %v2687, %v1335
    %v2690 = vadd.f32 %v2688, 1e-06
    %v2691 = vadd.f32 %v2689, 1e-06
    %v2692 = vrsqrt.pop %v2690
    %v2693 = vrsqrt.pop %v2691
    %v2694 = vmul.f32 %v2678, %v2692
    %v2695 = vmul.f32 %v2679, %v2693
    %v2696 = vlaneseq
    %v2697 = vshrl.u32 %v2696, 7
    %v2698 = vsub.s32 2, %v2697
    %v2699 = vrot.slane %v108, %v2698
    %v2700 = vmul.f32 %v2694, %v2699
    %v2701 = vmul.f32 %v2695, %v2699
    %v2702 = vlaneseq
    %v2703 = vshrl.u32 %v2702, 7
    %v2704 = vsub.s32 3, %v2703
    %v2705 = vrot.slane %v108, %v2704
    %v2706 = vadd.f32 %v2700, %v2705
    %v2707 = vadd.f32 %v2701, %v2705
    %v2708 = vld [vmem:[#allocation10] sm:$0xff]
    %v2709 = vld [vmem:[#allocation10 + $0x8] sm:$0xff]
    %v2710 = vld [vmem:[#allocation10 + $0x10] sm:$0xff]
    %v2711 = vld [vmem:[#allocation10 + $0x18] sm:$0xff]
    %v2712 = vld [vmem:[%s7] sm:$0x1]
    %v2714 = vlaneseq
    %v2715 = vshrl.u32 %v2714, 7
    %v2716 = vsub.s32 0, %v2715
    %v2717 = vrot.slane %v2712, %v2716
    %v2720 = vsel %vm113, %v2706, 0
    %v2723 = vsel %vm113, %v2707, 0
    %2725 = vmatprep.subr.mxu0 0.0
    %2726 = vmatpush1.msra.mxu0 %v2708
    %2727 = vmatprep.subr.mxu0 0.0
    %2728 = vmatpush1.msra.mxu0 %v2709
    %2729 = vmatprep.subr.mxu0 0.0
    %2730 = vmatpush1.msra.mxu0 %v2710
    %2731 = vmatprep.subr.mxu0 0.0
    %2732 = vmatpush1.msra.mxu0 %v2711
    %2733 = vmatprep.subr.mxu0 0.0
    %2734 = vmatpush1.msra.mxu0 0.0
    %2735 = vmatprep.subr.mxu0 0.0
    %2736 = vmatpush1.msra.mxu0 0.0
    %2737 = vmatprep.subr.mxu0 0.0
    %2738 = vmatpush1.msra.mxu0 0.0
    %2739 = vmatprep.subr.mxu0 0.0
    %2740 = vmatpush1.msra.mxu0 0.0
    %2741 = vmatprep.subr.mxu0 0.0
    %2742 = vmatpush1.msra.mxu0 0.0
    %2743 = vmatprep.subr.mxu0 0.0
    %2744 = vmatpush1.msra.mxu0 0.0
    %2745 = vmatprep.subr.mxu0 0.0
    %2746 = vmatpush1.msra.mxu0 0.0
    %2747 = vmatprep.subr.mxu0 0.0
    %2748 = vmatpush1.msra.mxu0 0.0
    %2749 = vmatprep.subr.mxu0 0.0
    %2750 = vmatpush1.msra.mxu0 0.0
    %2751 = vmatprep.subr.mxu0 0.0
    %2752 = vmatpush1.msra.mxu0 0.0
    %2753 = vmatprep.subr.mxu0 0.0
    %2754 = vmatpush1.msra.mxu0 0.0
    %2755 = vmatprep.subr.mxu0 0.0
    %2756 = vmatpush1.msra.mxu0 0.0
    %2757 = vmatprep.subr.mxu0 0.0
    %2758 = vmatpush1.msra.mxu0 0.0
    %2759 = vmatprep.subr.mxu0 0.0
    %2760 = vmatpush1.msra.mxu0 0.0
    %2761 = vmatprep.subr.mxu0 0.0
    %2762 = vmatpush1.msra.mxu0 0.0
    %2763 = vmatprep.subr.mxu0 0.0
    %2764 = vmatpush1.msra.mxu0 0.0
    %2765 = vmatprep.subr.mxu0 0.0
    %2766 = vmatpush1.msra.mxu0 0.0
    %2767 = vmatprep.subr.mxu0 0.0
    %2768 = vmatpush1.msra.mxu0 0.0
    %2769 = vmatprep.subr.mxu0 0.0
    %2770 = vmatpush1.msra.mxu0 0.0
    %2771 = vmatprep.subr.mxu0 0.0
    %2772 = vmatpush1.msra.mxu0 0.0
    %2773 = vmatprep.subr.mxu0 0.0
    %2774 = vmatpush1.msra.mxu0 0.0
    %2775 = vmatprep.subr.mxu0 0.0
    %2776 = vmatpush1.msra.mxu0 0.0
    %2777 = vmatprep.subr.mxu0 0.0
    %2778 = vmatpush1.msra.mxu0 0.0
    %2779 = vmatprep.subr.mxu0 0.0
    %2780 = vmatpush1.msra.mxu0 0.0
    %2781 = vmatprep.subr.mxu0 0.0
    %2782 = vmatpush1.msra.mxu0 0.0
    %2783 = vmatprep.subr.mxu0 0.0
    %2784 = vmatpush1.msra.mxu0 0.0
    %2785 = vmatprep.subr.mxu0 0.0
    %2786 = vmatpush1.msra.mxu0 0.0
    %2787 = vmatprep.subr.mxu0 0.0
    %2788 = vmatpush1.msra.mxu0 0.0
    %2789 = vmatprep.mubr.f32.mxu0 0.0
    %2790 = vmatmul.mubr.f32.gmra.mrb[0].mxu0 %v2720
    %v2791 = vpop.f32.mrb[0].mxu0
    %v2792 = vadd.f32 %v2717, %v2791
    %v2793 = vpop.f32.mrb[0].mxu0
    %2794 = vmatprep.mubr.f32.mxu0 0.0
    %2795 = vmatmul.mubr.f32.gmra.mrb[0].mxu0 %v2723
    %v2796 = vpop.f32.mrb[0].mxu0
    %v2797 = vadd.f32 %v2717, %v2796
    %v2798 = vpop.f32.mrb[0].mxu0
    %2799 = vdwg.mxu0
    %v2800 = vmax.f32 %v2792, 0.0
    %v2801 = vmax.f32 %v2797, 0.0
    %v2802 = vld [vmem:[%s6] sm:$0xff]
    %v2803 = vld [vmem:[%s6 + $0x8] sm:$0xff]
    %v2804 = vld [vmem:[%s6 + $0x10] sm:$0xff]
    %v2805 = vld [vmem:[%s6 + $0x18] sm:$0xff]
    %v2806 = vld [vmem:[%s6 + $0x20] sm:$0xff]
    %v2807 = vld [vmem:[%s6 + $0x28] sm:$0xff]
    %v2808 = vld [vmem:[%s6 + $0x30] sm:$0xff]
    %v2809 = vld [vmem:[%s6 + $0x38] sm:$0xff]
    %v2810 = vlaneseq
    %v2811 = vshrl.u32 %v2810, 7
    %v2812 = vsub.s32 6, %v2811
    %v2813 = vrot.slane %v108, %v2812
    %vm2814 = vcmask 523264
    %v2816 = vsel %vm2814, %v2800, 0
    %v2819 = vsel %vm2814, %v2801, 0
    %2821 = vmatprep.subr.mxu0 0.0
    %2822 = vmatpush1.msra.mxu0 %v2802
    %2823 = vmatprep.subr.mxu0 0.0
    %2824 = vmatpush1.msra.mxu0 %v2803
    %2825 = vmatprep.subr.mxu0 0.0
    %2826 = vmatpush1.msra.mxu0 %v2804
    %2827 = vmatprep.subr.mxu0 0.0
    %2828 = vmatpush1.msra.mxu0 %v2805
    %2829 = vmatprep.subr.mxu0 0.0
    %2830 = vmatpush1.msra.mxu0 %v2806
    %2831 = vmatprep.subr.mxu0 0.0
    %2832 = vmatpush1.msra.mxu0 %v2807
    %2833 = vmatprep.subr.mxu0 0.0
    %2834 = vmatpush1.msra.mxu0 %v2808
    %2835 = vmatprep.subr.mxu0 0.0
    %2836 = vmatpush1.msra.mxu0 %v2809
    %2837 = vmatprep.subr.mxu0 0.0
    %2838 = vmatpush1.msra.mxu0 0.0
    %2839 = vmatprep.subr.mxu0 0.0
    %2840 = vmatpush1.msra.mxu0 0.0
    %2841 = vmatprep.subr.mxu0 0.0
    %2842 = vmatpush1.msra.mxu0 0.0
    %2843 = vmatprep.subr.mxu0 0.0
    %2844 = vmatpush1.msra.mxu0 0.0
    %2845 = vmatprep.subr.mxu0 0.0
    %2846 = vmatpush1.msra.mxu0 0.0
    %2847 = vmatprep.subr.mxu0 0.0
    %2848 = vmatpush1.msra.mxu0 0.0
    %2849 = vmatprep.subr.mxu0 0.0
    %2850 = vmatpush1.msra.mxu0 0.0
    %2851 = vmatprep.subr.mxu0 0.0
    %2852 = vmatpush1.msra.mxu0 0.0
    %2853 = vmatprep.subr.mxu0 0.0
    %2854 = vmatpush1.msra.mxu0 0.0
    %2855 = vmatprep.subr.mxu0 0.0
    %2856 = vmatpush1.msra.mxu0 0.0
    %2857 = vmatprep.subr.mxu0 0.0
    %2858 = vmatpush1.msra.mxu0 0.0
    %2859 = vmatprep.subr.mxu0 0.0
    %2860 = vmatpush1.msra.mxu0 0.0
    %2861 = vmatprep.subr.mxu0 0.0
    %2862 = vmatpush1.msra.mxu0 0.0
    %2863 = vmatprep.subr.mxu0 0.0
    %2864 = vmatpush1.msra.mxu0 0.0
    %2865 = vmatprep.subr.mxu0 0.0
    %2866 = vmatpush1.msra.mxu0 0.0
    %2867 = vmatprep.subr.mxu0 0.0
    %2868 = vmatpush1.msra.mxu0 0.0
    %2869 = vmatprep.subr.mxu0 0.0
    %2870 = vmatpush1.msra.mxu0 0.0
    %2871 = vmatprep.subr.mxu0 0.0
    %2872 = vmatpush1.msra.mxu0 0.0
    %2873 = vmatprep.subr.mxu0 0.0
    %2874 = vmatpush1.msra.mxu0 0.0
    %2875 = vmatprep.subr.mxu0 0.0
    %2876 = vmatpush1.msra.mxu0 0.0
    %2877 = vmatprep.subr.mxu0 0.0
    %2878 = vmatpush1.msra.mxu0 0.0
    %2879 = vmatprep.subr.mxu0 0.0
    %2880 = vmatpush1.msra.mxu0 0.0
    %2881 = vmatprep.subr.mxu0 0.0
    %2882 = vmatpush1.msra.mxu0 0.0
    %2883 = vmatprep.subr.mxu0 0.0
    %2884 = vmatpush1.msra.mxu0 0.0
    %2885 = vmatprep.mubr.f32.mxu0 0.0
    %2886 = vmatmul.mubr.f32.gmra.mrb[0].mxu0 %v2816
    %v2887 = vpop.f32.mrb[0].mxu0
    %v2888 = vadd.f32 %v2813, %v2887
    %v2889 = vpop.f32.mrb[0].mxu0
    %2890 = vmatprep.mubr.f32.mxu0 0.0
    %2891 = vmatmul.mubr.f32.gmra.mrb[0].mxu0 %v2819
    %v2892 = vpop.f32.mrb[0].mxu0
    %v2893 = vadd.f32 %v2813, %v2892
    %v2894 = vpop.f32.mrb[0].mxu0
    %2895 = vdwg.mxu0
    %v2896 = vadd.f32 %v2706, %v2888
    %v2897 = vadd.f32 %v2707, %v2893
    %v2898 = vsel %vm113, %v2896, 0.0
    %2899 = vadd.xlane.f32.xlu0 %v2898
    %v2900 = vpop.xlane.xlu0 %2899
    %v2901 = vsel %vm113, %v2897, 0.0
    %2902 = vadd.xlane.f32.xlu0 %v2901
    %v2903 = vpop.xlane.xlu0 %2902
    %v2904 = vmul.f32 %v2900, %v1335
    %v2905 = vmul.f32 %v2903, %v1335
    %v2906 = vsub.f32 %v2896, %v2904
    %v2907 = vsub.f32 %v2897, %v2905
    %v2908 = vmul.f32 %v2906, %v2906
    %v2909 = vmul.f32 %v2907, %v2907
    %v2910 = vsel %vm113, %v2908, 0.0
    %2911 = vadd.xlane.f32.xlu0 %v2910
    %v2912 = vpop.xlane.xlu0 %2911
    %v2913 = vsel %vm113, %v2909, 0.0
    %2914 = vadd.xlane.f32.xlu0 %v2913
    %v2915 = vpop.xlane.xlu0 %2914
    %v2916 = vmul.f32 %v2912, %v1335
    %v2917 = vmul.f32 %v2915, %v1335
    %v2918 = vadd.f32 %v2916, 1e-06
    %v2919 = vadd.f32 %v2917, 1e-06
    %v2920 = vrsqrt.pop %v2918
    %v2921 = vrsqrt.pop %v2919
    %v2922 = vmul.f32 %v2906, %v2920
    %v2923 = vmul.f32 %v2907, %v2921
    %v2924 = vlaneseq
    %v2925 = vshrl.u32 %v2924, 7
    %v2926 = vsub.s32 4, %v2925
    %v2927 = vrot.slane %v108, %v2926
    %v2928 = vmul.f32 %v2922, %v2927
    %v2929 = vmul.f32 %v2923, %v2927
    %v2930 = vlaneseq
    %v2931 = vshrl.u32 %v2930, 7
    %v2932 = vsub.s32 5, %v2931
    %v2933 = vrot.slane %v108, %v2932
    %v2934 = vadd.f32 %v2928, %v2933
    %v2935 = vadd.f32 %v2929, %v2933
    %2936 = vst.msk [vmem:[#allocation11] sm:$0xff] %vm113, %v2934
    %2937 = vst.msk [vmem:[#allocation11 + $0x8] sm:$0xff] %vm113, %v2935
    // Predicated region
    $region58: #{tpu_custom_call.1} parent=1 // pred_check
      _
    $region59: #{tpu_custom_call.1} parent=1 // pred_check_branch
      %2939 = sbr.rel (0) target = $region61
    $region60: #{tpu_custom_call.1} parent=1 // pred_region
      %s2941 = ssub.s32 256, 256
      %2942 = vsyncadd [#allocation4], %s2941
      %s2943 = sshll.u32 [#allocation11], 4
      %s2944 = int_to_ptr.vmem [resolvable:$true] %s2943
      %2949 = dma.vmem_to_hbm [thread:$0]  %s2944, 256, %s9, [#allocation4], 128, 128, 8
    $region61: #{tpu_custom_call.1} parent=1 // pred_fallthru
      _
    // Predicated region
    $region62: #{tpu_custom_call.1} parent=1 // pred_check
      _
    $region63: #{tpu_custom_call.1} parent=1 // pred_check_branch
      %2951 = sbr.rel (0) target = $region65
    $region64: #{tpu_custom_call.1} parent=1 // pred_region
      %2952 = dma.done [#allocation4], 256
    $region65: #{tpu_custom_call.1} parent=1 // pred_fallthru
      _
    %2953 = vsyncpa [#allocation3], 1
    %2954 = vsyncpa [#allocation6], 1
    %2955 = vsyncpa [#allocation9], 1
    %2956 = vsyncpa [#allocation4], 1

</llo_original>
